<compile_context>
chip_gen: v5e
topology: v5e:2x2
jax: 0.10.0
libtpu: 0.0.40
codegen_flags: <defaults>
</compile_context>

<pallas_src>
import functools

import jax
import jax.numpy as jnp
from jax import lax
from jax.experimental import pallas as pl
from jax.experimental.pallas import tpu as pltpu


def _slam_kernel(x_ref, w13_ref, b13_ref, w4_ref, b4_ref, wsa_ref, o_ref,
                 *, H, W, ksize):
    f32 = jnp.float32
    x = x_ref[...].astype(f32)                      # (Nb, C, HW)  lane-dense
    Nb, C, HW = x.shape
    K = ksize
    p = K // 2

    # ---------------- Laplacian (channel) attention ----------------
    avg = jnp.mean(x, axis=-1)                      # (Nb, C)  lane reduce
    mx = jnp.max(x, axis=-1)                        # (Nb, C)
    v = jnp.concatenate([avg, mx], axis=0)          # (2Nb, C) [avg rows | max rows]

    # Fused c1|c2|c3 center taps -> one matmul + ReLU, then c4 center tap.
    h1 = jnp.maximum(
        jnp.dot(v, w13_ref[...], preferred_element_type=f32) + b13_ref[...], 0.0)
    o4 = jax.nn.sigmoid(
        jnp.dot(h1, w4_ref[...], preferred_element_type=f32) + b4_ref[...])
    att = jax.nn.sigmoid(o4[:Nb] + o4[Nb:])         # (Nb, C)
    l = x * att[:, :, None]                         # (Nb, C, HW) lane-dense mul

    # ---------------- Spatial attention (KxK conv, zero pad) ----------------
    ca = jnp.mean(l, axis=1)                        # (Nb, HW) reduce over C
    cm = jnp.max(l, axis=1)                         # (Nb, HW)

    # Zero-pad the flattened maps once; every tap is then a static lane slice.
    off = p * W + p
    zpad = jnp.zeros((Nb, off), f32)
    ca_p = jnp.concatenate([zpad, ca, zpad], axis=1)    # (Nb, HW + 2*off)
    cm_p = jnp.concatenate([zpad, cm, zpad], axis=1)

    # Column-validity masks; row overflow already lands in the flat zero pad.
    wcol = lax.broadcasted_iota(jnp.int32, (1, HW), 1) % W
    wmask = []
    for kj in range(K):
        dj = kj - p
        wmask.append(None if dj == 0 else
                     ((wcol + dj >= 0) & (wcol + dj < W)).astype(f32))

    # Hoist all 2*K*K SMEM scalar reads out of the tap loop.
    wlist = [wsa_ref[t] for t in range(2 * K * K)]

    acc = jnp.zeros((Nb, HW), f32)
    for ki in range(K):                              # static K*K taps
        di = ki - p
        for kj in range(K):
            dj = kj - p
            st = off + di * W + dj
            wa = wlist[ki * K + kj]                  # avg-map tap weight
            wm = wlist[K * K + ki * K + kj]          # max-map tap weight
            tap = wa * ca_p[:, st:st + HW] + wm * cm_p[:, st:st + HW]
            if wmask[kj] is not None:
                tap = tap * wmask[kj]
            acc = acc + tap

    s = jax.nn.sigmoid(acc)                          # (Nb, HW)
    o_ref[...] = (l * s[:, None, :]).astype(o_ref.dtype)


def _pick_nb(N, per_elem_bytes, target_bytes=1 << 20):
    """Largest divisor of N whose block is <= target, keeping >= 2 grid steps."""
    best = 1
    for nb in range(1, N + 1):
        if N % nb:
            continue
        if N >= 2 and N // nb < 2:
            continue                      # keep >=2 parallel steps (v7x has 2 TCs)
        if nb * per_elem_bytes <= target_bytes:
            best = nb
    return best


def slam_pallas(x, kparams, *, ksize):
    w13t, b13, w4t, b4, wsa_flat = kparams
    N, C, H, W = x.shape
    HW = H * W
    K = ksize
    Cr3 = w13t.shape[1]

    itemsize = x.dtype.itemsize
    Nb = _pick_nb(N, C * HW * itemsize)
    grid = (N // Nb,)

    # VMEM budget: double-buffered in + out blocks, weights, slack.
    block_bytes = Nb * C * HW * itemsize
    vmem_limit = int(min(max(4 * block_bytes + (4 << 20), 32 << 20), 64 << 20))

    x2 = x.reshape(N, C, HW)              # lane-dense: H*W on the 128-lane axis

    kernel = functools.partial(_slam_kernel, H=H, W=W, ksize=ksize)
    out2 = pl.pallas_call(
        kernel,
        out_shape=jax.ShapeDtypeStruct((N, C, HW), x.dtype),
        grid=grid,
        in_specs=[
            pl.BlockSpec((Nb, C, HW), lambda n: (n, 0, 0)),      # x
            pl.BlockSpec((C, Cr3), lambda n: (0, 0)),            # fused c1|c2|c3 weight
            pl.BlockSpec((1, Cr3), lambda n: (0, 0)),            # fused c1|c2|c3 bias
            pl.BlockSpec((Cr3, C), lambda n: (0, 0)),            # c4 center-tap weight
            pl.BlockSpec((1, C), lambda n: (0, 0)),              # c4 bias
            pl.BlockSpec((2 * K * K,), lambda n: (0,),
                         memory_space=pltpu.MemorySpace.SMEM),   # spatial conv weights
        ],
        out_specs=pl.BlockSpec((Nb, C, HW), lambda n: (n, 0, 0)),
        compiler_params=pltpu.CompilerParams(
            dimension_semantics=("parallel",),
            vmem_limit_bytes=vmem_limit),
    )(x2, w13t, b13, w4t, b4, wsa_flat)
    return out2.reshape(N, C, H, W)


def ref_slam(x, full_params, *, ksize):
    """Pure-JAX reference matching the PyTorch module (full 4D conv weights)."""
    (w1, b1, w2, b2, w3, b3, w4, b4, wsa) = full_params

    def conv(v, w, pad, dil):
        return lax.conv_general_dilated(
            v, w, window_strides=(1, 1),
            padding=[(pad, pad), (pad, pad)],
            rhs_dilation=(dil, dil),
            dimension_numbers=("NCHW", "OIHW", "NCHW"),
            precision=lax.Precision.HIGHEST)

    def lap_branch(pvec):                                        # (N, C, 1, 1)
        c1 = jax.nn.relu(conv(pvec, w1, 3, 3) + b1[None, :, None, None])
        c2 = jax.nn.relu(conv(pvec, w2, 5, 5) + b2[None, :, None, None])
        c3 = jax.nn.relu(conv(pvec, w3, 7, 7) + b3[None, :, None, None])
        cc = jnp.concatenate([c1, c2, c3], axis=1)
        return jax.nn.sigmoid(conv(cc, w4, 1, 1) + b4[None, :, None, None])

    avg = jnp.mean(x, axis=(2, 3), keepdims=True)
    mxp = jnp.max(x, axis=(2, 3), keepdims=True)
    la = jax.nn.sigmoid(lap_branch(avg) + lap_branch(mxp))
    l = x * la

    ca = jnp.mean(l, axis=1, keepdims=True)
    cm = jnp.max(l, axis=1, keepdims=True)
    s = jax.nn.sigmoid(conv(jnp.concatenate([ca, cm], axis=1), wsa, ksize // 2, 1))
    return l * s


if __name__ == "__main__":
    N, C, H, W = 2, 32, 16, 16
    reduction, ksize = 16, 7
    Cr = C // reduction

    key = jax.random.PRNGKey(0)
    ks = jax.random.split(key, 10)
    x = jax.random.normal(ks[0], (N, C, H, W), jnp.float32)

    # Deterministic synthetic parameters (shapes from the module __init__).
    w1 = jax.random.normal(ks[1], (Cr, C, 3, 3), jnp.float32) * 0.1
    b1 = jax.random.normal(ks[2], (Cr,), jnp.float32) * 0.1
    w2 = jax.random.normal(ks[3], (Cr, C, 3, 3), jnp.float32) * 0.1
    b2 = jax.random.normal(ks[4], (Cr,), jnp.float32) * 0.1
    w3 = jax.random.normal(ks[5], (Cr, C, 3, 3), jnp.float32) * 0.1
    b3 = jax.random.normal(ks[6], (Cr,), jnp.float32) * 0.1
    w4 = jax.random.normal(ks[7], (C, 3 * Cr, 3, 3), jnp.float32) * 0.1
    b4 = jax.random.normal(ks[8], (C,), jnp.float32) * 0.1
    wsa = jax.random.normal(ks[9], (1, 2, ksize, ksize), jnp.float32) * 0.1

    # Kernel-side params: dilated convs on 1x1 pooled inputs collapse to their
    # center taps (exact); the three reduction branches are fused into one matmul.
    w13t = jnp.concatenate([w1[:, :, 1, 1], w2[:, :, 1, 1], w3[:, :, 1, 1]],
                           axis=0).T                       # (C, 3*Cr)
    b13 = jnp.concatenate([b1, b2, b3])[None, :]           # (1, 3*Cr)
    w4t = w4[:, :, 1, 1].T                                 # (3*Cr, C)
    b4k = b4[None, :]                                      # (1, C)
    wsa_flat = wsa[0].reshape(-1)                          # (2*ksize*ksize,)

    kparams = (w13t, b13, w4t, b4k, wsa_flat)

    out = slam_pallas(x, kparams, ksize=ksize)
    out = jax.block_until_ready(out)

    ref = ref_slam(x, (w1, b1, w2, b2, w3, b3, w4, b4, wsa), ksize=ksize)
    max_err = float(jnp.max(jnp.abs(out - ref)))
    assert jnp.allclose(out, ref, atol=1e-4, rtol=1e-4), f"max_err={max_err}"
    print("KERNEL_OK")
</pallas_src>

<mosaic_0001>
module attributes {stable_mosaic.version = 11 : i64} {
  func.func @_slam_kernel(%arg0: i32, %arg1: memref<1x32x256xf32, #tpu.memory_space<vmem>>, %arg2: memref<32x6xf32, #tpu.memory_space<vmem>>, %arg3: memref<1x6xf32, #tpu.memory_space<vmem>>, %arg4: memref<6x32xf32, #tpu.memory_space<vmem>>, %arg5: memref<1x32xf32, #tpu.memory_space<vmem>>, %arg6: memref<98xf32, #tpu.memory_space<smem>>, %arg7: memref<1x32x256xf32, #tpu.memory_space<vmem>>) attributes {dimension_semantics = [#tpu.dimension_semantics<parallel>], iteration_bounds = array<i64: 2>, scalar_prefetch = 0 : i64, scratch_operands = 0 : i64, tpu.core_type = #tpu.core_type<tc>, window_params = [{transform_indices = @transform_0, window_bounds = array<i64: 1, 32, 256>}, {pipeline_mode = #tpu.pipeline_mode<synchronous>, transform_indices = @transform_1, window_bounds = array<i64: 32, 6>}, {pipeline_mode = #tpu.pipeline_mode<synchronous>, transform_indices = @transform_2, window_bounds = array<i64: 1, 6>}, {pipeline_mode = #tpu.pipeline_mode<synchronous>, transform_indices = @transform_3, window_bounds = array<i64: 6, 32>}, {pipeline_mode = #tpu.pipeline_mode<synchronous>, transform_indices = @transform_4, window_bounds = array<i64: 1, 32>}, {transform_indices = @transform_5, window_bounds = array<i64: 98>}, {transform_indices = @transform_6, window_bounds = array<i64: 1, 32, 256>}]} {
    %c0 = arith.constant 0 : index
    %c0_0 = arith.constant 0 : index
    %c0_1 = arith.constant 0 : index
    %0 = vector.load %arg1[%c0, %c0_0, %c0_1] : memref<1x32x256xf32, #tpu.memory_space<vmem>>, vector<1x32x256xf32>
    %cst = arith.constant dense<0.000000e+00> : vector<1x32xf32>
    %1 = vector.multi_reduction <add>, %0, %cst [2] : vector<1x32x256xf32> to vector<1x32xf32>
    %cst_2 = arith.constant 2.560000e+02 : f32
    %2 = vector.broadcast %cst_2 : f32 to vector<1x32xf32>
    %3 = arith.divf %1, %2 : vector<1x32xf32>
    %cst_3 = arith.constant dense<0xFF800000> : vector<1x32xf32>
    %4 = vector.multi_reduction <maximumf>, %0, %cst_3 [2] : vector<1x32x256xf32> to vector<1x32xf32>
    %5 = tpu.concatenate %3, %4 in 0 : vector<1x32xf32>, vector<1x32xf32> -> vector<2x32xf32>
    %c0_4 = arith.constant 0 : index
    %c0_5 = arith.constant 0 : index
    %6 = vector.load %arg2[%c0_4, %c0_5] : memref<32x6xf32, #tpu.memory_space<vmem>>, vector<32x6xf32>
    %cst_6 = arith.constant dense<0.000000e+00> : vector<2x6xf32>
    %7 = tpu.matmul %5, %6, %cst_6 {dimension_numbers = #tpu.dot_dimension_numbers<[1], [0], [0], [1], [0, 0, 1, 1], [], []>} : vector<2x32xf32>, vector<32x6xf32>, vector<2x6xf32> -> vector<2x6xf32>
    %c0_7 = arith.constant 0 : index
    %c0_8 = arith.constant 0 : index
    %8 = vector.load %arg3[%c0_7, %c0_8] : memref<1x6xf32, #tpu.memory_space<vmem>>, vector<1x6xf32>
    %9 = vector.broadcast %8 : vector<1x6xf32> to vector<2x6xf32>
    %10 = arith.addf %7, %9 : vector<2x6xf32>
    %cst_9 = arith.constant 0.000000e+00 : f32
    %11 = vector.broadcast %cst_9 : f32 to vector<2x6xf32>
    %12 = arith.maximumf %10, %11 : vector<2x6xf32>
    %c0_10 = arith.constant 0 : index
    %c0_11 = arith.constant 0 : index
    %13 = vector.load %arg4[%c0_10, %c0_11] : memref<6x32xf32, #tpu.memory_space<vmem>>, vector<6x32xf32>
    %cst_12 = arith.constant dense<0.000000e+00> : vector<2x32xf32>
    %14 = tpu.matmul %12, %13, %cst_12 {dimension_numbers = #tpu.dot_dimension_numbers<[1], [0], [0], [1], [0, 0, 1, 1], [], []>} : vector<2x6xf32>, vector<6x32xf32>, vector<2x32xf32> -> vector<2x32xf32>
    %c0_13 = arith.constant 0 : index
    %c0_14 = arith.constant 0 : index
    %15 = vector.load %arg5[%c0_13, %c0_14] : memref<1x32xf32, #tpu.memory_space<vmem>>, vector<1x32xf32>
    %16 = vector.broadcast %15 : vector<1x32xf32> to vector<2x32xf32>
    %17 = arith.addf %14, %16 : vector<2x32xf32>
    %18 = arith.negf %17 : vector<2x32xf32>
    %19 = math.exp %18 : vector<2x32xf32>
    %cst_15 = arith.constant 1.000000e+00 : f32
    %20 = vector.broadcast %cst_15 : f32 to vector<2x32xf32>
    %21 = arith.addf %20, %19 : vector<2x32xf32>
    %22 = arith.divf %20, %21 : vector<2x32xf32>
    %23 = vector.extract_strided_slice %22 {offsets = [0, 0], sizes = [1, 32], strides = [1, 1]} : vector<2x32xf32> to vector<1x32xf32>
    %24 = vector.extract_strided_slice %22 {offsets = [1, 0], sizes = [1, 32], strides = [1, 1]} : vector<2x32xf32> to vector<1x32xf32>
    %25 = arith.addf %23, %24 : vector<1x32xf32>
    %26 = arith.negf %25 : vector<1x32xf32>
    %27 = math.exp %26 : vector<1x32xf32>
    %cst_16 = arith.constant 1.000000e+00 : f32
    %28 = vector.broadcast %cst_16 : f32 to vector<1x32xf32>
    %29 = arith.addf %28, %27 : vector<1x32xf32>
    %30 = arith.divf %28, %29 : vector<1x32xf32>
    %31 = vector.shape_cast %30 : vector<1x32xf32> to vector<1x32x1xf32>
    %32 = vector.broadcast %31 : vector<1x32x1xf32> to vector<1x32x256xf32>
    %33 = arith.mulf %0, %32 : vector<1x32x256xf32>
    %cst_17 = arith.constant dense<0.000000e+00> : vector<1x256xf32>
    %34 = vector.multi_reduction <add>, %33, %cst_17 [1] : vector<1x32x256xf32> to vector<1x256xf32>
    %cst_18 = arith.constant 3.200000e+01 : f32
    %35 = vector.broadcast %cst_18 : f32 to vector<1x256xf32>
    %36 = arith.divf %34, %35 : vector<1x256xf32>
    %cst_19 = arith.constant dense<0xFF800000> : vector<1x256xf32>
    %37 = vector.multi_reduction <maximumf>, %33, %cst_19 [1] : vector<1x32x256xf32> to vector<1x256xf32>
    %cst_20 = arith.constant 0.000000e+00 : f32
    %38 = vector.broadcast %cst_20 : f32 to vector<1x51xf32>
    %39 = tpu.concatenate %38, %36, %38 in 1 : vector<1x51xf32>, vector<1x256xf32>, vector<1x51xf32> -> vector<1x358xf32>
    %40 = tpu.concatenate %38, %37, %38 in 1 : vector<1x51xf32>, vector<1x256xf32>, vector<1x51xf32> -> vector<1x358xf32>
    %41 = tpu.iota {dimensions = array<i32: 1>} : vector<1x256xi32>
    %c16_i32 = arith.constant 16 : i32
    %c0_i32 = arith.constant 0 : i32
    %42 = arith.cmpi eq, %c16_i32, %c0_i32 : i32
    %c1_i32 = arith.constant 1 : i32
    %43 = arith.select %42, %c1_i32, %c16_i32 : i32
    %44 = vector.broadcast %43 : i32 to vector<1x256xi32>
    %45 = arith.remsi %41, %44 : vector<1x256xi32>
    %c0_i32_21 = arith.constant 0 : i32
    %46 = vector.broadcast %c0_i32_21 : i32 to vector<1x256xi32>
    %47 = arith.cmpi ne, %45, %46 : vector<1x256xi32>
    %c0_i32_22 = arith.constant 0 : i32
    %48 = vector.broadcast %c0_i32_22 : i32 to vector<1x256xi32>
    %49 = arith.cmpi slt, %45, %48 : vector<1x256xi32>
    %c0_i32_23 = arith.constant 0 : i32
    %50 = arith.cmpi slt, %43, %c0_i32_23 : i32
    %51 = vector.broadcast %50 : i1 to vector<1x256xi1>
    %52 = vector.broadcast %51 : vector<1x256xi1> to vector<1x256xi1>
    %53 = arith.xori %49, %52 : vector<1x256xi1>
    %54 = arith.andi %53, %47 : vector<1x256xi1>
    %55 = vector.broadcast %43 : i32 to vector<1x256xi32>
    %56 = arith.addi %45, %55 : vector<1x256xi32>
    %57 = arith.select %54, %56, %45 : vector<1x256xi1>, vector<1x256xi32>
    %c-3_i32 = arith.constant -3 : i32
    %58 = vector.broadcast %c-3_i32 : i32 to vector<1x256xi32>
    %59 = arith.addi %57, %58 : vector<1x256xi32>
    %c0_i32_24 = arith.constant 0 : i32
    %60 = vector.broadcast %c0_i32_24 : i32 to vector<1x256xi32>
    %61 = arith.cmpi sge, %59, %60 : vector<1x256xi32>
    %c-3_i32_25 = arith.constant -3 : i32
    %62 = vector.broadcast %c-3_i32_25 : i32 to vector<1x256xi32>
    %63 = arith.addi %57, %62 : vector<1x256xi32>
    %c16_i32_26 = arith.constant 16 : i32
    %64 = vector.broadcast %c16_i32_26 : i32 to vector<1x256xi32>
    %65 = arith.cmpi slt, %63, %64 : vector<1x256xi32>
    %66 = arith.andi %61, %65 : vector<1x256xi1>
    %67 = arith.extui %66 : vector<1x256xi1> to vector<1x256xi32>
    %68 = arith.sitofp %67 : vector<1x256xi32> to vector<1x256xf32>
    %c-2_i32 = arith.constant -2 : i32
    %69 = vector.broadcast %c-2_i32 : i32 to vector<1x256xi32>
    %70 = arith.addi %57, %69 : vector<1x256xi32>
    %c0_i32_27 = arith.constant 0 : i32
    %71 = vector.broadcast %c0_i32_27 : i32 to vector<1x256xi32>
    %72 = arith.cmpi sge, %70, %71 : vector<1x256xi32>
    %c-2_i32_28 = arith.constant -2 : i32
    %73 = vector.broadcast %c-2_i32_28 : i32 to vector<1x256xi32>
    %74 = arith.addi %57, %73 : vector<1x256xi32>
    %c16_i32_29 = arith.constant 16 : i32
    %75 = vector.broadcast %c16_i32_29 : i32 to vector<1x256xi32>
    %76 = arith.cmpi slt, %74, %75 : vector<1x256xi32>
    %77 = arith.andi %72, %76 : vector<1x256xi1>
    %78 = arith.extui %77 : vector<1x256xi1> to vector<1x256xi32>
    %79 = arith.sitofp %78 : vector<1x256xi32> to vector<1x256xf32>
    %c-1_i32 = arith.constant -1 : i32
    %80 = vector.broadcast %c-1_i32 : i32 to vector<1x256xi32>
    %81 = arith.addi %57, %80 : vector<1x256xi32>
    %c0_i32_30 = arith.constant 0 : i32
    %82 = vector.broadcast %c0_i32_30 : i32 to vector<1x256xi32>
    %83 = arith.cmpi sge, %81, %82 : vector<1x256xi32>
    %c-1_i32_31 = arith.constant -1 : i32
    %84 = vector.broadcast %c-1_i32_31 : i32 to vector<1x256xi32>
    %85 = arith.addi %57, %84 : vector<1x256xi32>
    %c16_i32_32 = arith.constant 16 : i32
    %86 = vector.broadcast %c16_i32_32 : i32 to vector<1x256xi32>
    %87 = arith.cmpi slt, %85, %86 : vector<1x256xi32>
    %88 = arith.andi %83, %87 : vector<1x256xi1>
    %89 = arith.extui %88 : vector<1x256xi1> to vector<1x256xi32>
    %90 = arith.sitofp %89 : vector<1x256xi32> to vector<1x256xf32>
    %c1_i32_33 = arith.constant 1 : i32
    %91 = vector.broadcast %c1_i32_33 : i32 to vector<1x256xi32>
    %92 = arith.addi %57, %91 : vector<1x256xi32>
    %c0_i32_34 = arith.constant 0 : i32
    %93 = vector.broadcast %c0_i32_34 : i32 to vector<1x256xi32>
    %94 = arith.cmpi sge, %92, %93 : vector<1x256xi32>
    %c1_i32_35 = arith.constant 1 : i32
    %95 = vector.broadcast %c1_i32_35 : i32 to vector<1x256xi32>
    %96 = arith.addi %57, %95 : vector<1x256xi32>
    %c16_i32_36 = arith.constant 16 : i32
    %97 = vector.broadcast %c16_i32_36 : i32 to vector<1x256xi32>
    %98 = arith.cmpi slt, %96, %97 : vector<1x256xi32>
    %99 = arith.andi %94, %98 : vector<1x256xi1>
    %100 = arith.extui %99 : vector<1x256xi1> to vector<1x256xi32>
    %101 = arith.sitofp %100 : vector<1x256xi32> to vector<1x256xf32>
    %c2_i32 = arith.constant 2 : i32
    %102 = vector.broadcast %c2_i32 : i32 to vector<1x256xi32>
    %103 = arith.addi %57, %102 : vector<1x256xi32>
    %c0_i32_37 = arith.constant 0 : i32
    %104 = vector.broadcast %c0_i32_37 : i32 to vector<1x256xi32>
    %105 = arith.cmpi sge, %103, %104 : vector<1x256xi32>
    %c2_i32_38 = arith.constant 2 : i32
    %106 = vector.broadcast %c2_i32_38 : i32 to vector<1x256xi32>
    %107 = arith.addi %57, %106 : vector<1x256xi32>
    %c16_i32_39 = arith.constant 16 : i32
    %108 = vector.broadcast %c16_i32_39 : i32 to vector<1x256xi32>
    %109 = arith.cmpi slt, %107, %108 : vector<1x256xi32>
    %110 = arith.andi %105, %109 : vector<1x256xi1>
    %111 = arith.extui %110 : vector<1x256xi1> to vector<1x256xi32>
    %112 = arith.sitofp %111 : vector<1x256xi32> to vector<1x256xf32>
    %c3_i32 = arith.constant 3 : i32
    %113 = vector.broadcast %c3_i32 : i32 to vector<1x256xi32>
    %114 = arith.addi %57, %113 : vector<1x256xi32>
    %c0_i32_40 = arith.constant 0 : i32
    %115 = vector.broadcast %c0_i32_40 : i32 to vector<1x256xi32>
    %116 = arith.cmpi sge, %114, %115 : vector<1x256xi32>
    %c3_i32_41 = arith.constant 3 : i32
    %117 = vector.broadcast %c3_i32_41 : i32 to vector<1x256xi32>
    %118 = arith.addi %57, %117 : vector<1x256xi32>
    %c16_i32_42 = arith.constant 16 : i32
    %119 = vector.broadcast %c16_i32_42 : i32 to vector<1x256xi32>
    %120 = arith.cmpi slt, %118, %119 : vector<1x256xi32>
    %121 = arith.andi %116, %120 : vector<1x256xi1>
    %122 = arith.extui %121 : vector<1x256xi1> to vector<1x256xi32>
    %123 = arith.sitofp %122 : vector<1x256xi32> to vector<1x256xf32>
    %c0_43 = arith.constant 0 : index
    %124 = memref.load %arg6[%c0_43] : memref<98xf32, #tpu.memory_space<smem>>
    %c1 = arith.constant 1 : index
    %125 = memref.load %arg6[%c1] : memref<98xf32, #tpu.memory_space<smem>>
    %c2 = arith.constant 2 : index
    %126 = memref.load %arg6[%c2] : memref<98xf32, #tpu.memory_space<smem>>
    %c3 = arith.constant 3 : index
    %127 = memref.load %arg6[%c3] : memref<98xf32, #tpu.memory_space<smem>>
    %c4 = arith.constant 4 : index
    %128 = memref.load %arg6[%c4] : memref<98xf32, #tpu.memory_space<smem>>
    %c5 = arith.constant 5 : index
    %129 = memref.load %arg6[%c5] : memref<98xf32, #tpu.memory_space<smem>>
    %c6 = arith.constant 6 : index
    %130 = memref.load %arg6[%c6] : memref<98xf32, #tpu.memory_space<smem>>
    %c7 = arith.constant 7 : index
    %131 = memref.load %arg6[%c7] : memref<98xf32, #tpu.memory_space<smem>>
    %c8 = arith.constant 8 : index
    %132 = memref.load %arg6[%c8] : memref<98xf32, #tpu.memory_space<smem>>
    %c9 = arith.constant 9 : index
    %133 = memref.load %arg6[%c9] : memref<98xf32, #tpu.memory_space<smem>>
    %c10 = arith.constant 10 : index
    %134 = memref.load %arg6[%c10] : memref<98xf32, #tpu.memory_space<smem>>
    %c11 = arith.constant 11 : index
    %135 = memref.load %arg6[%c11] : memref<98xf32, #tpu.memory_space<smem>>
    %c12 = arith.constant 12 : index
    %136 = memref.load %arg6[%c12] : memref<98xf32, #tpu.memory_space<smem>>
    %c13 = arith.constant 13 : index
    %137 = memref.load %arg6[%c13] : memref<98xf32, #tpu.memory_space<smem>>
    %c14 = arith.constant 14 : index
    %138 = memref.load %arg6[%c14] : memref<98xf32, #tpu.memory_space<smem>>
    %c15 = arith.constant 15 : index
    %139 = memref.load %arg6[%c15] : memref<98xf32, #tpu.memory_space<smem>>
    %c16 = arith.constant 16 : index
    %140 = memref.load %arg6[%c16] : memref<98xf32, #tpu.memory_space<smem>>
    %c17 = arith.constant 17 : index
    %141 = memref.load %arg6[%c17] : memref<98xf32, #tpu.memory_space<smem>>
    %c18 = arith.constant 18 : index
    %142 = memref.load %arg6[%c18] : memref<98xf32, #tpu.memory_space<smem>>
    %c19 = arith.constant 19 : index
    %143 = memref.load %arg6[%c19] : memref<98xf32, #tpu.memory_space<smem>>
    %c20 = arith.constant 20 : index
    %144 = memref.load %arg6[%c20] : memref<98xf32, #tpu.memory_space<smem>>
    %c21 = arith.constant 21 : index
    %145 = memref.load %arg6[%c21] : memref<98xf32, #tpu.memory_space<smem>>
    %c22 = arith.constant 22 : index
    %146 = memref.load %arg6[%c22] : memref<98xf32, #tpu.memory_space<smem>>
    %c23 = arith.constant 23 : index
    %147 = memref.load %arg6[%c23] : memref<98xf32, #tpu.memory_space<smem>>
    %c24 = arith.constant 24 : index
    %148 = memref.load %arg6[%c24] : memref<98xf32, #tpu.memory_space<smem>>
    %c25 = arith.constant 25 : index
    %149 = memref.load %arg6[%c25] : memref<98xf32, #tpu.memory_space<smem>>
    %c26 = arith.constant 26 : index
    %150 = memref.load %arg6[%c26] : memref<98xf32, #tpu.memory_space<smem>>
    %c27 = arith.constant 27 : index
    %151 = memref.load %arg6[%c27] : memref<98xf32, #tpu.memory_space<smem>>
    %c28 = arith.constant 28 : index
    %152 = memref.load %arg6[%c28] : memref<98xf32, #tpu.memory_space<smem>>
    %c29 = arith.constant 29 : index
    %153 = memref.load %arg6[%c29] : memref<98xf32, #tpu.memory_space<smem>>
    %c30 = arith.constant 30 : index
    %154 = memref.load %arg6[%c30] : memref<98xf32, #tpu.memory_space<smem>>
    %c31 = arith.constant 31 : index
    %155 = memref.load %arg6[%c31] : memref<98xf32, #tpu.memory_space<smem>>
    %c32 = arith.constant 32 : index
    %156 = memref.load %arg6[%c32] : memref<98xf32, #tpu.memory_space<smem>>
    %c33 = arith.constant 33 : index
    %157 = memref.load %arg6[%c33] : memref<98xf32, #tpu.memory_space<smem>>
    %c34 = arith.constant 34 : index
    %158 = memref.load %arg6[%c34] : memref<98xf32, #tpu.memory_space<smem>>
    %c35 = arith.constant 35 : index
    %159 = memref.load %arg6[%c35] : memref<98xf32, #tpu.memory_space<smem>>
    %c36 = arith.constant 36 : index
    %160 = memref.load %arg6[%c36] : memref<98xf32, #tpu.memory_space<smem>>
    %c37 = arith.constant 37 : index
    %161 = memref.load %arg6[%c37] : memref<98xf32, #tpu.memory_space<smem>>
    %c38 = arith.constant 38 : index
    %162 = memref.load %arg6[%c38] : memref<98xf32, #tpu.memory_space<smem>>
    %c39 = arith.constant 39 : index
    %163 = memref.load %arg6[%c39] : memref<98xf32, #tpu.memory_space<smem>>
    %c40 = arith.constant 40 : index
    %164 = memref.load %arg6[%c40] : memref<98xf32, #tpu.memory_space<smem>>
    %c41 = arith.constant 41 : index
    %165 = memref.load %arg6[%c41] : memref<98xf32, #tpu.memory_space<smem>>
    %c42 = arith.constant 42 : index
    %166 = memref.load %arg6[%c42] : memref<98xf32, #tpu.memory_space<smem>>
    %c43 = arith.constant 43 : index
    %167 = memref.load %arg6[%c43] : memref<98xf32, #tpu.memory_space<smem>>
    %c44 = arith.constant 44 : index
    %168 = memref.load %arg6[%c44] : memref<98xf32, #tpu.memory_space<smem>>
    %c45 = arith.constant 45 : index
    %169 = memref.load %arg6[%c45] : memref<98xf32, #tpu.memory_space<smem>>
    %c46 = arith.constant 46 : index
    %170 = memref.load %arg6[%c46] : memref<98xf32, #tpu.memory_space<smem>>
    %c47 = arith.constant 47 : index
    %171 = memref.load %arg6[%c47] : memref<98xf32, #tpu.memory_space<smem>>
    %c48 = arith.constant 48 : index
    %172 = memref.load %arg6[%c48] : memref<98xf32, #tpu.memory_space<smem>>
    %c49 = arith.constant 49 : index
    %173 = memref.load %arg6[%c49] : memref<98xf32, #tpu.memory_space<smem>>
    %c50 = arith.constant 50 : index
    %174 = memref.load %arg6[%c50] : memref<98xf32, #tpu.memory_space<smem>>
    %c51 = arith.constant 51 : index
    %175 = memref.load %arg6[%c51] : memref<98xf32, #tpu.memory_space<smem>>
    %c52 = arith.constant 52 : index
    %176 = memref.load %arg6[%c52] : memref<98xf32, #tpu.memory_space<smem>>
    %c53 = arith.constant 53 : index
    %177 = memref.load %arg6[%c53] : memref<98xf32, #tpu.memory_space<smem>>
    %c54 = arith.constant 54 : index
    %178 = memref.load %arg6[%c54] : memref<98xf32, #tpu.memory_space<smem>>
    %c55 = arith.constant 55 : index
    %179 = memref.load %arg6[%c55] : memref<98xf32, #tpu.memory_space<smem>>
    %c56 = arith.constant 56 : index
    %180 = memref.load %arg6[%c56] : memref<98xf32, #tpu.memory_space<smem>>
    %c57 = arith.constant 57 : index
    %181 = memref.load %arg6[%c57] : memref<98xf32, #tpu.memory_space<smem>>
    %c58 = arith.constant 58 : index
    %182 = memref.load %arg6[%c58] : memref<98xf32, #tpu.memory_space<smem>>
    %c59 = arith.constant 59 : index
    %183 = memref.load %arg6[%c59] : memref<98xf32, #tpu.memory_space<smem>>
    %c60 = arith.constant 60 : index
    %184 = memref.load %arg6[%c60] : memref<98xf32, #tpu.memory_space<smem>>
    %c61 = arith.constant 61 : index
    %185 = memref.load %arg6[%c61] : memref<98xf32, #tpu.memory_space<smem>>
    %c62 = arith.constant 62 : index
    %186 = memref.load %arg6[%c62] : memref<98xf32, #tpu.memory_space<smem>>
    %c63 = arith.constant 63 : index
    %187 = memref.load %arg6[%c63] : memref<98xf32, #tpu.memory_space<smem>>
    %c64 = arith.constant 64 : index
    %188 = memref.load %arg6[%c64] : memref<98xf32, #tpu.memory_space<smem>>
    %c65 = arith.constant 65 : index
    %189 = memref.load %arg6[%c65] : memref<98xf32, #tpu.memory_space<smem>>
    %c66 = arith.constant 66 : index
    %190 = memref.load %arg6[%c66] : memref<98xf32, #tpu.memory_space<smem>>
    %c67 = arith.constant 67 : index
    %191 = memref.load %arg6[%c67] : memref<98xf32, #tpu.memory_space<smem>>
    %c68 = arith.constant 68 : index
    %192 = memref.load %arg6[%c68] : memref<98xf32, #tpu.memory_space<smem>>
    %c69 = arith.constant 69 : index
    %193 = memref.load %arg6[%c69] : memref<98xf32, #tpu.memory_space<smem>>
    %c70 = arith.constant 70 : index
    %194 = memref.load %arg6[%c70] : memref<98xf32, #tpu.memory_space<smem>>
    %c71 = arith.constant 71 : index
    %195 = memref.load %arg6[%c71] : memref<98xf32, #tpu.memory_space<smem>>
    %c72 = arith.constant 72 : index
    %196 = memref.load %arg6[%c72] : memref<98xf32, #tpu.memory_space<smem>>
    %c73 = arith.constant 73 : index
    %197 = memref.load %arg6[%c73] : memref<98xf32, #tpu.memory_space<smem>>
    %c74 = arith.constant 74 : index
    %198 = memref.load %arg6[%c74] : memref<98xf32, #tpu.memory_space<smem>>
    %c75 = arith.constant 75 : index
    %199 = memref.load %arg6[%c75] : memref<98xf32, #tpu.memory_space<smem>>
    %c76 = arith.constant 76 : index
    %200 = memref.load %arg6[%c76] : memref<98xf32, #tpu.memory_space<smem>>
    %c77 = arith.constant 77 : index
    %201 = memref.load %arg6[%c77] : memref<98xf32, #tpu.memory_space<smem>>
    %c78 = arith.constant 78 : index
    %202 = memref.load %arg6[%c78] : memref<98xf32, #tpu.memory_space<smem>>
    %c79 = arith.constant 79 : index
    %203 = memref.load %arg6[%c79] : memref<98xf32, #tpu.memory_space<smem>>
    %c80 = arith.constant 80 : index
    %204 = memref.load %arg6[%c80] : memref<98xf32, #tpu.memory_space<smem>>
    %c81 = arith.constant 81 : index
    %205 = memref.load %arg6[%c81] : memref<98xf32, #tpu.memory_space<smem>>
    %c82 = arith.constant 82 : index
    %206 = memref.load %arg6[%c82] : memref<98xf32, #tpu.memory_space<smem>>
    %c83 = arith.constant 83 : index
    %207 = memref.load %arg6[%c83] : memref<98xf32, #tpu.memory_space<smem>>
    %c84 = arith.constant 84 : index
    %208 = memref.load %arg6[%c84] : memref<98xf32, #tpu.memory_space<smem>>
    %c85 = arith.constant 85 : index
    %209 = memref.load %arg6[%c85] : memref<98xf32, #tpu.memory_space<smem>>
    %c86 = arith.constant 86 : index
    %210 = memref.load %arg6[%c86] : memref<98xf32, #tpu.memory_space<smem>>
    %c87 = arith.constant 87 : index
    %211 = memref.load %arg6[%c87] : memref<98xf32, #tpu.memory_space<smem>>
    %c88 = arith.constant 88 : index
    %212 = memref.load %arg6[%c88] : memref<98xf32, #tpu.memory_space<smem>>
    %c89 = arith.constant 89 : index
    %213 = memref.load %arg6[%c89] : memref<98xf32, #tpu.memory_space<smem>>
    %c90 = arith.constant 90 : index
    %214 = memref.load %arg6[%c90] : memref<98xf32, #tpu.memory_space<smem>>
    %c91 = arith.constant 91 : index
    %215 = memref.load %arg6[%c91] : memref<98xf32, #tpu.memory_space<smem>>
    %c92 = arith.constant 92 : index
    %216 = memref.load %arg6[%c92] : memref<98xf32, #tpu.memory_space<smem>>
    %c93 = arith.constant 93 : index
    %217 = memref.load %arg6[%c93] : memref<98xf32, #tpu.memory_space<smem>>
    %c94 = arith.constant 94 : index
    %218 = memref.load %arg6[%c94] : memref<98xf32, #tpu.memory_space<smem>>
    %c95 = arith.constant 95 : index
    %219 = memref.load %arg6[%c95] : memref<98xf32, #tpu.memory_space<smem>>
    %c96 = arith.constant 96 : index
    %220 = memref.load %arg6[%c96] : memref<98xf32, #tpu.memory_space<smem>>
    %c97 = arith.constant 97 : index
    %221 = memref.load %arg6[%c97] : memref<98xf32, #tpu.memory_space<smem>>
    %cst_44 = arith.constant 0.000000e+00 : f32
    %222 = vector.broadcast %cst_44 : f32 to vector<1x256xf32>
    %223 = vector.extract_strided_slice %39 {offsets = [0, 0], sizes = [1, 256], strides = [1, 1]} : vector<1x358xf32> to vector<1x256xf32>
    %224 = vector.broadcast %124 : f32 to vector<1x256xf32>
    %225 = arith.mulf %224, %223 : vector<1x256xf32>
    %226 = vector.extract_strided_slice %40 {offsets = [0, 0], sizes = [1, 256], strides = [1, 1]} : vector<1x358xf32> to vector<1x256xf32>
    %227 = vector.broadcast %173 : f32 to vector<1x256xf32>
    %228 = arith.mulf %227, %226 : vector<1x256xf32>
    %229 = arith.addf %225, %228 : vector<1x256xf32>
    %230 = arith.mulf %229, %68 : vector<1x256xf32>
    %231 = arith.addf %222, %230 : vector<1x256xf32>
    %232 = vector.extract_strided_slice %39 {offsets = [0, 1], sizes = [1, 256], strides = [1, 1]} : vector<1x358xf32> to vector<1x256xf32>
    %233 = vector.broadcast %125 : f32 to vector<1x256xf32>
    %234 = arith.mulf %233, %232 : vector<1x256xf32>
    %235 = vector.extract_strided_slice %40 {offsets = [0, 1], sizes = [1, 256], strides = [1, 1]} : vector<1x358xf32> to vector<1x256xf32>
    %236 = vector.broadcast %174 : f32 to vector<1x256xf32>
    %237 = arith.mulf %236, %235 : vector<1x256xf32>
    %238 = arith.addf %234, %237 : vector<1x256xf32>
    %239 = arith.mulf %238, %79 : vector<1x256xf32>
    %240 = arith.addf %231, %239 : vector<1x256xf32>
    %241 = vector.extract_strided_slice %39 {offsets = [0, 2], sizes = [1, 256], strides = [1, 1]} : vector<1x358xf32> to vector<1x256xf32>
    %242 = vector.broadcast %126 : f32 to vector<1x256xf32>
    %243 = arith.mulf %242, %241 : vector<1x256xf32>
    %244 = vector.extract_strided_slice %40 {offsets = [0, 2], sizes = [1, 256], strides = [1, 1]} : vector<1x358xf32> to vector<1x256xf32>
    %245 = vector.broadcast %175 : f32 to vector<1x256xf32>
    %246 = arith.mulf %245, %244 : vector<1x256xf32>
    %247 = arith.addf %243, %246 : vector<1x256xf32>
    %248 = arith.mulf %247, %90 : vector<1x256xf32>
    %249 = arith.addf %240, %248 : vector<1x256xf32>
    %250 = vector.extract_strided_slice %39 {offsets = [0, 3], sizes = [1, 256], strides = [1, 1]} : vector<1x358xf32> to vector<1x256xf32>
    %251 = vector.broadcast %127 : f32 to vector<1x256xf32>
    %252 = arith.mulf %251, %250 : vector<1x256xf32>
    %253 = vector.extract_strided_slice %40 {offsets = [0, 3], sizes = [1, 256], strides = [1, 1]} : vector<1x358xf32> to vector<1x256xf32>
    %254 = vector.broadcast %176 : f32 to vector<1x256xf32>
    %255 = arith.mulf %254, %253 : vector<1x256xf32>
    %256 = arith.addf %252, %255 : vector<1x256xf32>
    %257 = arith.addf %249, %256 : vector<1x256xf32>
    %258 = vector.extract_strided_slice %39 {offsets = [0, 4], sizes = [1, 256], strides = [1, 1]} : vector<1x358xf32> to vector<1x256xf32>
    %259 = vector.broadcast %128 : f32 to vector<1x256xf32>
    %260 = arith.mulf %259, %258 : vector<1x256xf32>
    %261 = vector.extract_strided_slice %40 {offsets = [0, 4], sizes = [1, 256], strides = [1, 1]} : vector<1x358xf32> to vector<1x256xf32>
    %262 = vector.broadcast %177 : f32 to vector<1x256xf32>
    %263 = arith.mulf %262, %261 : vector<1x256xf32>
    %264 = arith.addf %260, %263 : vector<1x256xf32>
    %265 = arith.mulf %264, %101 : vector<1x256xf32>
    %266 = arith.addf %257, %265 : vector<1x256xf32>
    %267 = vector.extract_strided_slice %39 {offsets = [0, 5], sizes = [1, 256], strides = [1, 1]} : vector<1x358xf32> to vector<1x256xf32>
    %268 = vector.broadcast %129 : f32 to vector<1x256xf32>
    %269 = arith.mulf %268, %267 : vector<1x256xf32>
    %270 = vector.extract_strided_slice %40 {offsets = [0, 5], sizes = [1, 256], strides = [1, 1]} : vector<1x358xf32> to vector<1x256xf32>
    %271 = vector.broadcast %178 : f32 to vector<1x256xf32>
    %272 = arith.mulf %271, %270 : vector<1x256xf32>
    %273 = arith.addf %269, %272 : vector<1x256xf32>
    %274 = arith.mulf %273, %112 : vector<1x256xf32>
    %275 = arith.addf %266, %274 : vector<1x256xf32>
    %276 = vector.extract_strided_slice %39 {offsets = [0, 6], sizes = [1, 256], strides = [1, 1]} : vector<1x358xf32> to vector<1x256xf32>
    %277 = vector.broadcast %130 : f32 to vector<1x256xf32>
    %278 = arith.mulf %277, %276 : vector<1x256xf32>
    %279 = vector.extract_strided_slice %40 {offsets = [0, 6], sizes = [1, 256], strides = [1, 1]} : vector<1x358xf32> to vector<1x256xf32>
    %280 = vector.broadcast %179 : f32 to vector<1x256xf32>
    %281 = arith.mulf %280, %279 : vector<1x256xf32>
    %282 = arith.addf %278, %281 : vector<1x256xf32>
    %283 = arith.mulf %282, %123 : vector<1x256xf32>
    %284 = arith.addf %275, %283 : vector<1x256xf32>
    %285 = vector.extract_strided_slice %39 {offsets = [0, 16], sizes = [1, 256], strides = [1, 1]} : vector<1x358xf32> to vector<1x256xf32>
    %286 = vector.broadcast %131 : f32 to vector<1x256xf32>
    %287 = arith.mulf %286, %285 : vector<1x256xf32>
    %288 = vector.extract_strided_slice %40 {offsets = [0, 16], sizes = [1, 256], strides = [1, 1]} : vector<1x358xf32> to vector<1x256xf32>
    %289 = vector.broadcast %180 : f32 to vector<1x256xf32>
    %290 = arith.mulf %289, %288 : vector<1x256xf32>
    %291 = arith.addf %287, %290 : vector<1x256xf32>
    %292 = arith.mulf %291, %68 : vector<1x256xf32>
    %293 = arith.addf %284, %292 : vector<1x256xf32>
    %294 = vector.extract_strided_slice %39 {offsets = [0, 17], sizes = [1, 256], strides = [1, 1]} : vector<1x358xf32> to vector<1x256xf32>
    %295 = vector.broadcast %132 : f32 to vector<1x256xf32>
    %296 = arith.mulf %295, %294 : vector<1x256xf32>
    %297 = vector.extract_strided_slice %40 {offsets = [0, 17], sizes = [1, 256], strides = [1, 1]} : vector<1x358xf32> to vector<1x256xf32>
    %298 = vector.broadcast %181 : f32 to vector<1x256xf32>
    %299 = arith.mulf %298, %297 : vector<1x256xf32>
    %300 = arith.addf %296, %299 : vector<1x256xf32>
    %301 = arith.mulf %300, %79 : vector<1x256xf32>
    %302 = arith.addf %293, %301 : vector<1x256xf32>
    %303 = vector.extract_strided_slice %39 {offsets = [0, 18], sizes = [1, 256], strides = [1, 1]} : vector<1x358xf32> to vector<1x256xf32>
    %304 = vector.broadcast %133 : f32 to vector<1x256xf32>
    %305 = arith.mulf %304, %303 : vector<1x256xf32>
    %306 = vector.extract_strided_slice %40 {offsets = [0, 18], sizes = [1, 256], strides = [1, 1]} : vector<1x358xf32> to vector<1x256xf32>
    %307 = vector.broadcast %182 : f32 to vector<1x256xf32>
    %308 = arith.mulf %307, %306 : vector<1x256xf32>
    %309 = arith.addf %305, %308 : vector<1x256xf32>
    %310 = arith.mulf %309, %90 : vector<1x256xf32>
    %311 = arith.addf %302, %310 : vector<1x256xf32>
    %312 = vector.extract_strided_slice %39 {offsets = [0, 19], sizes = [1, 256], strides = [1, 1]} : vector<1x358xf32> to vector<1x256xf32>
    %313 = vector.broadcast %134 : f32 to vector<1x256xf32>
    %314 = arith.mulf %313, %312 : vector<1x256xf32>
    %315 = vector.extract_strided_slice %40 {offsets = [0, 19], sizes = [1, 256], strides = [1, 1]} : vector<1x358xf32> to vector<1x256xf32>
    %316 = vector.broadcast %183 : f32 to vector<1x256xf32>
    %317 = arith.mulf %316, %315 : vector<1x256xf32>
    %318 = arith.addf %314, %317 : vector<1x256xf32>
    %319 = arith.addf %311, %318 : vector<1x256xf32>
    %320 = vector.extract_strided_slice %39 {offsets = [0, 20], sizes = [1, 256], strides = [1, 1]} : vector<1x358xf32> to vector<1x256xf32>
    %321 = vector.broadcast %135 : f32 to vector<1x256xf32>
    %322 = arith.mulf %321, %320 : vector<1x256xf32>
    %323 = vector.extract_strided_slice %40 {offsets = [0, 20], sizes = [1, 256], strides = [1, 1]} : vector<1x358xf32> to vector<1x256xf32>
    %324 = vector.broadcast %184 : f32 to vector<1x256xf32>
    %325 = arith.mulf %324, %323 : vector<1x256xf32>
    %326 = arith.addf %322, %325 : vector<1x256xf32>
    %327 = arith.mulf %326, %101 : vector<1x256xf32>
    %328 = arith.addf %319, %327 : vector<1x256xf32>
    %329 = vector.extract_strided_slice %39 {offsets = [0, 21], sizes = [1, 256], strides = [1, 1]} : vector<1x358xf32> to vector<1x256xf32>
    %330 = vector.broadcast %136 : f32 to vector<1x256xf32>
    %331 = arith.mulf %330, %329 : vector<1x256xf32>
    %332 = vector.extract_strided_slice %40 {offsets = [0, 21], sizes = [1, 256], strides = [1, 1]} : vector<1x358xf32> to vector<1x256xf32>
    %333 = vector.broadcast %185 : f32 to vector<1x256xf32>
    %334 = arith.mulf %333, %332 : vector<1x256xf32>
    %335 = arith.addf %331, %334 : vector<1x256xf32>
    %336 = arith.mulf %335, %112 : vector<1x256xf32>
    %337 = arith.addf %328, %336 : vector<1x256xf32>
    %338 = vector.extract_strided_slice %39 {offsets = [0, 22], sizes = [1, 256], strides = [1, 1]} : vector<1x358xf32> to vector<1x256xf32>
    %339 = vector.broadcast %137 : f32 to vector<1x256xf32>
    %340 = arith.mulf %339, %338 : vector<1x256xf32>
    %341 = vector.extract_strided_slice %40 {offsets = [0, 22], sizes = [1, 256], strides = [1, 1]} : vector<1x358xf32> to vector<1x256xf32>
    %342 = vector.broadcast %186 : f32 to vector<1x256xf32>
    %343 = arith.mulf %342, %341 : vector<1x256xf32>
    %344 = arith.addf %340, %343 : vector<1x256xf32>
    %345 = arith.mulf %344, %123 : vector<1x256xf32>
    %346 = arith.addf %337, %345 : vector<1x256xf32>
    %347 = vector.extract_strided_slice %39 {offsets = [0, 32], sizes = [1, 256], strides = [1, 1]} : vector<1x358xf32> to vector<1x256xf32>
    %348 = vector.broadcast %138 : f32 to vector<1x256xf32>
    %349 = arith.mulf %348, %347 : vector<1x256xf32>
    %350 = vector.extract_strided_slice %40 {offsets = [0, 32], sizes = [1, 256], strides = [1, 1]} : vector<1x358xf32> to vector<1x256xf32>
    %351 = vector.broadcast %187 : f32 to vector<1x256xf32>
    %352 = arith.mulf %351, %350 : vector<1x256xf32>
    %353 = arith.addf %349, %352 : vector<1x256xf32>
    %354 = arith.mulf %353, %68 : vector<1x256xf32>
    %355 = arith.addf %346, %354 : vector<1x256xf32>
    %356 = vector.extract_strided_slice %39 {offsets = [0, 33], sizes = [1, 256], strides = [1, 1]} : vector<1x358xf32> to vector<1x256xf32>
    %357 = vector.broadcast %139 : f32 to vector<1x256xf32>
    %358 = arith.mulf %357, %356 : vector<1x256xf32>
    %359 = vector.extract_strided_slice %40 {offsets = [0, 33], sizes = [1, 256], strides = [1, 1]} : vector<1x358xf32> to vector<1x256xf32>
    %360 = vector.broadcast %188 : f32 to vector<1x256xf32>
    %361 = arith.mulf %360, %359 : vector<1x256xf32>
    %362 = arith.addf %358, %361 : vector<1x256xf32>
    %363 = arith.mulf %362, %79 : vector<1x256xf32>
    %364 = arith.addf %355, %363 : vector<1x256xf32>
    %365 = vector.extract_strided_slice %39 {offsets = [0, 34], sizes = [1, 256], strides = [1, 1]} : vector<1x358xf32> to vector<1x256xf32>
    %366 = vector.broadcast %140 : f32 to vector<1x256xf32>
    %367 = arith.mulf %366, %365 : vector<1x256xf32>
    %368 = vector.extract_strided_slice %40 {offsets = [0, 34], sizes = [1, 256], strides = [1, 1]} : vector<1x358xf32> to vector<1x256xf32>
    %369 = vector.broadcast %189 : f32 to vector<1x256xf32>
    %370 = arith.mulf %369, %368 : vector<1x256xf32>
    %371 = arith.addf %367, %370 : vector<1x256xf32>
    %372 = arith.mulf %371, %90 : vector<1x256xf32>
    %373 = arith.addf %364, %372 : vector<1x256xf32>
    %374 = vector.extract_strided_slice %39 {offsets = [0, 35], sizes = [1, 256], strides = [1, 1]} : vector<1x358xf32> to vector<1x256xf32>
    %375 = vector.broadcast %141 : f32 to vector<1x256xf32>
    %376 = arith.mulf %375, %374 : vector<1x256xf32>
    %377 = vector.extract_strided_slice %40 {offsets = [0, 35], sizes = [1, 256], strides = [1, 1]} : vector<1x358xf32> to vector<1x256xf32>
    %378 = vector.broadcast %190 : f32 to vector<1x256xf32>
    %379 = arith.mulf %378, %377 : vector<1x256xf32>
    %380 = arith.addf %376, %379 : vector<1x256xf32>
    %381 = arith.addf %373, %380 : vector<1x256xf32>
    %382 = vector.extract_strided_slice %39 {offsets = [0, 36], sizes = [1, 256], strides = [1, 1]} : vector<1x358xf32> to vector<1x256xf32>
    %383 = vector.broadcast %142 : f32 to vector<1x256xf32>
    %384 = arith.mulf %383, %382 : vector<1x256xf32>
    %385 = vector.extract_strided_slice %40 {offsets = [0, 36], sizes = [1, 256], strides = [1, 1]} : vector<1x358xf32> to vector<1x256xf32>
    %386 = vector.broadcast %191 : f32 to vector<1x256xf32>
    %387 = arith.mulf %386, %385 : vector<1x256xf32>
    %388 = arith.addf %384, %387 : vector<1x256xf32>
    %389 = arith.mulf %388, %101 : vector<1x256xf32>
    %390 = arith.addf %381, %389 : vector<1x256xf32>
    %391 = vector.extract_strided_slice %39 {offsets = [0, 37], sizes = [1, 256], strides = [1, 1]} : vector<1x358xf32> to vector<1x256xf32>
    %392 = vector.broadcast %143 : f32 to vector<1x256xf32>
    %393 = arith.mulf %392, %391 : vector<1x256xf32>
    %394 = vector.extract_strided_slice %40 {offsets = [0, 37], sizes = [1, 256], strides = [1, 1]} : vector<1x358xf32> to vector<1x256xf32>
    %395 = vector.broadcast %192 : f32 to vector<1x256xf32>
    %396 = arith.mulf %395, %394 : vector<1x256xf32>
    %397 = arith.addf %393, %396 : vector<1x256xf32>
    %398 = arith.mulf %397, %112 : vector<1x256xf32>
    %399 = arith.addf %390, %398 : vector<1x256xf32>
    %400 = vector.extract_strided_slice %39 {offsets = [0, 38], sizes = [1, 256], strides = [1, 1]} : vector<1x358xf32> to vector<1x256xf32>
    %401 = vector.broadcast %144 : f32 to vector<1x256xf32>
    %402 = arith.mulf %401, %400 : vector<1x256xf32>
    %403 = vector.extract_strided_slice %40 {offsets = [0, 38], sizes = [1, 256], strides = [1, 1]} : vector<1x358xf32> to vector<1x256xf32>
    %404 = vector.broadcast %193 : f32 to vector<1x256xf32>
    %405 = arith.mulf %404, %403 : vector<1x256xf32>
    %406 = arith.addf %402, %405 : vector<1x256xf32>
    %407 = arith.mulf %406, %123 : vector<1x256xf32>
    %408 = arith.addf %399, %407 : vector<1x256xf32>
    %409 = vector.extract_strided_slice %39 {offsets = [0, 48], sizes = [1, 256], strides = [1, 1]} : vector<1x358xf32> to vector<1x256xf32>
    %410 = vector.broadcast %145 : f32 to vector<1x256xf32>
    %411 = arith.mulf %410, %409 : vector<1x256xf32>
    %412 = vector.extract_strided_slice %40 {offsets = [0, 48], sizes = [1, 256], strides = [1, 1]} : vector<1x358xf32> to vector<1x256xf32>
    %413 = vector.broadcast %194 : f32 to vector<1x256xf32>
    %414 = arith.mulf %413, %412 : vector<1x256xf32>
    %415 = arith.addf %411, %414 : vector<1x256xf32>
    %416 = arith.mulf %415, %68 : vector<1x256xf32>
    %417 = arith.addf %408, %416 : vector<1x256xf32>
    %418 = vector.extract_strided_slice %39 {offsets = [0, 49], sizes = [1, 256], strides = [1, 1]} : vector<1x358xf32> to vector<1x256xf32>
    %419 = vector.broadcast %146 : f32 to vector<1x256xf32>
    %420 = arith.mulf %419, %418 : vector<1x256xf32>
    %421 = vector.extract_strided_slice %40 {offsets = [0, 49], sizes = [1, 256], strides = [1, 1]} : vector<1x358xf32> to vector<1x256xf32>
    %422 = vector.broadcast %195 : f32 to vector<1x256xf32>
    %423 = arith.mulf %422, %421 : vector<1x256xf32>
    %424 = arith.addf %420, %423 : vector<1x256xf32>
    %425 = arith.mulf %424, %79 : vector<1x256xf32>
    %426 = arith.addf %417, %425 : vector<1x256xf32>
    %427 = vector.extract_strided_slice %39 {offsets = [0, 50], sizes = [1, 256], strides = [1, 1]} : vector<1x358xf32> to vector<1x256xf32>
    %428 = vector.broadcast %147 : f32 to vector<1x256xf32>
    %429 = arith.mulf %428, %427 : vector<1x256xf32>
    %430 = vector.extract_strided_slice %40 {offsets = [0, 50], sizes = [1, 256], strides = [1, 1]} : vector<1x358xf32> to vector<1x256xf32>
    %431 = vector.broadcast %196 : f32 to vector<1x256xf32>
    %432 = arith.mulf %431, %430 : vector<1x256xf32>
    %433 = arith.addf %429, %432 : vector<1x256xf32>
    %434 = arith.mulf %433, %90 : vector<1x256xf32>
    %435 = arith.addf %426, %434 : vector<1x256xf32>
    %436 = vector.extract_strided_slice %39 {offsets = [0, 51], sizes = [1, 256], strides = [1, 1]} : vector<1x358xf32> to vector<1x256xf32>
    %437 = vector.broadcast %148 : f32 to vector<1x256xf32>
    %438 = arith.mulf %437, %436 : vector<1x256xf32>
    %439 = vector.extract_strided_slice %40 {offsets = [0, 51], sizes = [1, 256], strides = [1, 1]} : vector<1x358xf32> to vector<1x256xf32>
    %440 = vector.broadcast %197 : f32 to vector<1x256xf32>
    %441 = arith.mulf %440, %439 : vector<1x256xf32>
    %442 = arith.addf %438, %441 : vector<1x256xf32>
    %443 = arith.addf %435, %442 : vector<1x256xf32>
    %444 = vector.extract_strided_slice %39 {offsets = [0, 52], sizes = [1, 256], strides = [1, 1]} : vector<1x358xf32> to vector<1x256xf32>
    %445 = vector.broadcast %149 : f32 to vector<1x256xf32>
    %446 = arith.mulf %445, %444 : vector<1x256xf32>
    %447 = vector.extract_strided_slice %40 {offsets = [0, 52], sizes = [1, 256], strides = [1, 1]} : vector<1x358xf32> to vector<1x256xf32>
    %448 = vector.broadcast %198 : f32 to vector<1x256xf32>
    %449 = arith.mulf %448, %447 : vector<1x256xf32>
    %450 = arith.addf %446, %449 : vector<1x256xf32>
    %451 = arith.mulf %450, %101 : vector<1x256xf32>
    %452 = arith.addf %443, %451 : vector<1x256xf32>
    %453 = vector.extract_strided_slice %39 {offsets = [0, 53], sizes = [1, 256], strides = [1, 1]} : vector<1x358xf32> to vector<1x256xf32>
    %454 = vector.broadcast %150 : f32 to vector<1x256xf32>
    %455 = arith.mulf %454, %453 : vector<1x256xf32>
    %456 = vector.extract_strided_slice %40 {offsets = [0, 53], sizes = [1, 256], strides = [1, 1]} : vector<1x358xf32> to vector<1x256xf32>
    %457 = vector.broadcast %199 : f32 to vector<1x256xf32>
    %458 = arith.mulf %457, %456 : vector<1x256xf32>
    %459 = arith.addf %455, %458 : vector<1x256xf32>
    %460 = arith.mulf %459, %112 : vector<1x256xf32>
    %461 = arith.addf %452, %460 : vector<1x256xf32>
    %462 = vector.extract_strided_slice %39 {offsets = [0, 54], sizes = [1, 256], strides = [1, 1]} : vector<1x358xf32> to vector<1x256xf32>
    %463 = vector.broadcast %151 : f32 to vector<1x256xf32>
    %464 = arith.mulf %463, %462 : vector<1x256xf32>
    %465 = vector.extract_strided_slice %40 {offsets = [0, 54], sizes = [1, 256], strides = [1, 1]} : vector<1x358xf32> to vector<1x256xf32>
    %466 = vector.broadcast %200 : f32 to vector<1x256xf32>
    %467 = arith.mulf %466, %465 : vector<1x256xf32>
    %468 = arith.addf %464, %467 : vector<1x256xf32>
    %469 = arith.mulf %468, %123 : vector<1x256xf32>
    %470 = arith.addf %461, %469 : vector<1x256xf32>
    %471 = vector.extract_strided_slice %39 {offsets = [0, 64], sizes = [1, 256], strides = [1, 1]} : vector<1x358xf32> to vector<1x256xf32>
    %472 = vector.broadcast %152 : f32 to vector<1x256xf32>
    %473 = arith.mulf %472, %471 : vector<1x256xf32>
    %474 = vector.extract_strided_slice %40 {offsets = [0, 64], sizes = [1, 256], strides = [1, 1]} : vector<1x358xf32> to vector<1x256xf32>
    %475 = vector.broadcast %201 : f32 to vector<1x256xf32>
    %476 = arith.mulf %475, %474 : vector<1x256xf32>
    %477 = arith.addf %473, %476 : vector<1x256xf32>
    %478 = arith.mulf %477, %68 : vector<1x256xf32>
    %479 = arith.addf %470, %478 : vector<1x256xf32>
    %480 = vector.extract_strided_slice %39 {offsets = [0, 65], sizes = [1, 256], strides = [1, 1]} : vector<1x358xf32> to vector<1x256xf32>
    %481 = vector.broadcast %153 : f32 to vector<1x256xf32>
    %482 = arith.mulf %481, %480 : vector<1x256xf32>
    %483 = vector.extract_strided_slice %40 {offsets = [0, 65], sizes = [1, 256], strides = [1, 1]} : vector<1x358xf32> to vector<1x256xf32>
    %484 = vector.broadcast %202 : f32 to vector<1x256xf32>
    %485 = arith.mulf %484, %483 : vector<1x256xf32>
    %486 = arith.addf %482, %485 : vector<1x256xf32>
    %487 = arith.mulf %486, %79 : vector<1x256xf32>
    %488 = arith.addf %479, %487 : vector<1x256xf32>
    %489 = vector.extract_strided_slice %39 {offsets = [0, 66], sizes = [1, 256], strides = [1, 1]} : vector<1x358xf32> to vector<1x256xf32>
    %490 = vector.broadcast %154 : f32 to vector<1x256xf32>
    %491 = arith.mulf %490, %489 : vector<1x256xf32>
    %492 = vector.extract_strided_slice %40 {offsets = [0, 66], sizes = [1, 256], strides = [1, 1]} : vector<1x358xf32> to vector<1x256xf32>
    %493 = vector.broadcast %203 : f32 to vector<1x256xf32>
    %494 = arith.mulf %493, %492 : vector<1x256xf32>
    %495 = arith.addf %491, %494 : vector<1x256xf32>
    %496 = arith.mulf %495, %90 : vector<1x256xf32>
    %497 = arith.addf %488, %496 : vector<1x256xf32>
    %498 = vector.extract_strided_slice %39 {offsets = [0, 67], sizes = [1, 256], strides = [1, 1]} : vector<1x358xf32> to vector<1x256xf32>
    %499 = vector.broadcast %155 : f32 to vector<1x256xf32>
    %500 = arith.mulf %499, %498 : vector<1x256xf32>
    %501 = vector.extract_strided_slice %40 {offsets = [0, 67], sizes = [1, 256], strides = [1, 1]} : vector<1x358xf32> to vector<1x256xf32>
    %502 = vector.broadcast %204 : f32 to vector<1x256xf32>
    %503 = arith.mulf %502, %501 : vector<1x256xf32>
    %504 = arith.addf %500, %503 : vector<1x256xf32>
    %505 = arith.addf %497, %504 : vector<1x256xf32>
    %506 = vector.extract_strided_slice %39 {offsets = [0, 68], sizes = [1, 256], strides = [1, 1]} : vector<1x358xf32> to vector<1x256xf32>
    %507 = vector.broadcast %156 : f32 to vector<1x256xf32>
    %508 = arith.mulf %507, %506 : vector<1x256xf32>
    %509 = vector.extract_strided_slice %40 {offsets = [0, 68], sizes = [1, 256], strides = [1, 1]} : vector<1x358xf32> to vector<1x256xf32>
    %510 = vector.broadcast %205 : f32 to vector<1x256xf32>
    %511 = arith.mulf %510, %509 : vector<1x256xf32>
    %512 = arith.addf %508, %511 : vector<1x256xf32>
    %513 = arith.mulf %512, %101 : vector<1x256xf32>
    %514 = arith.addf %505, %513 : vector<1x256xf32>
    %515 = vector.extract_strided_slice %39 {offsets = [0, 69], sizes = [1, 256], strides = [1, 1]} : vector<1x358xf32> to vector<1x256xf32>
    %516 = vector.broadcast %157 : f32 to vector<1x256xf32>
    %517 = arith.mulf %516, %515 : vector<1x256xf32>
    %518 = vector.extract_strided_slice %40 {offsets = [0, 69], sizes = [1, 256], strides = [1, 1]} : vector<1x358xf32> to vector<1x256xf32>
    %519 = vector.broadcast %206 : f32 to vector<1x256xf32>
    %520 = arith.mulf %519, %518 : vector<1x256xf32>
    %521 = arith.addf %517, %520 : vector<1x256xf32>
    %522 = arith.mulf %521, %112 : vector<1x256xf32>
    %523 = arith.addf %514, %522 : vector<1x256xf32>
    %524 = vector.extract_strided_slice %39 {offsets = [0, 70], sizes = [1, 256], strides = [1, 1]} : vector<1x358xf32> to vector<1x256xf32>
    %525 = vector.broadcast %158 : f32 to vector<1x256xf32>
    %526 = arith.mulf %525, %524 : vector<1x256xf32>
    %527 = vector.extract_strided_slice %40 {offsets = [0, 70], sizes = [1, 256], strides = [1, 1]} : vector<1x358xf32> to vector<1x256xf32>
    %528 = vector.broadcast %207 : f32 to vector<1x256xf32>
    %529 = arith.mulf %528, %527 : vector<1x256xf32>
    %530 = arith.addf %526, %529 : vector<1x256xf32>
    %531 = arith.mulf %530, %123 : vector<1x256xf32>
    %532 = arith.addf %523, %531 : vector<1x256xf32>
    %533 = vector.extract_strided_slice %39 {offsets = [0, 80], sizes = [1, 256], strides = [1, 1]} : vector<1x358xf32> to vector<1x256xf32>
    %534 = vector.broadcast %159 : f32 to vector<1x256xf32>
    %535 = arith.mulf %534, %533 : vector<1x256xf32>
    %536 = vector.extract_strided_slice %40 {offsets = [0, 80], sizes = [1, 256], strides = [1, 1]} : vector<1x358xf32> to vector<1x256xf32>
    %537 = vector.broadcast %208 : f32 to vector<1x256xf32>
    %538 = arith.mulf %537, %536 : vector<1x256xf32>
    %539 = arith.addf %535, %538 : vector<1x256xf32>
    %540 = arith.mulf %539, %68 : vector<1x256xf32>
    %541 = arith.addf %532, %540 : vector<1x256xf32>
    %542 = vector.extract_strided_slice %39 {offsets = [0, 81], sizes = [1, 256], strides = [1, 1]} : vector<1x358xf32> to vector<1x256xf32>
    %543 = vector.broadcast %160 : f32 to vector<1x256xf32>
    %544 = arith.mulf %543, %542 : vector<1x256xf32>
    %545 = vector.extract_strided_slice %40 {offsets = [0, 81], sizes = [1, 256], strides = [1, 1]} : vector<1x358xf32> to vector<1x256xf32>
    %546 = vector.broadcast %209 : f32 to vector<1x256xf32>
    %547 = arith.mulf %546, %545 : vector<1x256xf32>
    %548 = arith.addf %544, %547 : vector<1x256xf32>
    %549 = arith.mulf %548, %79 : vector<1x256xf32>
    %550 = arith.addf %541, %549 : vector<1x256xf32>
    %551 = vector.extract_strided_slice %39 {offsets = [0, 82], sizes = [1, 256], strides = [1, 1]} : vector<1x358xf32> to vector<1x256xf32>
    %552 = vector.broadcast %161 : f32 to vector<1x256xf32>
    %553 = arith.mulf %552, %551 : vector<1x256xf32>
    %554 = vector.extract_strided_slice %40 {offsets = [0, 82], sizes = [1, 256], strides = [1, 1]} : vector<1x358xf32> to vector<1x256xf32>
    %555 = vector.broadcast %210 : f32 to vector<1x256xf32>
    %556 = arith.mulf %555, %554 : vector<1x256xf32>
    %557 = arith.addf %553, %556 : vector<1x256xf32>
    %558 = arith.mulf %557, %90 : vector<1x256xf32>
    %559 = arith.addf %550, %558 : vector<1x256xf32>
    %560 = vector.extract_strided_slice %39 {offsets = [0, 83], sizes = [1, 256], strides = [1, 1]} : vector<1x358xf32> to vector<1x256xf32>
    %561 = vector.broadcast %162 : f32 to vector<1x256xf32>
    %562 = arith.mulf %561, %560 : vector<1x256xf32>
    %563 = vector.extract_strided_slice %40 {offsets = [0, 83], sizes = [1, 256], strides = [1, 1]} : vector<1x358xf32> to vector<1x256xf32>
    %564 = vector.broadcast %211 : f32 to vector<1x256xf32>
    %565 = arith.mulf %564, %563 : vector<1x256xf32>
    %566 = arith.addf %562, %565 : vector<1x256xf32>
    %567 = arith.addf %559, %566 : vector<1x256xf32>
    %568 = vector.extract_strided_slice %39 {offsets = [0, 84], sizes = [1, 256], strides = [1, 1]} : vector<1x358xf32> to vector<1x256xf32>
    %569 = vector.broadcast %163 : f32 to vector<1x256xf32>
    %570 = arith.mulf %569, %568 : vector<1x256xf32>
    %571 = vector.extract_strided_slice %40 {offsets = [0, 84], sizes = [1, 256], strides = [1, 1]} : vector<1x358xf32> to vector<1x256xf32>
    %572 = vector.broadcast %212 : f32 to vector<1x256xf32>
    %573 = arith.mulf %572, %571 : vector<1x256xf32>
    %574 = arith.addf %570, %573 : vector<1x256xf32>
    %575 = arith.mulf %574, %101 : vector<1x256xf32>
    %576 = arith.addf %567, %575 : vector<1x256xf32>
    %577 = vector.extract_strided_slice %39 {offsets = [0, 85], sizes = [1, 256], strides = [1, 1]} : vector<1x358xf32> to vector<1x256xf32>
    %578 = vector.broadcast %164 : f32 to vector<1x256xf32>
    %579 = arith.mulf %578, %577 : vector<1x256xf32>
    %580 = vector.extract_strided_slice %40 {offsets = [0, 85], sizes = [1, 256], strides = [1, 1]} : vector<1x358xf32> to vector<1x256xf32>
    %581 = vector.broadcast %213 : f32 to vector<1x256xf32>
    %582 = arith.mulf %581, %580 : vector<1x256xf32>
    %583 = arith.addf %579, %582 : vector<1x256xf32>
    %584 = arith.mulf %583, %112 : vector<1x256xf32>
    %585 = arith.addf %576, %584 : vector<1x256xf32>
    %586 = vector.extract_strided_slice %39 {offsets = [0, 86], sizes = [1, 256], strides = [1, 1]} : vector<1x358xf32> to vector<1x256xf32>
    %587 = vector.broadcast %165 : f32 to vector<1x256xf32>
    %588 = arith.mulf %587, %586 : vector<1x256xf32>
    %589 = vector.extract_strided_slice %40 {offsets = [0, 86], sizes = [1, 256], strides = [1, 1]} : vector<1x358xf32> to vector<1x256xf32>
    %590 = vector.broadcast %214 : f32 to vector<1x256xf32>
    %591 = arith.mulf %590, %589 : vector<1x256xf32>
    %592 = arith.addf %588, %591 : vector<1x256xf32>
    %593 = arith.mulf %592, %123 : vector<1x256xf32>
    %594 = arith.addf %585, %593 : vector<1x256xf32>
    %595 = vector.extract_strided_slice %39 {offsets = [0, 96], sizes = [1, 256], strides = [1, 1]} : vector<1x358xf32> to vector<1x256xf32>
    %596 = vector.broadcast %166 : f32 to vector<1x256xf32>
    %597 = arith.mulf %596, %595 : vector<1x256xf32>
    %598 = vector.extract_strided_slice %40 {offsets = [0, 96], sizes = [1, 256], strides = [1, 1]} : vector<1x358xf32> to vector<1x256xf32>
    %599 = vector.broadcast %215 : f32 to vector<1x256xf32>
    %600 = arith.mulf %599, %598 : vector<1x256xf32>
    %601 = arith.addf %597, %600 : vector<1x256xf32>
    %602 = arith.mulf %601, %68 : vector<1x256xf32>
    %603 = arith.addf %594, %602 : vector<1x256xf32>
    %604 = vector.extract_strided_slice %39 {offsets = [0, 97], sizes = [1, 256], strides = [1, 1]} : vector<1x358xf32> to vector<1x256xf32>
    %605 = vector.broadcast %167 : f32 to vector<1x256xf32>
    %606 = arith.mulf %605, %604 : vector<1x256xf32>
    %607 = vector.extract_strided_slice %40 {offsets = [0, 97], sizes = [1, 256], strides = [1, 1]} : vector<1x358xf32> to vector<1x256xf32>
    %608 = vector.broadcast %216 : f32 to vector<1x256xf32>
    %609 = arith.mulf %608, %607 : vector<1x256xf32>
    %610 = arith.addf %606, %609 : vector<1x256xf32>
    %611 = arith.mulf %610, %79 : vector<1x256xf32>
    %612 = arith.addf %603, %611 : vector<1x256xf32>
    %613 = vector.extract_strided_slice %39 {offsets = [0, 98], sizes = [1, 256], strides = [1, 1]} : vector<1x358xf32> to vector<1x256xf32>
    %614 = vector.broadcast %168 : f32 to vector<1x256xf32>
    %615 = arith.mulf %614, %613 : vector<1x256xf32>
    %616 = vector.extract_strided_slice %40 {offsets = [0, 98], sizes = [1, 256], strides = [1, 1]} : vector<1x358xf32> to vector<1x256xf32>
    %617 = vector.broadcast %217 : f32 to vector<1x256xf32>
    %618 = arith.mulf %617, %616 : vector<1x256xf32>
    %619 = arith.addf %615, %618 : vector<1x256xf32>
    %620 = arith.mulf %619, %90 : vector<1x256xf32>
    %621 = arith.addf %612, %620 : vector<1x256xf32>
    %622 = vector.extract_strided_slice %39 {offsets = [0, 99], sizes = [1, 256], strides = [1, 1]} : vector<1x358xf32> to vector<1x256xf32>
    %623 = vector.broadcast %169 : f32 to vector<1x256xf32>
    %624 = arith.mulf %623, %622 : vector<1x256xf32>
    %625 = vector.extract_strided_slice %40 {offsets = [0, 99], sizes = [1, 256], strides = [1, 1]} : vector<1x358xf32> to vector<1x256xf32>
    %626 = vector.broadcast %218 : f32 to vector<1x256xf32>
    %627 = arith.mulf %626, %625 : vector<1x256xf32>
    %628 = arith.addf %624, %627 : vector<1x256xf32>
    %629 = arith.addf %621, %628 : vector<1x256xf32>
    %630 = vector.extract_strided_slice %39 {offsets = [0, 100], sizes = [1, 256], strides = [1, 1]} : vector<1x358xf32> to vector<1x256xf32>
    %631 = vector.broadcast %170 : f32 to vector<1x256xf32>
    %632 = arith.mulf %631, %630 : vector<1x256xf32>
    %633 = vector.extract_strided_slice %40 {offsets = [0, 100], sizes = [1, 256], strides = [1, 1]} : vector<1x358xf32> to vector<1x256xf32>
    %634 = vector.broadcast %219 : f32 to vector<1x256xf32>
    %635 = arith.mulf %634, %633 : vector<1x256xf32>
    %636 = arith.addf %632, %635 : vector<1x256xf32>
    %637 = arith.mulf %636, %101 : vector<1x256xf32>
    %638 = arith.addf %629, %637 : vector<1x256xf32>
    %639 = vector.extract_strided_slice %39 {offsets = [0, 101], sizes = [1, 256], strides = [1, 1]} : vector<1x358xf32> to vector<1x256xf32>
    %640 = vector.broadcast %171 : f32 to vector<1x256xf32>
    %641 = arith.mulf %640, %639 : vector<1x256xf32>
    %642 = vector.extract_strided_slice %40 {offsets = [0, 101], sizes = [1, 256], strides = [1, 1]} : vector<1x358xf32> to vector<1x256xf32>
    %643 = vector.broadcast %220 : f32 to vector<1x256xf32>
    %644 = arith.mulf %643, %642 : vector<1x256xf32>
    %645 = arith.addf %641, %644 : vector<1x256xf32>
    %646 = arith.mulf %645, %112 : vector<1x256xf32>
    %647 = arith.addf %638, %646 : vector<1x256xf32>
    %648 = vector.extract_strided_slice %39 {offsets = [0, 102], sizes = [1, 256], strides = [1, 1]} : vector<1x358xf32> to vector<1x256xf32>
    %649 = vector.broadcast %172 : f32 to vector<1x256xf32>
    %650 = arith.mulf %649, %648 : vector<1x256xf32>
    %651 = vector.extract_strided_slice %40 {offsets = [0, 102], sizes = [1, 256], strides = [1, 1]} : vector<1x358xf32> to vector<1x256xf32>
    %652 = vector.broadcast %221 : f32 to vector<1x256xf32>
    %653 = arith.mulf %652, %651 : vector<1x256xf32>
    %654 = arith.addf %650, %653 : vector<1x256xf32>
    %655 = arith.mulf %654, %123 : vector<1x256xf32>
    %656 = arith.addf %647, %655 : vector<1x256xf32>
    %657 = arith.negf %656 : vector<1x256xf32>
    %658 = math.exp %657 : vector<1x256xf32>
    %cst_45 = arith.constant 1.000000e+00 : f32
    %659 = vector.broadcast %cst_45 : f32 to vector<1x256xf32>
    %660 = arith.addf %659, %658 : vector<1x256xf32>
    %661 = arith.divf %659, %660 : vector<1x256xf32>
    %662 = vector.shape_cast %661 : vector<1x256xf32> to vector<1x1x256xf32>
    %663 = vector.broadcast %662 : vector<1x1x256xf32> to vector<1x32x256xf32>
    %664 = arith.mulf %33, %663 : vector<1x32x256xf32>
    %c0_46 = arith.constant 0 : index
    %c0_47 = arith.constant 0 : index
    %c0_48 = arith.constant 0 : index
    %665 = vector.load %arg7[%c0_46, %c0_47, %c0_48] : memref<1x32x256xf32, #tpu.memory_space<vmem>>, vector<1x32x256xf32>
    tpu.vector_store %arg7[%c0_46, %c0_47, %c0_48], %664 {strides = array<i32>} : memref<1x32x256xf32, #tpu.memory_space<vmem>>, vector<1x32x256xf32>,
    return
  }
  func.func @transform_0(%arg0: i32) -> (i32, i32, i32) {
    %c0_i32 = arith.constant 0 : i32
    %c0_i32_0 = arith.constant 0 : i32
    %c0_i32_1 = arith.constant 0 : i32
    return %arg0, %c0_i32, %c0_i32_0 : i32, i32, i32
  }
  func.func @transform_1(%arg0: i32) -> (i32, i32) {
    %c0_i32 = arith.constant 0 : i32
    %c0_i32_0 = arith.constant 0 : i32
    %c0_i32_1 = arith.constant 0 : i32
    return %c0_i32, %c0_i32_0 : i32, i32
  }
  func.func @transform_2(%arg0: i32) -> (i32, i32) {
    %c0_i32 = arith.constant 0 : i32
    %c0_i32_0 = arith.constant 0 : i32
    %c0_i32_1 = arith.constant 0 : i32
    return %c0_i32, %c0_i32_0 : i32, i32
  }
  func.func @transform_3(%arg0: i32) -> (i32, i32) {
    %c0_i32 = arith.constant 0 : i32
    %c0_i32_0 = arith.constant 0 : i32
    %c0_i32_1 = arith.constant 0 : i32
    return %c0_i32, %c0_i32_0 : i32, i32
  }
  func.func @transform_4(%arg0: i32) -> (i32, i32) {
    %c0_i32 = arith.constant 0 : i32
    %c0_i32_0 = arith.constant 0 : i32
    %c0_i32_1 = arith.constant 0 : i32
    return %c0_i32, %c0_i32_0 : i32, i32
  }
  func.func @transform_5(%arg0: i32) -> i32 {
    %c0_i32 = arith.constant 0 : i32
    %c0_i32_0 = arith.constant 0 : i32
    return %c0_i32 : i32
  }
  func.func @transform_6(%arg0: i32) -> (i32, i32, i32) {
    %c0_i32 = arith.constant 0 : i32
    %c0_i32_0 = arith.constant 0 : i32
    %c0_i32_1 = arith.constant 0 : i32
    return %arg0, %c0_i32, %c0_i32_0 : i32, i32, i32
  }
}

</mosaic_0001>

<llo_original>
// kernel: tpu_custom_call.1
$region0: #{tpu_custom_call.1}
  #allocation0 [shape = 'u32[]', space=smem, size = 0x4, offset = 0x4, fixed_abs, tag = 'smem constant byte address 0x4 - core index']
  #allocation1 [shape = 'u32[72,128]{1,0:T(1,128)}', space=vmem, size = 0x9000, scoped, tag = 'internal scratch']
  %s0 = inlined_call_operand.hbm [shape: f32[2,32,256], index: 0, kind: input, shape index: {}]
  %s1 = inlined_call_operand.vmem [shape: f32[32,6], index: 1, kind: input, shape index: {}]
  %s2 = inlined_call_operand.vmem [shape: f32[1,6], index: 2, kind: input, shape index: {}]
  %s3 = inlined_call_operand.vmem [shape: f32[6,32], index: 3, kind: input, shape index: {}]
  %s4 = inlined_call_operand.vmem [shape: f32[1,32], index: 4, kind: input, shape index: {}]
  %s5 = inlined_call_operand.vmem [shape: f32[98], index: 5, kind: input, shape index: {}]
  %s6 = inlined_call_operand.hbm [shape: f32[2,32,256], index: 6, kind: output, shape index: {}]
  %s7 = sld [smem:[#allocation0]]
  $region65: #{tpu_custom_call.1} parent=0
    _
  %s9 = ssub.s32 1, %s7
  %s10 = scalar_select 0, %s9, %s7
  $region1: #{tpu_custom_call.1} parent=0
    #allocation2 [shape = 'u8[65536]{0}', space=vmem, size = 0x10000, scoped, tag = 'input window, operand 0']
    #allocation3 [shape = 's32[2]{0}', space=sflag, size = 0x8, scoped, tag = 'scoped memory for tpu_custom_call.1']
    #allocation4 [shape = 's32[2]{0}', space=sflag, size = 0x8, scoped, tag = 'scoped memory for tpu_custom_call.1']
    #allocation5 [shape = 's32[2]{0}', space=sflag, size = 0x8, scoped, tag = 'scoped memory for tpu_custom_call.1']
    #allocation6 [shape = 'u8[512]{0}', space=smem, size = 0x200, scoped, tag = 'input window, operand 5, single buffered']
    #allocation7 [shape = 'u8[65536]{0}', space=vmem, size = 0x10000, scoped, tag = 'output window, operand 0']
    %11 = vsyncpa [#allocation3], 0
    %s12 = scalar_lea.sflag [#allocation3], 1
    %13 = vsyncpa %s12, 0
    %14 = vsyncpa [#allocation5], 0
    %15 = vsyncpa [#allocation4], 0
    %s16 = scalar_lea.sflag [#allocation4], 1
    %17 = vsyncpa %s16, 0
    loop: start=0, step=1, limit=4
    $region2: #{tpu_custom_call.1} parent=1 // loop_pre_header
      _
    $region3: #{tpu_custom_call.1} parent=1 // loop_header
      %s19 = sphi 0, %s23
      %p20 = scmp.ge.s32.totalorder %s19, 4
      %s29 = sphi 0, %s31
      %s32 = sphi 0, %s29
      %s33 = sphi 0, %s32
      %s49 = sphi 0, %s33
      %s53 = sphi 0, %s53
      %s55 = sphi 0, %s53
      %s56 = sphi 0, %s55
      %s70 = sphi 0, %s56
      %s74 = sphi 0, %s74
      %s76 = sphi 0, %s74
      %s77 = sphi 0, %s76
      %s91 = sphi 0, %s77
      %s95 = sphi 0, %s95
      %s97 = sphi 0, %s95
      %s98 = sphi 0, %s97
      %s112 = sphi 0, %s98
      %s116 = sphi 0, %s116
      %s118 = sphi 0, %s116
      %s119 = sphi 0, %s118
      %s133 = sphi 0, %s119
      %s137 = sphi 0, %s137
      %s139 = sphi 0, %s137
      %s140 = sphi 0, %s139
      %s154 = sphi 0, %s140
      %s160 = sphi 0, %s162
      %s163 = sphi 0, %s160
      %s164 = sphi 0, %s163
      %s180 = sphi 0, %s164
    $region4: #{tpu_custom_call.1} parent=1 // loop_header_branch
      %22 = sbr.rel (%p20) target = $region8
    $region5: #{tpu_custom_call.1} parent=1 // loop_body
      %s24 = ssub.s32 %s19, 1
      %s25 = ssub.s32 %s19, 2
      %s26 = sadd.s32 %s19, 1
      %s27 = ssub.s32 %s19, %s26
      %p28 = scmp.eq.s32.totalorder %s27, 0
      %s30 = sadd.s32 %s29, 1
      %s31 = scalar_select %p28, %s29, %s30
      %p34 = pneg %p28
      %p35 = scmp.eq.s32.totalorder %s19, 1
      %p36 = por %p34, %p35
      %p37 = scmp.ne.s32.totalorder %s29, %s32
      %p38 = scmp.eq.s32.totalorder %s19, 0
      %p39 = por %p37, %p38
      %p40 = scmp.ne.s32.totalorder %s29, %s32
      %p41 = scmp.eq.s32.totalorder %s24, 1
      %p42 = por %p40, %p41
      %p43 = scmp.ne.s32.totalorder %s32, %s33
      %p44 = scmp.eq.s32.totalorder %s24, 0
      %p45 = por %p43, %p44
      %p46 = scmp.ne.s32.totalorder %s32, %s33
      %p47 = scmp.eq.s32.totalorder %s25, 1
      %p48 = por %p46, %p47
      %p50 = scmp.ne.s32.totalorder %s33, %s49
      %p51 = scmp.eq.s32.totalorder %s25, 0
      %p52 = por %p50, %p51
      %s54 = sadd.s32 %s53, 1
      %p57 = scmp.eq.s32.totalorder %s19, 1
      %p58 = scmp.ne.s32.totalorder %s53, %s55
      %p59 = scmp.eq.s32.totalorder %s19, 0
      %p60 = por %p58, %p59
      %p61 = scmp.ne.s32.totalorder %s53, %s55
      %p62 = scmp.eq.s32.totalorder %s24, 1
      %p63 = por %p61, %p62
      %p64 = scmp.ne.s32.totalorder %s55, %s56
      %p65 = scmp.eq.s32.totalorder %s24, 0
      %p66 = por %p64, %p65
      %p67 = scmp.ne.s32.totalorder %s55, %s56
      %p68 = scmp.eq.s32.totalorder %s25, 1
      %p69 = por %p67, %p68
      %p71 = scmp.ne.s32.totalorder %s56, %s70
      %p72 = scmp.eq.s32.totalorder %s25, 0
      %p73 = por %p71, %p72
      %s75 = sadd.s32 %s74, 1
      %p78 = scmp.eq.s32.totalorder %s19, 1
      %p79 = scmp.ne.s32.totalorder %s74, %s76
      %p80 = scmp.eq.s32.totalorder %s19, 0
      %p81 = por %p79, %p80
      %p82 = scmp.ne.s32.totalorder %s74, %s76
      %p83 = scmp.eq.s32.totalorder %s24, 1
      %p84 = por %p82, %p83
      %p85 = scmp.ne.s32.totalorder %s76, %s77
      %p86 = scmp.eq.s32.totalorder %s24, 0
      %p87 = por %p85, %p86
      %p88 = scmp.ne.s32.totalorder %s76, %s77
      %p89 = scmp.eq.s32.totalorder %s25, 1
      %p90 = por %p88, %p89
      %p92 = scmp.ne.s32.totalorder %s77, %s91
      %p93 = scmp.eq.s32.totalorder %s25, 0
      %p94 = por %p92, %p93
      %s96 = sadd.s32 %s95, 1
      %p99 = scmp.eq.s32.totalorder %s19, 1
      %p100 = scmp.ne.s32.totalorder %s95, %s97
      %p101 = scmp.eq.s32.totalorder %s19, 0
      %p102 = por %p100, %p101
      %p103 = scmp.ne.s32.totalorder %s95, %s97
      %p104 = scmp.eq.s32.totalorder %s24, 1
      %p105 = por %p103, %p104
      %p106 = scmp.ne.s32.totalorder %s97, %s98
      %p107 = scmp.eq.s32.totalorder %s24, 0
      %p108 = por %p106, %p107
      %p109 = scmp.ne.s32.totalorder %s97, %s98
      %p110 = scmp.eq.s32.totalorder %s25, 1
      %p111 = por %p109, %p110
      %p113 = scmp.ne.s32.totalorder %s98, %s112
      %p114 = scmp.eq.s32.totalorder %s25, 0
      %p115 = por %p113, %p114
      %s117 = sadd.s32 %s116, 1
      %p120 = scmp.eq.s32.totalorder %s19, 1
      %p121 = scmp.ne.s32.totalorder %s116, %s118
      %p122 = scmp.eq.s32.totalorder %s19, 0
      %p123 = por %p121, %p122
      %p124 = scmp.ne.s32.totalorder %s116, %s118
      %p125 = scmp.eq.s32.totalorder %s24, 1
      %p126 = por %p124, %p125
      %p127 = scmp.ne.s32.totalorder %s118, %s119
      %p128 = scmp.eq.s32.totalorder %s24, 0
      %p129 = por %p127, %p128
      %p130 = scmp.ne.s32.totalorder %s118, %s119
      %p131 = scmp.eq.s32.totalorder %s25, 1
      %p132 = por %p130, %p131
      %p134 = scmp.ne.s32.totalorder %s119, %s133
      %p135 = scmp.eq.s32.totalorder %s25, 0
      %p136 = por %p134, %p135
      %s138 = sadd.s32 %s137, 1
      %p141 = scmp.eq.s32.totalorder %s19, 1
      %p142 = scmp.ne.s32.totalorder %s137, %s139
      %p143 = scmp.eq.s32.totalorder %s19, 0
      %p144 = por %p142, %p143
      %p145 = scmp.ne.s32.totalorder %s137, %s139
      %p146 = scmp.eq.s32.totalorder %s24, 1
      %p147 = por %p145, %p146
      %p148 = scmp.ne.s32.totalorder %s139, %s140
      %p149 = scmp.eq.s32.totalorder %s24, 0
      %p150 = por %p148, %p149
      %p151 = scmp.ne.s32.totalorder %s139, %s140
      %p152 = scmp.eq.s32.totalorder %s25, 1
      %p153 = por %p151, %p152
      %p155 = scmp.ne.s32.totalorder %s140, %s154
      %p156 = scmp.eq.s32.totalorder %s25, 0
      %p157 = por %p155, %p156
      %s158 = ssub.s32 %s19, %s26
      %p159 = scmp.eq.s32.totalorder %s158, 0
      %s161 = sadd.s32 %s160, 1
      %s162 = scalar_select %p159, %s160, %s161
      %p165 = pneg %p159
      %p166 = scmp.eq.s32.totalorder %s19, 1
      %p167 = por %p165, %p166
      %p168 = scmp.ne.s32.totalorder %s160, %s163
      %p169 = scmp.eq.s32.totalorder %s19, 0
      %p170 = por %p168, %p169
      %p171 = scmp.ne.s32.totalorder %s160, %s163
      %p172 = scmp.eq.s32.totalorder %s24, 1
      %p173 = por %p171, %p172
      %p174 = scmp.ne.s32.totalorder %s163, %s164
      %p175 = scmp.eq.s32.totalorder %s24, 0
      %p176 = por %p174, %p175
      %p177 = scmp.ne.s32.totalorder %s163, %s164
      %p178 = scmp.eq.s32.totalorder %s25, 1
      %p179 = por %p177, %p178
      %p181 = scmp.ne.s32.totalorder %s164, %s180
      %p182 = scmp.eq.s32.totalorder %s25, 0
      %p183 = por %p181, %p182
      %p184 = scmp.le.s32.totalorder 1, %s19
      %p185 = scmp.lt.s32.totalorder %s19, 3
      %p186 = pnand %p184, %p185
      %p187 = pneg %p186
      // Predicated region
      $region9: #{tpu_custom_call.1} parent=5 // pred_check
        _
      $region10: #{tpu_custom_call.1} parent=5 // pred_check_branch
        %189 = sbr.rel (%p186) target = $region12
      $region11: #{tpu_custom_call.1} parent=5 // pred_region
        %s190 = ssub.s32 %s19, 1
        // Predicated region
        $region13: #{tpu_custom_call.1} parent=11 // pred_check
          %p191 = pneg %p66
        $region14: #{tpu_custom_call.1} parent=11 // pred_check_branch
          %193 = sbr.rel (%p191) target = $region16
        $region15: #{tpu_custom_call.1} parent=11 // pred_region
          _
        $region16: #{tpu_custom_call.1} parent=11 // pred_fallthru
          _
        // Predicated region
        $region17: #{tpu_custom_call.1} parent=11 // pred_check
          %p194 = pneg %p87
        $region18: #{tpu_custom_call.1} parent=11 // pred_check_branch
          %196 = sbr.rel (%p194) target = $region20
        $region19: #{tpu_custom_call.1} parent=11 // pred_region
          _
        $region20: #{tpu_custom_call.1} parent=11 // pred_fallthru
          _
        // Predicated region
        $region21: #{tpu_custom_call.1} parent=11 // pred_check
          %p197 = pneg %p108
        $region22: #{tpu_custom_call.1} parent=11 // pred_check_branch
          %199 = sbr.rel (%p197) target = $region24
        $region23: #{tpu_custom_call.1} parent=11 // pred_region
          _
        $region24: #{tpu_custom_call.1} parent=11 // pred_fallthru
          _
        // Predicated region
        $region25: #{tpu_custom_call.1} parent=11 // pred_check
          %p200 = pneg %p129
        $region26: #{tpu_custom_call.1} parent=11 // pred_check_branch
          %202 = sbr.rel (%p200) target = $region28
        $region27: #{tpu_custom_call.1} parent=11 // pred_region
          _
        $region28: #{tpu_custom_call.1} parent=11 // pred_fallthru
          _
        // Predicated region
        $region29: #{tpu_custom_call.1} parent=11 // pred_check
          %p203 = pneg %p150
        $region30: #{tpu_custom_call.1} parent=11 // pred_check_branch
          %205 = sbr.rel (%p203) target = $region32
        $region31: #{tpu_custom_call.1} parent=11 // pred_region
          %207 = vsyncadd [#allocation5], 0
          %s209 = sshll.u32 %s5, 4
          %s210 = int_to_ptr.vmem [resolvable:$true] %s209
          %212 = dma.vmem_to_smem %s210, 16, [#allocation6], [#allocation5]
        $region32: #{tpu_custom_call.1} parent=11 // pred_fallthru
          _
      $region12: #{tpu_custom_call.1} parent=5 // pred_fallthru
        _
      %p213 = scmp.lt.s32.totalorder %s19, 2
      // Predicated region
      $region33: #{tpu_custom_call.1} parent=5 // pred_check
        %p214 = pneg %p213
      $region34: #{tpu_custom_call.1} parent=5 // pred_check_branch
        %216 = sbr.rel (%p214) target = $region36
      $region35: #{tpu_custom_call.1} parent=5 // pred_region
        // Predicated region
        $region37: #{tpu_custom_call.1} parent=35 // pred_check
          %p217 = pneg %p39
        $region38: #{tpu_custom_call.1} parent=35 // pred_check_branch
          %219 = sbr.rel (%p217) target = $region40
        $region39: #{tpu_custom_call.1} parent=35 // pred_region
          %s220 = sand.u32 %s29, 1
          %s221 = scalar_lea.sflag [#allocation3], %s220
          %s222 = sand.u32 %s29, 1
          %s223 = smul.addr %s222, 64
          %s224 = scalar_lea.vmem [#allocation2], %s223
          %226 = vsyncadd %s221, 0
          %s227 = smul.addr %s19, 8
          %s228 = smul.addr %s227, 8
          %s229 = scalar_lea.hbm %s0, %s228
          %s230 = sshll.u32 %s229, 4
          %s231 = int_to_ptr.hbm [resolvable:$true] %s230
          %s232 = sshll.u32 %s224, 4
          %s233 = int_to_ptr.vmem [resolvable:$true] %s232
          %238 = dma.hbm_to_vmem [thread:$0]  %s231, 1024, %s233, %s221, 256, 256, 16
        $region40: #{tpu_custom_call.1} parent=35 // pred_fallthru
          _
      $region36: #{tpu_custom_call.1} parent=5 // pred_fallthru
        _
      %p239 = scmp.le.s32.totalorder 1, %s19
      %p240 = scmp.lt.s32.totalorder %s19, 3
      %p241 = pnand %p239, %p240
      %p242 = pneg %p241
      // Predicated region
      $region41: #{tpu_custom_call.1} parent=5 // pred_check
        _
      $region42: #{tpu_custom_call.1} parent=5 // pred_check_branch
        %244 = sbr.rel (%p241) target = $region44
      $region43: #{tpu_custom_call.1} parent=5 // pred_region
        %s245 = ssub.s32 %s19, 1
        %s246 = sand.u32 %s32, 1
        %s247 = scalar_lea.sflag [#allocation3], %s246
        %s248 = sand.u32 %s32, 1
        %s249 = smul.addr %s248, 64
        %s250 = scalar_lea.vmem [#allocation2], %s249
        // Predicated region
        $region45: #{tpu_custom_call.1} parent=43 // pred_check
          %p251 = pneg %p45
        $region46: #{tpu_custom_call.1} parent=43 // pred_check_branch
          %253 = sbr.rel (%p251) target = $region48
        $region47: #{tpu_custom_call.1} parent=43 // pred_region
          %255 = dma.done %s247, 1024
        $region48: #{tpu_custom_call.1} parent=43 // pred_fallthru
          _
        // Predicated region
        $region49: #{tpu_custom_call.1} parent=43 // pred_check
          %p256 = pneg %p150
        $region50: #{tpu_custom_call.1} parent=43 // pred_check_branch
          %258 = sbr.rel (%p256) target = $region52
        $region51: #{tpu_custom_call.1} parent=43 // pred_region
          %260 = dma.done [#allocation5], 16
        $region52: #{tpu_custom_call.1} parent=43 // pred_fallthru
          _
        %261 = sfence
        %s262 = sand.u32 %s32, 1
        %s263 = scalar_lea.sflag [#allocation3], %s262
        %s264 = sand.u32 %s32, 1
        %s265 = smul.addr %s264, 64
        %s266 = scalar_lea.vmem [#allocation2], %s265
        %p267 = pneg %p45
        %p268 = pneg %p42
        %p269 = pneg %p66
        %p270 = pneg %p63
        %p271 = pneg %p87
        %p272 = pneg %p84
        %p273 = pneg %p108
        %p274 = pneg %p105
        %p275 = pneg %p129
        %p276 = pneg %p126
        %p277 = pneg %p150
        %p278 = pneg %p147
        %p279 = pneg %p176
        %p280 = pneg %p173
        %s281 = sand.u32 %s163, 1
        %s282 = scalar_lea.sflag [#allocation4], %s281
        %s283 = sand.u32 %s163, 1
        %s284 = smul.addr %s283, 64
        %s285 = scalar_lea.vmem [#allocation7], %s284
        %v286 = vld [vmem:[%s250] sm:$0xff]
        %v287 = vld [vmem:[%s250 + $0x8] sm:$0xff]
        %v288 = vld [vmem:[%s250 + $0x10] sm:$0xff]
        %v289 = vld [vmem:[%s250 + $0x18] sm:$0xff]
        %v290 = vld [vmem:[%s250 + $0x20] sm:$0xff]
        %v291 = vld [vmem:[%s250 + $0x28] sm:$0xff]
        %v292 = vld [vmem:[%s250 + $0x30] sm:$0xff]
        %v293 = vld [vmem:[%s250 + $0x38] sm:$0xff]
        %v294 = vadd.f32 %v286, %v287
        %295 = vadd.xlane.f32.xlu0 %v294
        %v296 = vpop.xlane.xlu0 %295
        %v297 = vadd.f32 %v288, %v289
        %298 = vadd.xlane.f32.xlu0 %v297
        %v299 = vpop.xlane.xlu0 %298
        %v300 = vadd.f32 %v290, %v291
        %301 = vadd.xlane.f32.xlu0 %v300
        %v302 = vpop.xlane.xlu0 %301
        %v303 = vadd.f32 %v292, %v293
        %304 = vadd.xlane.f32.xlu0 %v303
        %v305 = vpop.xlane.xlu0 %304
        %v306 = vrcp.pop 256.0
        %v307 = vmul.f32 256.0, %v306
        %v308 = vsub.f32 1.0, %v307
        %v309 = vmul.f32 %v306, %v308
        %v310 = vadd.f32 %v306, %v309
        %vm311 = vweird.f32 %v306
        %v312 = vsel %vm311, %v306, %v310
        %v313 = vmul.f32 %v296, %v312
        %v314 = vmul.f32 %v299, %v312
        %v315 = vmul.f32 %v302, %v312
        %v316 = vmul.f32 %v305, %v312
        %v317 = vmax.f32 %v286, %v287
        %318 = vmax.xlane.f32.xlu0 %v317
        %v319 = vpop.xlane.xlu0 %318
        %v320 = vmax.f32 %v288, %v289
        %321 = vmax.xlane.f32.xlu0 %v320
        %v322 = vpop.xlane.xlu0 %321
        %v323 = vmax.f32 %v290, %v291
        %324 = vmax.xlane.f32.xlu0 %v323
        %v325 = vpop.xlane.xlu0 %324
        %v326 = vmax.f32 %v292, %v293
        %327 = vmax.xlane.f32.xlu0 %v326
        %v328 = vpop.xlane.xlu0 %327
        %v333 = vlaneseq
        %v334 = vand.u32 %v333, 127
        %v335 = vperm.slane %v313, %v334
        %v336 = vadd.s32 %v334, 4294967288
        %v337 = vperm.slane %v314, %v336
        %vm338 = vcmask 130112
        %v339 = vsel %vm338, %v337, %v335
        %v340 = vadd.s32 %v334, 4294967280
        %v341 = vperm.slane %v315, %v340
        %vm342 = vcmask 195712
        %v343 = vsel %vm342, %v341, %v339
        %v344 = vadd.s32 %v334, 4294967272
        %v345 = vperm.slane %v316, %v344
        %vm346 = vcmask 261312
        %v347 = vsel %vm346, %v345, %v343
        %v353 = vperm.slane %v319, %v334
        %v354 = vperm.slane %v322, %v336
        %v355 = vsel %vm338, %v354, %v353
        %v356 = vperm.slane %v325, %v340
        %v357 = vsel %vm342, %v356, %v355
        %v358 = vperm.slane %v328, %v344
        %v359 = vsel %vm346, %v358, %v357
        %vm361 = vcmask 1040384
        %v362 = vsel %vm361, %v347, %v359
        %v363 = vld [vmem:[%s1] sm:$0xff]
        %v364 = vld [vmem:[%s1 + $0x8] sm:$0xff]
        %v365 = vld [vmem:[%s1 + $0x10] sm:$0xff]
        %v366 = vld [vmem:[%s1 + $0x18] sm:$0xff]
        %v367 = vld [vmem:[%s2] sm:$0x1]
        %v369 = vperm.slane %v367, 0
        %vm371 = vcmask 261120
        %v373 = vsel %vm371, %v362, 0
        %375 = vmatpush.msra.mxu0 0.0
        %376 = vmatpush.msra.mxu0 0.0
        %377 = vmatpush.msra.mxu0 0.0
        %378 = vmatpush.msra.mxu0 0.0
        %379 = vmatpush.msra.mxu0 0.0
        %380 = vmatpush.msra.mxu0 0.0
        %381 = vmatpush.msra.mxu0 0.0
        %382 = vmatpush.msra.mxu0 0.0
        %383 = vmatpush.msra.mxu0 0.0
        %384 = vmatpush.msra.mxu0 0.0
        %385 = vmatpush.msra.mxu0 0.0
        %386 = vmatpush.msra.mxu0 0.0
        %387 = vmatpush.msra.mxu0 %v366
        %388 = vmatpush.msra.mxu0 %v365
        %389 = vmatpush.msra.mxu0 %v364
        %390 = vmatpush.msra.mxu0 %v363
        %391 = vmatmul.f32.gmra.mxu0 %v373
        %v392 = vpop.f32.mrf.mxu0
        %v393 = vadd.f32 %v369, %v392
        %394 = vdwg.mxu0
        %v395 = vmax.f32 %v393, 0.0
        %v396 = vld [vmem:[%s3] sm:$0x3f]
        %v397 = vld [vmem:[%s4] sm:$0x1]
        %v399 = vperm.slane %v397, 0
        %vm401 = vcmask 48128
        %v403 = vsel %vm401, %v395, 0
        %vm405 = vcmask 1045504
        %v407 = vsel %vm405, %v396, 0
        %409 = vmatpush.msra.mxu0 0.0
        %410 = vmatpush.msra.mxu0 0.0
        %411 = vmatpush.msra.mxu0 0.0
        %412 = vmatpush.msra.mxu0 0.0
        %413 = vmatpush.msra.mxu0 0.0
        %414 = vmatpush.msra.mxu0 0.0
        %415 = vmatpush.msra.mxu0 0.0
        %416 = vmatpush.msra.mxu0 0.0
        %417 = vmatpush.msra.mxu0 0.0
        %418 = vmatpush.msra.mxu0 0.0
        %419 = vmatpush.msra.mxu0 0.0
        %420 = vmatpush.msra.mxu0 0.0
        %421 = vmatpush.msra.mxu0 0.0
        %422 = vmatpush.msra.mxu0 0.0
        %423 = vmatpush.msra.mxu0 0.0
        %424 = vmatpush.msra.mxu0 %v407
        %425 = vmatmul.f32.gmra.mxu0 %v403
        %v426 = vpop.f32.mrf.mxu0
        %v427 = vadd.f32 %v399, %v426
        %428 = vdwg.mxu0
        %v429 = vxor.u32 %v427, 2147483648
        %v430 = vmul.f32 %v429, 1.442695
        %v431 = vpow.pop %v430
        %v432 = vadd.f32 %v431, 1.0
        %v433 = vrcp.pop %v432
        %v434 = vmul.f32 %v432, %v433
        %v435 = vsub.f32 1.0, %v434
        %v436 = vmul.f32 %v433, %v435
        %v437 = vadd.f32 %v433, %v436
        %vm438 = vweird.f32 %v432
        %vm439 = vweird.f32 %v433
        %vm440 = vmor %vm438, %vm439
        %v441 = vsel %vm440, %v433, %v437
        %v442 = vand.u32 2147483647, %v432
        %vm443 = vcmp.eq.f32.partialorder %v442, 8.507059e+37
        %v444 = vand.u32 %v432, 2147483648
        %v445 = vor.u32 1.1754944e-38, %v444
        %v446 = vsel %vm443, %v445, %v441
        %v447 = vmul.f32 1.0, %v446
        %v449 = vrot.slane %v447, 1
        %v451 = vadd.f32 %v447, %v449
        %v452 = vxor.u32 %v451, 2147483648
        %v453 = vmul.f32 %v452, 1.442695
        %v454 = vpow.pop %v453
        %v455 = vadd.f32 %v454, 1.0
        %v456 = vrcp.pop %v455
        %v457 = vmul.f32 %v455, %v456
        %v458 = vsub.f32 1.0, %v457
        %v459 = vmul.f32 %v456, %v458
        %v460 = vadd.f32 %v456, %v459
        %vm461 = vweird.f32 %v455
        %vm462 = vweird.f32 %v456
        %vm463 = vmor %vm461, %vm462
        %v464 = vsel %vm463, %v456, %v460
        %v465 = vand.u32 2147483647, %v455
        %vm466 = vcmp.eq.f32.partialorder %v465, 8.507059e+37
        %v467 = vand.u32 %v455, 2147483648
        %v468 = vor.u32 1.1754944e-38, %v467
        %v469 = vsel %vm466, %v468, %v464
        %v470 = vmul.f32 1.0, %v469
        %v471 = vperm.slane %v470, 0
        %v472 = vlaneseq
        %v473 = vshrl.u32 %v472, 7
        %475 = vset.pattern.permute.xlu0 %v473
        %476 = vperm.xlu0 %475, %v471
        %v477 = vpop.permute.xlu0 %476
        %v478 = vlaneseq
        %v479 = vshrl.u32 %v478, 7
        %v480 = vadd.s32 %v479, 8
        %481 = vset.pattern.permute.xlu0 %v480
        %482 = vperm.xlu0 %481, %v471
        %v483 = vpop.permute.xlu0 %482
        %v484 = vlaneseq
        %v485 = vshrl.u32 %v484, 7
        %v486 = vadd.s32 %v485, 16
        %487 = vset.pattern.permute.xlu0 %v486
        %488 = vperm.xlu0 %487, %v471
        %v489 = vpop.permute.xlu0 %488
        %v490 = vlaneseq
        %v491 = vshrl.u32 %v490, 7
        %v492 = vadd.s32 %v491, 24
        %493 = vset.pattern.permute.xlu0 %v492
        %494 = vperm.xlu0 %493, %v471
        %v495 = vpop.permute.xlu0 %494
        %v496 = vmul.f32 %v286, %v477
        %v497 = vmul.f32 %v287, %v477
        %v498 = vmul.f32 %v288, %v483
        %v499 = vmul.f32 %v289, %v483
        %v500 = vmul.f32 %v290, %v489
        %v501 = vmul.f32 %v291, %v489
        %v502 = vmul.f32 %v292, %v495
        %v503 = vmul.f32 %v293, %v495
        %v504 = vadd.f32 %v496, %v498
        %v505 = vadd.f32 %v504, %v500
        %v506 = vadd.f32 %v505, %v502
        %v507 = vrot.slane %v506, 4
        %v508 = vadd.f32 %v506, %v507
        %v509 = vrot.slane %v508, 2
        %v510 = vadd.f32 %v508, %v509
        %v511 = vrot.slane %v510, 1
        %v512 = vadd.f32 %v510, %v511
        %v513 = vadd.f32 %v497, %v499
        %v514 = vadd.f32 %v513, %v501
        %v515 = vadd.f32 %v514, %v503
        %v516 = vrot.slane %v515, 4
        %v517 = vadd.f32 %v515, %v516
        %v518 = vrot.slane %v517, 2
        %v519 = vadd.f32 %v517, %v518
        %v520 = vrot.slane %v519, 1
        %v521 = vadd.f32 %v519, %v520
        %v522 = vrcp.pop 32.0
        %v523 = vmul.f32 32.0, %v522
        %v524 = vsub.f32 1.0, %v523
        %v525 = vmul.f32 %v522, %v524
        %v526 = vadd.f32 %v522, %v525
        %vm527 = vweird.f32 %v522
        %v528 = vsel %vm527, %v522, %v526
        %v529 = vmul.f32 %v512, %v528
        %v530 = vmul.f32 %v521, %v528
        %v531 = vmax.f32 %v496, %v500
        %v532 = vmax.f32 %v498, %v502
        %v533 = vmax.f32 %v531, %v532
        %v534 = vrot.slane %v533, 4
        %v535 = vmax.f32 %v533, %v534
        %v536 = vrot.slane %v535, 2
        %v537 = vmax.f32 %v535, %v536
        %v538 = vrot.slane %v537, 1
        %v539 = vmax.f32 %v537, %v538
        %v540 = vmax.f32 %v497, %v501
        %v541 = vmax.f32 %v499, %v503
        %v542 = vmax.f32 %v540, %v541
        %v543 = vrot.slane %v542, 4
        %v544 = vmax.f32 %v542, %v543
        %v545 = vrot.slane %v544, 2
        %v546 = vmax.f32 %v544, %v545
        %v547 = vrot.slane %v546, 1
        %v548 = vmax.f32 %v546, %v547
        %551 = vrot.lane.b32.xlu0 %v529, 51
        %v552 = vpop.permute.xlu0 %551
        %553 = vrot.lane.b32.xlu0 %v530, 51
        %v554 = vpop.permute.xlu0 %553
        %vm555 = vcmask 416768
        %v556 = vsel %vm555, %v552, %v554
        %v560 = vsel %vm555, 0.0, %v552
        %v561 = vsel %vm555, %v554, 0.0
        %564 = vrot.lane.b32.xlu0 %v539, 51
        %v565 = vpop.permute.xlu0 %564
        %566 = vrot.lane.b32.xlu0 %v548, 51
        %v567 = vpop.permute.xlu0 %566
        %v568 = vsel %vm555, %v565, %v567
        %v572 = vsel %vm555, 0.0, %v565
        %v573 = vsel %vm555, %v567, 0.0
        %v574 = vadd.s32 %v334, 128
        %vm575 = vcmp.lt.s32.totalorder %v334, 0
        %v576 = vsub.s32 0, %v334
        %v577 = vsel %vm575, %v576, %v334
        %v578 = vshrl.u32 %v577, 4
        %v579 = vand.u32 %v577, 15
        %v580 = vsub.s32 0, %v579
        %v581 = vsel %vm575, %v580, %v579
        %vm582 = vcmp.lt.s32.totalorder %v574, 0
        %v583 = vsub.s32 0, %v574
        %v584 = vsel %vm582, %v583, %v574
        %v585 = vshrl.u32 %v584, 4
        %v586 = vand.u32 %v584, 15
        %v587 = vsub.s32 0, %v586
        %v588 = vsel %vm582, %v587, %v586
        %vm589 = vcmp.ne.s32.totalorder %v581, 0
        %vm590 = vcmp.ne.s32.totalorder %v588, 0
        %vm591 = vcmp.lt.s32.totalorder %v581, 0
        %vm592 = vcmp.lt.s32.totalorder %v588, 0
        %vm593 = vmand %vm591, %vm589
        %vm594 = vmand %vm592, %vm590
        %v595 = vadd.s32 %v581, 16
        %v596 = vadd.s32 %v588, 16
        %v597 = vsel %vm593, %v595, %v581
        %v598 = vsel %vm594, %v596, %v588
        %v599 = vadd.s32 %v597, 4294967293
        %v600 = vadd.s32 %v598, 4294967293
        %vm601 = vcmp.ge.s32.totalorder %v599, 0
        %vm602 = vcmp.ge.s32.totalorder %v600, 0
        %vm603 = vcmp.lt.s32.totalorder %v599, 16
        %vm604 = vcmp.lt.s32.totalorder %v600, 16
        %vm605 = vmand %vm601, %vm603
        %vm606 = vmand %vm602, %vm604
        %v607 = vsel %vm605, 1, 0
        %v608 = vsel %vm606, 1, 0
        %v609 = vcvt.s32.f32 %v607
        %v610 = vcvt.s32.f32 %v608
        %v611 = vadd.s32 %v597, 4294967294
        %v612 = vadd.s32 %v598, 4294967294
        %vm613 = vcmp.ge.s32.totalorder %v611, 0
        %vm614 = vcmp.ge.s32.totalorder %v612, 0
        %vm615 = vcmp.lt.s32.totalorder %v611, 16
        %vm616 = vcmp.lt.s32.totalorder %v612, 16
        %vm617 = vmand %vm613, %vm615
        %vm618 = vmand %vm614, %vm616
        %v619 = vsel %vm617, 1, 0
        %v620 = vsel %vm618, 1, 0
        %v621 = vcvt.s32.f32 %v619
        %v622 = vcvt.s32.f32 %v620
        %v623 = vadd.s32 %v597, 4294967295
        %v624 = vadd.s32 %v598, 4294967295
        %vm625 = vcmp.ge.s32.totalorder %v623, 0
        %vm626 = vcmp.ge.s32.totalorder %v624, 0
        %vm627 = vcmp.lt.s32.totalorder %v623, 16
        %vm628 = vcmp.lt.s32.totalorder %v624, 16
        %vm629 = vmand %vm625, %vm627
        %vm630 = vmand %vm626, %vm628
        %v631 = vsel %vm629, 1, 0
        %v632 = vsel %vm630, 1, 0
        %v633 = vcvt.s32.f32 %v631
        %v634 = vcvt.s32.f32 %v632
        %v635 = vadd.s32 %v597, 1
        %v636 = vadd.s32 %v598, 1
        %vm637 = vcmp.ge.s32.totalorder %v635, 0
        %vm638 = vcmp.ge.s32.totalorder %v636, 0
        %vm639 = vcmp.lt.s32.totalorder %v635, 16
        %vm640 = vcmp.lt.s32.totalorder %v636, 16
        %vm641 = vmand %vm637, %vm639
        %vm642 = vmand %vm638, %vm640
        %v643 = vsel %vm641, 1, 0
        %v644 = vsel %vm642, 1, 0
        %v645 = vcvt.s32.f32 %v643
        %v646 = vcvt.s32.f32 %v644
        %v647 = vadd.s32 %v597, 2
        %v648 = vadd.s32 %v598, 2
        %vm649 = vcmp.ge.s32.totalorder %v647, 0
        %vm650 = vcmp.ge.s32.totalorder %v648, 0
        %vm651 = vcmp.lt.s32.totalorder %v647, 16
        %vm652 = vcmp.lt.s32.totalorder %v648, 16
        %vm653 = vmand %vm649, %vm651
        %vm654 = vmand %vm650, %vm652
        %v655 = vsel %vm653, 1, 0
        %v656 = vsel %vm654, 1, 0
        %v657 = vcvt.s32.f32 %v655
        %v658 = vcvt.s32.f32 %v656
        %v659 = vadd.s32 %v597, 3
        %v660 = vadd.s32 %v598, 3
        %vm661 = vcmp.ge.s32.totalorder %v659, 0
        %vm662 = vcmp.ge.s32.totalorder %v660, 0
        %vm663 = vcmp.lt.s32.totalorder %v659, 16
        %vm664 = vcmp.lt.s32.totalorder %v660, 16
        %vm665 = vmand %vm661, %vm663
        %vm666 = vmand %vm662, %vm664
        %v667 = vsel %vm665, 1, 0
        %v668 = vsel %vm666, 1, 0
        %v669 = vcvt.s32.f32 %v667
        %v670 = vcvt.s32.f32 %v668
        %s671 = sld [smem:[#allocation6]]
        %s672 = sld [smem:[#allocation6 + $0x1]]
        %s673 = sld [smem:[#allocation6 + $0x2]]
        %s674 = sld [smem:[#allocation6 + $0x3]]
        %s675 = sld [smem:[#allocation6 + $0x4]]
        %s676 = sld [smem:[#allocation6 + $0x5]]
        %s677 = sld [smem:[#allocation6 + $0x6]]
        %s678 = sld [smem:[#allocation6 + $0x7]]
        %s679 = sld [smem:[#allocation6 + $0x8]]
        %s680 = sld [smem:[#allocation6 + $0x9]]
        %s681 = sld [smem:[#allocation6 + $0xa]]
        %s682 = sld [smem:[#allocation6 + $0xb]]
        %s683 = sld [smem:[#allocation6 + $0xc]]
        %s684 = sld [smem:[#allocation6 + $0xd]]
        %s685 = sld [smem:[#allocation6 + $0xe]]
        %s686 = sld [smem:[#allocation6 + $0xf]]
        %s687 = sld [smem:[#allocation6 + $0x10]]
        %s688 = sld [smem:[#allocation6 + $0x11]]
        %s689 = sld [smem:[#allocation6 + $0x12]]
        %s690 = sld [smem:[#allocation6 + $0x13]]
        %s691 = sld [smem:[#allocation6 + $0x14]]
        %s692 = sld [smem:[#allocation6 + $0x15]]
        %s693 = sld [smem:[#allocation6 + $0x16]]
        %s694 = sld [smem:[#allocation6 + $0x17]]
        %s695 = sld [smem:[#allocation6 + $0x18]]
        %s696 = sld [smem:[#allocation6 + $0x19]]
        %s697 = sld [smem:[#allocation6 + $0x1a]]
        %s698 = sld [smem:[#allocation6 + $0x1b]]
        %s699 = sld [smem:[#allocation6 + $0x1c]]
        %s700 = sld [smem:[#allocation6 + $0x1d]]
        %s701 = sld [smem:[#allocation6 + $0x1e]]
        %s702 = sld [smem:[#allocation6 + $0x1f]]
        %s703 = sld [smem:[#allocation6 + $0x20]]
        %s704 = sld [smem:[#allocation6 + $0x21]]
        %s705 = sld [smem:[#allocation6 + $0x22]]
        %s706 = sld [smem:[#allocation6 + $0x23]]
        %s707 = sld [smem:[#allocation6 + $0x24]]
        %s708 = sld [smem:[#allocation6 + $0x25]]
        %s709 = sld [smem:[#allocation6 + $0x26]]
        %s710 = sld [smem:[#allocation6 + $0x27]]
        %s711 = sld [smem:[#allocation6 + $0x28]]
        %s712 = sld [smem:[#allocation6 + $0x29]]
        %s713 = sld [smem:[#allocation6 + $0x2a]]
        %s714 = sld [smem:[#allocation6 + $0x2b]]
        %s715 = sld [smem:[#allocation6 + $0x2c]]
        %s716 = sld [smem:[#allocation6 + $0x2d]]
        %s717 = sld [smem:[#allocation6 + $0x2e]]
        %s718 = sld [smem:[#allocation6 + $0x2f]]
        %s719 = sld [smem:[#allocation6 + $0x30]]
        %s720 = sld [smem:[#allocation6 + $0x31]]
        %s721 = sld [smem:[#allocation6 + $0x32]]
        %s722 = sld [smem:[#allocation6 + $0x33]]
        %s723 = sld [smem:[#allocation6 + $0x34]]
        %s724 = sld [smem:[#allocation6 + $0x35]]
        %s725 = sld [smem:[#allocation6 + $0x36]]
        %s726 = sld [smem:[#allocation6 + $0x37]]
        %s727 = sld [smem:[#allocation6 + $0x38]]
        %s728 = sld [smem:[#allocation6 + $0x39]]
        %s729 = sld [smem:[#allocation6 + $0x3a]]
        %s730 = sld [smem:[#allocation6 + $0x3b]]
        %s731 = sld [smem:[#allocation6 + $0x3c]]
        %s732 = sld [smem:[#allocation6 + $0x3d]]
        %s733 = sld [smem:[#allocation6 + $0x3e]]
        %s734 = sld [smem:[#allocation6 + $0x3f]]
        %s735 = sld [smem:[#allocation6 + $0x40]]
        %s736 = sld [smem:[#allocation6 + $0x41]]
        %s737 = sld [smem:[#allocation6 + $0x42]]
        %s738 = sld [smem:[#allocation6 + $0x43]]
        %s739 = sld [smem:[#allocation6 + $0x44]]
        %s740 = sld [smem:[#allocation6 + $0x45]]
        %s741 = sld [smem:[#allocation6 + $0x46]]
        %s742 = sld [smem:[#allocation6 + $0x47]]
        %s743 = sld [smem:[#allocation6 + $0x48]]
        %s744 = sld [smem:[#allocation6 + $0x49]]
        %s745 = sld [smem:[#allocation6 + $0x4a]]
        %s746 = sld [smem:[#allocation6 + $0x4b]]
        %s747 = sld [smem:[#allocation6 + $0x4c]]
        %s748 = sld [smem:[#allocation6 + $0x4d]]
        %s749 = sld [smem:[#allocation6 + $0x4e]]
        %s750 = sld [smem:[#allocation6 + $0x4f]]
        %s751 = sld [smem:[#allocation6 + $0x50]]
        %s752 = sld [smem:[#allocation6 + $0x51]]
        %s753 = sld [smem:[#allocation6 + $0x52]]
        %s754 = sld [smem:[#allocation6 + $0x53]]
        %s755 = sld [smem:[#allocation6 + $0x54]]
        %s756 = sld [smem:[#allocation6 + $0x55]]
        %s757 = sld [smem:[#allocation6 + $0x56]]
        %s758 = sld [smem:[#allocation6 + $0x57]]
        %s759 = sld [smem:[#allocation6 + $0x58]]
        %s760 = sld [smem:[#allocation6 + $0x59]]
        %s761 = sld [smem:[#allocation6 + $0x5a]]
        %s762 = sld [smem:[#allocation6 + $0x5b]]
        %s763 = sld [smem:[#allocation6 + $0x5c]]
        %s764 = sld [smem:[#allocation6 + $0x5d]]
        %s765 = sld [smem:[#allocation6 + $0x5e]]
        %s766 = sld [smem:[#allocation6 + $0x5f]]
        %s767 = sld [smem:[#allocation6 + $0x60]]
        %s768 = sld [smem:[#allocation6 + $0x61]]
        %v769 = vstv %s671
        %v770 = vmul.f32 %v769, %v560
        %v771 = vmul.f32 %v769, %v556
        %v772 = vstv %s720
        %v773 = vmul.f32 %v772, %v572
        %v774 = vmul.f32 %v772, %v568
        %v775 = vadd.f32 %v770, %v773
        %v776 = vadd.f32 %v771, %v774
        %v777 = vmul.f32 %v775, %v609
        %v778 = vmul.f32 %v776, %v610
        %v779 = vadd.f32 %v777, 0.0
        %v780 = vadd.f32 %v778, 0.0
        %v781 = vstv %s672
        %v782 = vmul.f32 %v781, %v560
        %v783 = vmul.f32 %v781, %v556
        %v784 = vmul.f32 %v781, %v561
        %v785 = vstv %s721
        %v786 = vmul.f32 %v785, %v572
        %v787 = vmul.f32 %v785, %v568
        %v788 = vmul.f32 %v785, %v573
        %v789 = vadd.f32 %v782, %v786
        %v790 = vadd.f32 %v783, %v787
        %v791 = vadd.f32 %v784, %v788
        %794 = vrot.lane.b32.xlu0 %v621, 1
        %v795 = vpop.permute.xlu0 %794
        %796 = vrot.lane.b32.xlu0 %v622, 1
        %v797 = vpop.permute.xlu0 %796
        %vm798 = vcmask 7168
        %v799 = vsel %vm798, %v795, %v797
        %v803 = vmul.f32 %v789, %v795
        %v804 = vmul.f32 %v790, %v799
        %v805 = vmul.f32 %v791, %v797
        %809 = vrot.lane.b32.xlu0 %v803, 127
        %v810 = vpop.permute.xlu0 %809
        %811 = vrot.lane.b32.xlu0 %v804, 127
        %v812 = vpop.permute.xlu0 %811
        %813 = vrot.lane.b32.xlu0 %v805, 127
        %v814 = vpop.permute.xlu0 %813
        %vm815 = vcmask 1039360
        %v816 = vsel %vm815, %v810, %v812
        %v817 = vsel %vm815, %v812, %v814
        %v820 = vadd.f32 %v779, %v816
        %v821 = vadd.f32 %v780, %v817
        %v822 = vstv %s673
        %v823 = vmul.f32 %v822, %v560
        %v824 = vmul.f32 %v822, %v556
        %v825 = vmul.f32 %v822, %v561
        %v826 = vstv %s722
        %v827 = vmul.f32 %v826, %v572
        %v828 = vmul.f32 %v826, %v568
        %v829 = vmul.f32 %v826, %v573
        %v830 = vadd.f32 %v823, %v827
        %v831 = vadd.f32 %v824, %v828
        %v832 = vadd.f32 %v825, %v829
        %835 = vrot.lane.b32.xlu0 %v633, 2
        %v836 = vpop.permute.xlu0 %835
        %837 = vrot.lane.b32.xlu0 %v634, 2
        %v838 = vpop.permute.xlu0 %837
        %vm839 = vcmask 15360
        %v840 = vsel %vm839, %v836, %v838
        %v844 = vmul.f32 %v830, %v836
        %v845 = vmul.f32 %v831, %v840
        %v846 = vmul.f32 %v832, %v838
        %850 = vrot.lane.b32.xlu0 %v844, 126
        %v851 = vpop.permute.xlu0 %850
        %852 = vrot.lane.b32.xlu0 %v845, 126
        %v853 = vpop.permute.xlu0 %852
        %854 = vrot.lane.b32.xlu0 %v846, 126
        %v855 = vpop.permute.xlu0 %854
        %vm856 = vcmask 1031168
        %v857 = vsel %vm856, %v851, %v853
        %v858 = vsel %vm856, %v853, %v855
        %v861 = vadd.f32 %v820, %v857
        %v862 = vadd.f32 %v821, %v858
        %v863 = vstv %s674
        %v864 = vmul.f32 %v863, %v560
        %v865 = vmul.f32 %v863, %v556
        %v866 = vmul.f32 %v863, %v561
        %v867 = vstv %s723
        %v868 = vmul.f32 %v867, %v572
        %v869 = vmul.f32 %v867, %v568
        %v870 = vmul.f32 %v867, %v573
        %v871 = vadd.f32 %v864, %v868
        %v872 = vadd.f32 %v865, %v869
        %v873 = vadd.f32 %v866, %v870
        %877 = vrot.lane.b32.xlu0 %v871, 125
        %v878 = vpop.permute.xlu0 %877
        %879 = vrot.lane.b32.xlu0 %v872, 125
        %v880 = vpop.permute.xlu0 %879
        %881 = vrot.lane.b32.xlu0 %v873, 125
        %v882 = vpop.permute.xlu0 %881
        %vm883 = vcmask 1022976
        %v884 = vsel %vm883, %v878, %v880
        %v885 = vsel %vm883, %v880, %v882
        %v888 = vadd.f32 %v861, %v884
        %v889 = vadd.f32 %v862, %v885
        %v890 = vstv %s675
        %v891 = vmul.f32 %v890, %v560
        %v892 = vmul.f32 %v890, %v556
        %v893 = vmul.f32 %v890, %v561
        %v894 = vstv %s724
        %v895 = vmul.f32 %v894, %v572
        %v896 = vmul.f32 %v894, %v568
        %v897 = vmul.f32 %v894, %v573
        %v898 = vadd.f32 %v891, %v895
        %v899 = vadd.f32 %v892, %v896
        %v900 = vadd.f32 %v893, %v897
        %903 = vrot.lane.b32.xlu0 %v645, 4
        %v904 = vpop.permute.xlu0 %903
        %905 = vrot.lane.b32.xlu0 %v646, 4
        %v906 = vpop.permute.xlu0 %905
        %vm907 = vcmask 31744
        %v908 = vsel %vm907, %v904, %v906
        %v912 = vmul.f32 %v898, %v904
        %v913 = vmul.f32 %v899, %v908
        %v914 = vmul.f32 %v900, %v906
        %918 = vrot.lane.b32.xlu0 %v912, 124
        %v919 = vpop.permute.xlu0 %918
        %920 = vrot.lane.b32.xlu0 %v913, 124
        %v921 = vpop.permute.xlu0 %920
        %922 = vrot.lane.b32.xlu0 %v914, 124
        %v923 = vpop.permute.xlu0 %922
        %vm924 = vcmask 1014784
        %v925 = vsel %vm924, %v919, %v921
        %v926 = vsel %vm924, %v921, %v923
        %v929 = vadd.f32 %v888, %v925
        %v930 = vadd.f32 %v889, %v926
        %v931 = vstv %s676
        %v932 = vmul.f32 %v931, %v560
        %v933 = vmul.f32 %v931, %v556
        %v934 = vmul.f32 %v931, %v561
        %v935 = vstv %s725
        %v936 = vmul.f32 %v935, %v572
        %v937 = vmul.f32 %v935, %v568
        %v938 = vmul.f32 %v935, %v573
        %v939 = vadd.f32 %v932, %v936
        %v940 = vadd.f32 %v933, %v937
        %v941 = vadd.f32 %v934, %v938
        %944 = vrot.lane.b32.xlu0 %v657, 5
        %v945 = vpop.permute.xlu0 %944
        %946 = vrot.lane.b32.xlu0 %v658, 5
        %v947 = vpop.permute.xlu0 %946
        %vm948 = vcmask 39936
        %v949 = vsel %vm948, %v945, %v947
        %v953 = vmul.f32 %v939, %v945
        %v954 = vmul.f32 %v940, %v949
        %v955 = vmul.f32 %v941, %v947
        %959 = vrot.lane.b32.xlu0 %v953, 123
        %v960 = vpop.permute.xlu0 %959
        %961 = vrot.lane.b32.xlu0 %v954, 123
        %v962 = vpop.permute.xlu0 %961
        %963 = vrot.lane.b32.xlu0 %v955, 123
        %v964 = vpop.permute.xlu0 %963
        %vm965 = vcmask 1006592
        %v966 = vsel %vm965, %v960, %v962
        %v967 = vsel %vm965, %v962, %v964
        %v970 = vadd.f32 %v929, %v966
        %v971 = vadd.f32 %v930, %v967
        %v972 = vstv %s677
        %v973 = vmul.f32 %v972, %v560
        %v974 = vmul.f32 %v972, %v556
        %v975 = vmul.f32 %v972, %v561
        %v976 = vstv %s726
        %v977 = vmul.f32 %v976, %v572
        %v978 = vmul.f32 %v976, %v568
        %v979 = vmul.f32 %v976, %v573
        %v980 = vadd.f32 %v973, %v977
        %v981 = vadd.f32 %v974, %v978
        %v982 = vadd.f32 %v975, %v979
        %985 = vrot.lane.b32.xlu0 %v669, 6
        %v986 = vpop.permute.xlu0 %985
        %987 = vrot.lane.b32.xlu0 %v670, 6
        %v988 = vpop.permute.xlu0 %987
        %v989 = vsel %vm401, %v986, %v988
        %v993 = vmul.f32 %v980, %v986
        %v994 = vmul.f32 %v981, %v989
        %v995 = vmul.f32 %v982, %v988
        %999 = vrot.lane.b32.xlu0 %v993, 122
        %v1000 = vpop.permute.xlu0 %999
        %1001 = vrot.lane.b32.xlu0 %v994, 122
        %v1002 = vpop.permute.xlu0 %1001
        %1003 = vrot.lane.b32.xlu0 %v995, 122
        %v1004 = vpop.permute.xlu0 %1003
        %vm1005 = vcmask 998400
        %v1006 = vsel %vm1005, %v1000, %v1002
        %v1007 = vsel %vm1005, %v1002, %v1004
        %v1010 = vadd.f32 %v970, %v1006
        %v1011 = vadd.f32 %v971, %v1007
        %v1012 = vstv %s678
        %v1013 = vmul.f32 %v1012, %v560
        %v1014 = vmul.f32 %v1012, %v556
        %v1015 = vmul.f32 %v1012, %v561
        %v1016 = vstv %s727
        %v1017 = vmul.f32 %v1016, %v572
        %v1018 = vmul.f32 %v1016, %v568
        %v1019 = vmul.f32 %v1016, %v573
        %v1020 = vadd.f32 %v1013, %v1017
        %v1021 = vadd.f32 %v1014, %v1018
        %v1022 = vadd.f32 %v1015, %v1019
        %1025 = vrot.lane.b32.xlu0 %v609, 16
        %v1026 = vpop.permute.xlu0 %1025
        %1027 = vrot.lane.b32.xlu0 %v610, 16
        %v1028 = vpop.permute.xlu0 %1027
        %vm1029 = vcmask 130048
        %v1030 = vsel %vm1029, %v1026, %v1028
        %v1034 = vmul.f32 %v1020, %v1026
        %v1035 = vmul.f32 %v1021, %v1030
        %v1036 = vmul.f32 %v1022, %v1028
        %1040 = vrot.lane.b32.xlu0 %v1034, 112
        %v1041 = vpop.permute.xlu0 %1040
        %1042 = vrot.lane.b32.xlu0 %v1035, 112
        %v1043 = vpop.permute.xlu0 %1042
        %1044 = vrot.lane.b32.xlu0 %v1036, 112
        %v1045 = vpop.permute.xlu0 %1044
        %vm1046 = vcmask 916480
        %v1047 = vsel %vm1046, %v1041, %v1043
        %v1048 = vsel %vm1046, %v1043, %v1045
        %v1051 = vadd.f32 %v1010, %v1047
        %v1052 = vadd.f32 %v1011, %v1048
        %v1053 = vstv %s679
        %v1054 = vmul.f32 %v1053, %v560
        %v1055 = vmul.f32 %v1053, %v556
        %v1056 = vmul.f32 %v1053, %v561
        %v1057 = vstv %s728
        %v1058 = vmul.f32 %v1057, %v572
        %v1059 = vmul.f32 %v1057, %v568
        %v1060 = vmul.f32 %v1057, %v573
        %v1061 = vadd.f32 %v1054, %v1058
        %v1062 = vadd.f32 %v1055, %v1059
        %v1063 = vadd.f32 %v1056, %v1060
        %1064 = vrot.lane.b32.xlu0 %v621, 17
        %v1065 = vpop.permute.xlu0 %1064
        %1066 = vrot.lane.b32.xlu0 %v622, 17
        %v1067 = vpop.permute.xlu0 %1066
        %vm1068 = vcmask 138240
        %v1069 = vsel %vm1068, %v1065, %v1067
        %v1073 = vmul.f32 %v1061, %v1065
        %v1074 = vmul.f32 %v1062, %v1069
        %v1075 = vmul.f32 %v1063, %v1067
        %1079 = vrot.lane.b32.xlu0 %v1073, 111
        %v1080 = vpop.permute.xlu0 %1079
        %1081 = vrot.lane.b32.xlu0 %v1074, 111
        %v1082 = vpop.permute.xlu0 %1081
        %1083 = vrot.lane.b32.xlu0 %v1075, 111
        %v1084 = vpop.permute.xlu0 %1083
        %vm1085 = vcmask 908288
        %v1086 = vsel %vm1085, %v1080, %v1082
        %v1087 = vsel %vm1085, %v1082, %v1084
        %v1090 = vadd.f32 %v1051, %v1086
        %v1091 = vadd.f32 %v1052, %v1087
        %v1092 = vstv %s680
        %v1093 = vmul.f32 %v1092, %v560
        %v1094 = vmul.f32 %v1092, %v556
        %v1095 = vmul.f32 %v1092, %v561
        %v1096 = vstv %s729
        %v1097 = vmul.f32 %v1096, %v572
        %v1098 = vmul.f32 %v1096, %v568
        %v1099 = vmul.f32 %v1096, %v573
        %v1100 = vadd.f32 %v1093, %v1097
        %v1101 = vadd.f32 %v1094, %v1098
        %v1102 = vadd.f32 %v1095, %v1099
        %1103 = vrot.lane.b32.xlu0 %v633, 18
        %v1104 = vpop.permute.xlu0 %1103
        %1105 = vrot.lane.b32.xlu0 %v634, 18
        %v1106 = vpop.permute.xlu0 %1105
        %vm1107 = vcmask 146432
        %v1108 = vsel %vm1107, %v1104, %v1106
        %v1112 = vmul.f32 %v1100, %v1104
        %v1113 = vmul.f32 %v1101, %v1108
        %v1114 = vmul.f32 %v1102, %v1106
        %1118 = vrot.lane.b32.xlu0 %v1112, 110
        %v1119 = vpop.permute.xlu0 %1118
        %1120 = vrot.lane.b32.xlu0 %v1113, 110
        %v1121 = vpop.permute.xlu0 %1120
        %1122 = vrot.lane.b32.xlu0 %v1114, 110
        %v1123 = vpop.permute.xlu0 %1122
        %vm1124 = vcmask 900096
        %v1125 = vsel %vm1124, %v1119, %v1121
        %v1126 = vsel %vm1124, %v1121, %v1123
        %v1129 = vadd.f32 %v1090, %v1125
        %v1130 = vadd.f32 %v1091, %v1126
        %v1131 = vstv %s681
        %v1132 = vmul.f32 %v1131, %v560
        %v1133 = vmul.f32 %v1131, %v556
        %v1134 = vmul.f32 %v1131, %v561
        %v1135 = vstv %s730
        %v1136 = vmul.f32 %v1135, %v572
        %v1137 = vmul.f32 %v1135, %v568
        %v1138 = vmul.f32 %v1135, %v573
        %v1139 = vadd.f32 %v1132, %v1136
        %v1140 = vadd.f32 %v1133, %v1137
        %v1141 = vadd.f32 %v1134, %v1138
        %1145 = vrot.lane.b32.xlu0 %v1139, 109
        %v1146 = vpop.permute.xlu0 %1145
        %1147 = vrot.lane.b32.xlu0 %v1140, 109
        %v1148 = vpop.permute.xlu0 %1147
        %1149 = vrot.lane.b32.xlu0 %v1141, 109
        %v1150 = vpop.permute.xlu0 %1149
        %vm1151 = vcmask 891904
        %v1152 = vsel %vm1151, %v1146, %v1148
        %v1153 = vsel %vm1151, %v1148, %v1150
        %v1156 = vadd.f32 %v1129, %v1152
        %v1157 = vadd.f32 %v1130, %v1153
        %v1158 = vstv %s682
        %v1159 = vmul.f32 %v1158, %v560
        %v1160 = vmul.f32 %v1158, %v556
        %v1161 = vmul.f32 %v1158, %v561
        %v1162 = vstv %s731
        %v1163 = vmul.f32 %v1162, %v572
        %v1164 = vmul.f32 %v1162, %v568
        %v1165 = vmul.f32 %v1162, %v573
        %v1166 = vadd.f32 %v1159, %v1163
        %v1167 = vadd.f32 %v1160, %v1164
        %v1168 = vadd.f32 %v1161, %v1165
        %1169 = vrot.lane.b32.xlu0 %v645, 20
        %v1170 = vpop.permute.xlu0 %1169
        %1171 = vrot.lane.b32.xlu0 %v646, 20
        %v1172 = vpop.permute.xlu0 %1171
        %vm1173 = vcmask 162816
        %v1174 = vsel %vm1173, %v1170, %v1172
        %v1178 = vmul.f32 %v1166, %v1170
        %v1179 = vmul.f32 %v1167, %v1174
        %v1180 = vmul.f32 %v1168, %v1172
        %1184 = vrot.lane.b32.xlu0 %v1178, 108
        %v1185 = vpop.permute.xlu0 %1184
        %1186 = vrot.lane.b32.xlu0 %v1179, 108
        %v1187 = vpop.permute.xlu0 %1186
        %1188 = vrot.lane.b32.xlu0 %v1180, 108
        %v1189 = vpop.permute.xlu0 %1188
        %vm1190 = vcmask 883712
        %v1191 = vsel %vm1190, %v1185, %v1187
        %v1192 = vsel %vm1190, %v1187, %v1189
        %v1195 = vadd.f32 %v1156, %v1191
        %v1196 = vadd.f32 %v1157, %v1192
        %v1197 = vstv %s683
        %v1198 = vmul.f32 %v1197, %v560
        %v1199 = vmul.f32 %v1197, %v556
        %v1200 = vmul.f32 %v1197, %v561
        %v1201 = vstv %s732
        %v1202 = vmul.f32 %v1201, %v572
        %v1203 = vmul.f32 %v1201, %v568
        %v1204 = vmul.f32 %v1201, %v573
        %v1205 = vadd.f32 %v1198, %v1202
        %v1206 = vadd.f32 %v1199, %v1203
        %v1207 = vadd.f32 %v1200, %v1204
        %1208 = vrot.lane.b32.xlu0 %v657, 21
        %v1209 = vpop.permute.xlu0 %1208
        %1210 = vrot.lane.b32.xlu0 %v658, 21
        %v1211 = vpop.permute.xlu0 %1210
        %vm1212 = vcmask 171008
        %v1213 = vsel %vm1212, %v1209, %v1211
        %v1217 = vmul.f32 %v1205, %v1209
        %v1218 = vmul.f32 %v1206, %v1213
        %v1219 = vmul.f32 %v1207, %v1211
        %1223 = vrot.lane.b32.xlu0 %v1217, 107
        %v1224 = vpop.permute.xlu0 %1223
        %1225 = vrot.lane.b32.xlu0 %v1218, 107
        %v1226 = vpop.permute.xlu0 %1225
        %1227 = vrot.lane.b32.xlu0 %v1219, 107
        %v1228 = vpop.permute.xlu0 %1227
        %vm1229 = vcmask 875520
        %v1230 = vsel %vm1229, %v1224, %v1226
        %v1231 = vsel %vm1229, %v1226, %v1228
        %v1234 = vadd.f32 %v1195, %v1230
        %v1235 = vadd.f32 %v1196, %v1231
        %v1236 = vstv %s684
        %v1237 = vmul.f32 %v1236, %v560
        %v1238 = vmul.f32 %v1236, %v556
        %v1239 = vmul.f32 %v1236, %v561
        %v1240 = vstv %s733
        %v1241 = vmul.f32 %v1240, %v572
        %v1242 = vmul.f32 %v1240, %v568
        %v1243 = vmul.f32 %v1240, %v573
        %v1244 = vadd.f32 %v1237, %v1241
        %v1245 = vadd.f32 %v1238, %v1242
        %v1246 = vadd.f32 %v1239, %v1243
        %1247 = vrot.lane.b32.xlu0 %v669, 22
        %v1248 = vpop.permute.xlu0 %1247
        %1249 = vrot.lane.b32.xlu0 %v670, 22
        %v1250 = vpop.permute.xlu0 %1249
        %vm1251 = vcmask 179200
        %v1252 = vsel %vm1251, %v1248, %v1250
        %v1256 = vmul.f32 %v1244, %v1248
        %v1257 = vmul.f32 %v1245, %v1252
        %v1258 = vmul.f32 %v1246, %v1250
        %1262 = vrot.lane.b32.xlu0 %v1256, 106
        %v1263 = vpop.permute.xlu0 %1262
        %1264 = vrot.lane.b32.xlu0 %v1257, 106
        %v1265 = vpop.permute.xlu0 %1264
        %1266 = vrot.lane.b32.xlu0 %v1258, 106
        %v1267 = vpop.permute.xlu0 %1266
        %vm1268 = vcmask 867328
        %v1269 = vsel %vm1268, %v1263, %v1265
        %v1270 = vsel %vm1268, %v1265, %v1267
        %v1273 = vadd.f32 %v1234, %v1269
        %v1274 = vadd.f32 %v1235, %v1270
        %v1275 = vstv %s685
        %v1276 = vmul.f32 %v1275, %v560
        %v1277 = vmul.f32 %v1275, %v556
        %v1278 = vmul.f32 %v1275, %v561
        %v1279 = vstv %s734
        %v1280 = vmul.f32 %v1279, %v572
        %v1281 = vmul.f32 %v1279, %v568
        %v1282 = vmul.f32 %v1279, %v573
        %v1283 = vadd.f32 %v1276, %v1280
        %v1284 = vadd.f32 %v1277, %v1281
        %v1285 = vadd.f32 %v1278, %v1282
        %1286 = vrot.lane.b32.xlu0 %v609, 32
        %v1287 = vpop.permute.xlu0 %1286
        %1288 = vrot.lane.b32.xlu0 %v610, 32
        %v1289 = vpop.permute.xlu0 %1288
        %v1290 = vsel %vm371, %v1287, %v1289
        %v1294 = vmul.f32 %v1283, %v1287
        %v1295 = vmul.f32 %v1284, %v1290
        %v1296 = vmul.f32 %v1285, %v1289
        %1300 = vrot.lane.b32.xlu0 %v1294, 96
        %v1301 = vpop.permute.xlu0 %1300
        %1302 = vrot.lane.b32.xlu0 %v1295, 96
        %v1303 = vpop.permute.xlu0 %1302
        %1304 = vrot.lane.b32.xlu0 %v1296, 96
        %v1305 = vpop.permute.xlu0 %1304
        %vm1306 = vcmask 785408
        %v1307 = vsel %vm1306, %v1301, %v1303
        %v1308 = vsel %vm1306, %v1303, %v1305
        %v1311 = vadd.f32 %v1273, %v1307
        %v1312 = vadd.f32 %v1274, %v1308
        %v1313 = vstv %s686
        %v1314 = vmul.f32 %v1313, %v560
        %v1315 = vmul.f32 %v1313, %v556
        %v1316 = vmul.f32 %v1313, %v561
        %v1317 = vstv %s735
        %v1318 = vmul.f32 %v1317, %v572
        %v1319 = vmul.f32 %v1317, %v568
        %v1320 = vmul.f32 %v1317, %v573
        %v1321 = vadd.f32 %v1314, %v1318
        %v1322 = vadd.f32 %v1315, %v1319
        %v1323 = vadd.f32 %v1316, %v1320
        %1324 = vrot.lane.b32.xlu0 %v621, 33
        %v1325 = vpop.permute.xlu0 %1324
        %1326 = vrot.lane.b32.xlu0 %v622, 33
        %v1327 = vpop.permute.xlu0 %1326
        %vm1328 = vcmask 269312
        %v1329 = vsel %vm1328, %v1325, %v1327
        %v1333 = vmul.f32 %v1321, %v1325
        %v1334 = vmul.f32 %v1322, %v1329
        %v1335 = vmul.f32 %v1323, %v1327
        %1339 = vrot.lane.b32.xlu0 %v1333, 95
        %v1340 = vpop.permute.xlu0 %1339
        %1341 = vrot.lane.b32.xlu0 %v1334, 95
        %v1342 = vpop.permute.xlu0 %1341
        %1343 = vrot.lane.b32.xlu0 %v1335, 95
        %v1344 = vpop.permute.xlu0 %1343
        %vm1345 = vcmask 777216
        %v1346 = vsel %vm1345, %v1340, %v1342
        %v1347 = vsel %vm1345, %v1342, %v1344
        %v1350 = vadd.f32 %v1311, %v1346
        %v1351 = vadd.f32 %v1312, %v1347
        %v1352 = vstv %s687
        %v1353 = vmul.f32 %v1352, %v560
        %v1354 = vmul.f32 %v1352, %v556
        %v1355 = vmul.f32 %v1352, %v561
        %v1356 = vstv %s736
        %v1357 = vmul.f32 %v1356, %v572
        %v1358 = vmul.f32 %v1356, %v568
        %v1359 = vmul.f32 %v1356, %v573
        %v1360 = vadd.f32 %v1353, %v1357
        %v1361 = vadd.f32 %v1354, %v1358
        %v1362 = vadd.f32 %v1355, %v1359
        %1363 = vrot.lane.b32.xlu0 %v633, 34
        %v1364 = vpop.permute.xlu0 %1363
        %1365 = vrot.lane.b32.xlu0 %v634, 34
        %v1366 = vpop.permute.xlu0 %1365
        %vm1367 = vcmask 277504
        %v1368 = vsel %vm1367, %v1364, %v1366
        %v1372 = vmul.f32 %v1360, %v1364
        %v1373 = vmul.f32 %v1361, %v1368
        %v1374 = vmul.f32 %v1362, %v1366
        %1378 = vrot.lane.b32.xlu0 %v1372, 94
        %v1379 = vpop.permute.xlu0 %1378
        %1380 = vrot.lane.b32.xlu0 %v1373, 94
        %v1381 = vpop.permute.xlu0 %1380
        %1382 = vrot.lane.b32.xlu0 %v1374, 94
        %v1383 = vpop.permute.xlu0 %1382
        %vm1384 = vcmask 769024
        %v1385 = vsel %vm1384, %v1379, %v1381
        %v1386 = vsel %vm1384, %v1381, %v1383
        %v1389 = vadd.f32 %v1350, %v1385
        %v1390 = vadd.f32 %v1351, %v1386
        %v1391 = vstv %s688
        %v1392 = vmul.f32 %v1391, %v560
        %v1393 = vmul.f32 %v1391, %v556
        %v1394 = vmul.f32 %v1391, %v561
        %v1395 = vstv %s737
        %v1396 = vmul.f32 %v1395, %v572
        %v1397 = vmul.f32 %v1395, %v568
        %v1398 = vmul.f32 %v1395, %v573
        %v1399 = vadd.f32 %v1392, %v1396
        %v1400 = vadd.f32 %v1393, %v1397
        %v1401 = vadd.f32 %v1394, %v1398
        %1405 = vrot.lane.b32.xlu0 %v1399, 93
        %v1406 = vpop.permute.xlu0 %1405
        %1407 = vrot.lane.b32.xlu0 %v1400, 93
        %v1408 = vpop.permute.xlu0 %1407
        %1409 = vrot.lane.b32.xlu0 %v1401, 93
        %v1410 = vpop.permute.xlu0 %1409
        %vm1411 = vcmask 760832
        %v1412 = vsel %vm1411, %v1406, %v1408
        %v1413 = vsel %vm1411, %v1408, %v1410
        %v1416 = vadd.f32 %v1389, %v1412
        %v1417 = vadd.f32 %v1390, %v1413
        %v1418 = vstv %s689
        %v1419 = vmul.f32 %v1418, %v560
        %v1420 = vmul.f32 %v1418, %v556
        %v1421 = vmul.f32 %v1418, %v561
        %v1422 = vstv %s738
        %v1423 = vmul.f32 %v1422, %v572
        %v1424 = vmul.f32 %v1422, %v568
        %v1425 = vmul.f32 %v1422, %v573
        %v1426 = vadd.f32 %v1419, %v1423
        %v1427 = vadd.f32 %v1420, %v1424
        %v1428 = vadd.f32 %v1421, %v1425
        %1429 = vrot.lane.b32.xlu0 %v645, 36
        %v1430 = vpop.permute.xlu0 %1429
        %1431 = vrot.lane.b32.xlu0 %v646, 36
        %v1432 = vpop.permute.xlu0 %1431
        %vm1433 = vcmask 293888
        %v1434 = vsel %vm1433, %v1430, %v1432
        %v1438 = vmul.f32 %v1426, %v1430
        %v1439 = vmul.f32 %v1427, %v1434
        %v1440 = vmul.f32 %v1428, %v1432
        %1444 = vrot.lane.b32.xlu0 %v1438, 92
        %v1445 = vpop.permute.xlu0 %1444
        %1446 = vrot.lane.b32.xlu0 %v1439, 92
        %v1447 = vpop.permute.xlu0 %1446
        %1448 = vrot.lane.b32.xlu0 %v1440, 92
        %v1449 = vpop.permute.xlu0 %1448
        %vm1450 = vcmask 752640
        %v1451 = vsel %vm1450, %v1445, %v1447
        %v1452 = vsel %vm1450, %v1447, %v1449
        %v1455 = vadd.f32 %v1416, %v1451
        %v1456 = vadd.f32 %v1417, %v1452
        %v1457 = vstv %s690
        %v1458 = vmul.f32 %v1457, %v560
        %v1459 = vmul.f32 %v1457, %v556
        %v1460 = vmul.f32 %v1457, %v561
        %v1461 = vstv %s739
        %v1462 = vmul.f32 %v1461, %v572
        %v1463 = vmul.f32 %v1461, %v568
        %v1464 = vmul.f32 %v1461, %v573
        %v1465 = vadd.f32 %v1458, %v1462
        %v1466 = vadd.f32 %v1459, %v1463
        %v1467 = vadd.f32 %v1460, %v1464
        %1468 = vrot.lane.b32.xlu0 %v657, 37
        %v1469 = vpop.permute.xlu0 %1468
        %1470 = vrot.lane.b32.xlu0 %v658, 37
        %v1471 = vpop.permute.xlu0 %1470
        %vm1472 = vcmask 302080
        %v1473 = vsel %vm1472, %v1469, %v1471
        %v1477 = vmul.f32 %v1465, %v1469
        %v1478 = vmul.f32 %v1466, %v1473
        %v1479 = vmul.f32 %v1467, %v1471
        %1483 = vrot.lane.b32.xlu0 %v1477, 91
        %v1484 = vpop.permute.xlu0 %1483
        %1485 = vrot.lane.b32.xlu0 %v1478, 91
        %v1486 = vpop.permute.xlu0 %1485
        %1487 = vrot.lane.b32.xlu0 %v1479, 91
        %v1488 = vpop.permute.xlu0 %1487
        %vm1489 = vcmask 744448
        %v1490 = vsel %vm1489, %v1484, %v1486
        %v1491 = vsel %vm1489, %v1486, %v1488
        %v1494 = vadd.f32 %v1455, %v1490
        %v1495 = vadd.f32 %v1456, %v1491
        %v1496 = vstv %s691
        %v1497 = vmul.f32 %v1496, %v560
        %v1498 = vmul.f32 %v1496, %v556
        %v1499 = vmul.f32 %v1496, %v561
        %v1500 = vstv %s740
        %v1501 = vmul.f32 %v1500, %v572
        %v1502 = vmul.f32 %v1500, %v568
        %v1503 = vmul.f32 %v1500, %v573
        %v1504 = vadd.f32 %v1497, %v1501
        %v1505 = vadd.f32 %v1498, %v1502
        %v1506 = vadd.f32 %v1499, %v1503
        %1507 = vrot.lane.b32.xlu0 %v669, 38
        %v1508 = vpop.permute.xlu0 %1507
        %1509 = vrot.lane.b32.xlu0 %v670, 38
        %v1510 = vpop.permute.xlu0 %1509
        %vm1511 = vcmask 310272
        %v1512 = vsel %vm1511, %v1508, %v1510
        %v1516 = vmul.f32 %v1504, %v1508
        %v1517 = vmul.f32 %v1505, %v1512
        %v1518 = vmul.f32 %v1506, %v1510
        %1522 = vrot.lane.b32.xlu0 %v1516, 90
        %v1523 = vpop.permute.xlu0 %1522
        %1524 = vrot.lane.b32.xlu0 %v1517, 90
        %v1525 = vpop.permute.xlu0 %1524
        %1526 = vrot.lane.b32.xlu0 %v1518, 90
        %v1527 = vpop.permute.xlu0 %1526
        %vm1528 = vcmask 736256
        %v1529 = vsel %vm1528, %v1523, %v1525
        %v1530 = vsel %vm1528, %v1525, %v1527
        %v1533 = vadd.f32 %v1494, %v1529
        %v1534 = vadd.f32 %v1495, %v1530
        %v1535 = vstv %s692
        %v1536 = vmul.f32 %v1535, %v560
        %v1537 = vmul.f32 %v1535, %v556
        %v1538 = vmul.f32 %v1535, %v561
        %v1539 = vstv %s741
        %v1540 = vmul.f32 %v1539, %v572
        %v1541 = vmul.f32 %v1539, %v568
        %v1542 = vmul.f32 %v1539, %v573
        %v1543 = vadd.f32 %v1536, %v1540
        %v1544 = vadd.f32 %v1537, %v1541
        %v1545 = vadd.f32 %v1538, %v1542
        %1546 = vrot.lane.b32.xlu0 %v609, 48
        %v1547 = vpop.permute.xlu0 %1546
        %1548 = vrot.lane.b32.xlu0 %v610, 48
        %v1549 = vpop.permute.xlu0 %1548
        %vm1550 = vcmask 392192
        %v1551 = vsel %vm1550, %v1547, %v1549
        %v1555 = vmul.f32 %v1543, %v1547
        %v1556 = vmul.f32 %v1544, %v1551
        %v1557 = vmul.f32 %v1545, %v1549
        %1561 = vrot.lane.b32.xlu0 %v1555, 80
        %v1562 = vpop.permute.xlu0 %1561
        %1563 = vrot.lane.b32.xlu0 %v1556, 80
        %v1564 = vpop.permute.xlu0 %1563
        %1565 = vrot.lane.b32.xlu0 %v1557, 80
        %v1566 = vpop.permute.xlu0 %1565
        %vm1567 = vcmask 654336
        %v1568 = vsel %vm1567, %v1562, %v1564
        %v1569 = vsel %vm1567, %v1564, %v1566
        %v1572 = vadd.f32 %v1533, %v1568
        %v1573 = vadd.f32 %v1534, %v1569
        %v1574 = vstv %s693
        %v1575 = vmul.f32 %v1574, %v560
        %v1576 = vmul.f32 %v1574, %v556
        %v1577 = vmul.f32 %v1574, %v561
        %v1578 = vstv %s742
        %v1579 = vmul.f32 %v1578, %v572
        %v1580 = vmul.f32 %v1578, %v568
        %v1581 = vmul.f32 %v1578, %v573
        %v1582 = vadd.f32 %v1575, %v1579
        %v1583 = vadd.f32 %v1576, %v1580
        %v1584 = vadd.f32 %v1577, %v1581
        %1585 = vrot.lane.b32.xlu0 %v621, 49
        %v1586 = vpop.permute.xlu0 %1585
        %1587 = vrot.lane.b32.xlu0 %v622, 49
        %v1588 = vpop.permute.xlu0 %1587
        %vm1589 = vcmask 400384
        %v1590 = vsel %vm1589, %v1586, %v1588
        %v1594 = vmul.f32 %v1582, %v1586
        %v1595 = vmul.f32 %v1583, %v1590
        %v1596 = vmul.f32 %v1584, %v1588
        %1600 = vrot.lane.b32.xlu0 %v1594, 79
        %v1601 = vpop.permute.xlu0 %1600
        %1602 = vrot.lane.b32.xlu0 %v1595, 79
        %v1603 = vpop.permute.xlu0 %1602
        %1604 = vrot.lane.b32.xlu0 %v1596, 79
        %v1605 = vpop.permute.xlu0 %1604
        %vm1606 = vcmask 646144
        %v1607 = vsel %vm1606, %v1601, %v1603
        %v1608 = vsel %vm1606, %v1603, %v1605
        %v1611 = vadd.f32 %v1572, %v1607
        %v1612 = vadd.f32 %v1573, %v1608
        %v1613 = vstv %s694
        %v1614 = vmul.f32 %v1613, %v560
        %v1615 = vmul.f32 %v1613, %v556
        %v1616 = vmul.f32 %v1613, %v561
        %v1617 = vstv %s743
        %v1618 = vmul.f32 %v1617, %v572
        %v1619 = vmul.f32 %v1617, %v568
        %v1620 = vmul.f32 %v1617, %v573
        %v1621 = vadd.f32 %v1614, %v1618
        %v1622 = vadd.f32 %v1615, %v1619
        %v1623 = vadd.f32 %v1616, %v1620
        %1624 = vrot.lane.b32.xlu0 %v633, 50
        %v1625 = vpop.permute.xlu0 %1624
        %1626 = vrot.lane.b32.xlu0 %v634, 50
        %v1627 = vpop.permute.xlu0 %1626
        %vm1628 = vcmask 408576
        %v1629 = vsel %vm1628, %v1625, %v1627
        %v1633 = vmul.f32 %v1621, %v1625
        %v1634 = vmul.f32 %v1622, %v1629
        %v1635 = vmul.f32 %v1623, %v1627
        %1639 = vrot.lane.b32.xlu0 %v1633, 78
        %v1640 = vpop.permute.xlu0 %1639
        %1641 = vrot.lane.b32.xlu0 %v1634, 78
        %v1642 = vpop.permute.xlu0 %1641
        %1643 = vrot.lane.b32.xlu0 %v1635, 78
        %v1644 = vpop.permute.xlu0 %1643
        %vm1645 = vcmask 637952
        %v1646 = vsel %vm1645, %v1640, %v1642
        %v1647 = vsel %vm1645, %v1642, %v1644
        %v1650 = vadd.f32 %v1611, %v1646
        %v1651 = vadd.f32 %v1612, %v1647
        %v1652 = vstv %s695
        %v1653 = vmul.f32 %v1652, %v560
        %v1654 = vmul.f32 %v1652, %v556
        %v1655 = vmul.f32 %v1652, %v561
        %v1656 = vstv %s744
        %v1657 = vmul.f32 %v1656, %v572
        %v1658 = vmul.f32 %v1656, %v568
        %v1659 = vmul.f32 %v1656, %v573
        %v1660 = vadd.f32 %v1653, %v1657
        %v1661 = vadd.f32 %v1654, %v1658
        %v1662 = vadd.f32 %v1655, %v1659
        %1666 = vrot.lane.b32.xlu0 %v1660, 77
        %v1667 = vpop.permute.xlu0 %1666
        %1668 = vrot.lane.b32.xlu0 %v1661, 77
        %v1669 = vpop.permute.xlu0 %1668
        %1670 = vrot.lane.b32.xlu0 %v1662, 77
        %v1671 = vpop.permute.xlu0 %1670
        %vm1672 = vcmask 629760
        %v1673 = vsel %vm1672, %v1667, %v1669
        %v1674 = vsel %vm1672, %v1669, %v1671
        %v1677 = vadd.f32 %v1650, %v1673
        %v1678 = vadd.f32 %v1651, %v1674
        %v1679 = vstv %s696
        %v1680 = vmul.f32 %v1679, %v560
        %v1681 = vmul.f32 %v1679, %v556
        %v1682 = vmul.f32 %v1679, %v561
        %v1683 = vstv %s745
        %v1684 = vmul.f32 %v1683, %v572
        %v1685 = vmul.f32 %v1683, %v568
        %v1686 = vmul.f32 %v1683, %v573
        %v1687 = vadd.f32 %v1680, %v1684
        %v1688 = vadd.f32 %v1681, %v1685
        %v1689 = vadd.f32 %v1682, %v1686
        %1690 = vrot.lane.b32.xlu0 %v645, 52
        %v1691 = vpop.permute.xlu0 %1690
        %1692 = vrot.lane.b32.xlu0 %v646, 52
        %v1693 = vpop.permute.xlu0 %1692
        %vm1694 = vcmask 424960
        %v1695 = vsel %vm1694, %v1691, %v1693
        %v1699 = vmul.f32 %v1687, %v1691
        %v1700 = vmul.f32 %v1688, %v1695
        %v1701 = vmul.f32 %v1689, %v1693
        %1705 = vrot.lane.b32.xlu0 %v1699, 76
        %v1706 = vpop.permute.xlu0 %1705
        %1707 = vrot.lane.b32.xlu0 %v1700, 76
        %v1708 = vpop.permute.xlu0 %1707
        %1709 = vrot.lane.b32.xlu0 %v1701, 76
        %v1710 = vpop.permute.xlu0 %1709
        %vm1711 = vcmask 621568
        %v1712 = vsel %vm1711, %v1706, %v1708
        %v1713 = vsel %vm1711, %v1708, %v1710
        %v1716 = vadd.f32 %v1677, %v1712
        %v1717 = vadd.f32 %v1678, %v1713
        %v1718 = vstv %s697
        %v1719 = vmul.f32 %v1718, %v560
        %v1720 = vmul.f32 %v1718, %v556
        %v1721 = vmul.f32 %v1718, %v561
        %v1722 = vstv %s746
        %v1723 = vmul.f32 %v1722, %v572
        %v1724 = vmul.f32 %v1722, %v568
        %v1725 = vmul.f32 %v1722, %v573
        %v1726 = vadd.f32 %v1719, %v1723
        %v1727 = vadd.f32 %v1720, %v1724
        %v1728 = vadd.f32 %v1721, %v1725
        %1729 = vrot.lane.b32.xlu0 %v657, 53
        %v1730 = vpop.permute.xlu0 %1729
        %1731 = vrot.lane.b32.xlu0 %v658, 53
        %v1732 = vpop.permute.xlu0 %1731
        %vm1733 = vcmask 433152
        %v1734 = vsel %vm1733, %v1730, %v1732
        %v1738 = vmul.f32 %v1726, %v1730
        %v1739 = vmul.f32 %v1727, %v1734
        %v1740 = vmul.f32 %v1728, %v1732
        %1744 = vrot.lane.b32.xlu0 %v1738, 75
        %v1745 = vpop.permute.xlu0 %1744
        %1746 = vrot.lane.b32.xlu0 %v1739, 75
        %v1747 = vpop.permute.xlu0 %1746
        %1748 = vrot.lane.b32.xlu0 %v1740, 75
        %v1749 = vpop.permute.xlu0 %1748
        %vm1750 = vcmask 613376
        %v1751 = vsel %vm1750, %v1745, %v1747
        %v1752 = vsel %vm1750, %v1747, %v1749
        %v1755 = vadd.f32 %v1716, %v1751
        %v1756 = vadd.f32 %v1717, %v1752
        %v1757 = vstv %s698
        %v1758 = vmul.f32 %v1757, %v560
        %v1759 = vmul.f32 %v1757, %v556
        %v1760 = vmul.f32 %v1757, %v561
        %v1761 = vstv %s747
        %v1762 = vmul.f32 %v1761, %v572
        %v1763 = vmul.f32 %v1761, %v568
        %v1764 = vmul.f32 %v1761, %v573
        %v1765 = vadd.f32 %v1758, %v1762
        %v1766 = vadd.f32 %v1759, %v1763
        %v1767 = vadd.f32 %v1760, %v1764
        %1768 = vrot.lane.b32.xlu0 %v669, 54
        %v1769 = vpop.permute.xlu0 %1768
        %1770 = vrot.lane.b32.xlu0 %v670, 54
        %v1771 = vpop.permute.xlu0 %1770
        %vm1772 = vcmask 441344
        %v1773 = vsel %vm1772, %v1769, %v1771
        %v1777 = vmul.f32 %v1765, %v1769
        %v1778 = vmul.f32 %v1766, %v1773
        %v1779 = vmul.f32 %v1767, %v1771
        %1783 = vrot.lane.b32.xlu0 %v1777, 74
        %v1784 = vpop.permute.xlu0 %1783
        %1785 = vrot.lane.b32.xlu0 %v1778, 74
        %v1786 = vpop.permute.xlu0 %1785
        %1787 = vrot.lane.b32.xlu0 %v1779, 74
        %v1788 = vpop.permute.xlu0 %1787
        %vm1789 = vcmask 605184
        %v1790 = vsel %vm1789, %v1784, %v1786
        %v1791 = vsel %vm1789, %v1786, %v1788
        %v1794 = vadd.f32 %v1755, %v1790
        %v1795 = vadd.f32 %v1756, %v1791
        %v1796 = vstv %s699
        %v1797 = vmul.f32 %v1796, %v560
        %v1798 = vmul.f32 %v1796, %v556
        %v1799 = vmul.f32 %v1796, %v561
        %v1800 = vstv %s748
        %v1801 = vmul.f32 %v1800, %v572
        %v1802 = vmul.f32 %v1800, %v568
        %v1803 = vmul.f32 %v1800, %v573
        %v1804 = vadd.f32 %v1797, %v1801
        %v1805 = vadd.f32 %v1798, %v1802
        %v1806 = vadd.f32 %v1799, %v1803
        %1807 = vrot.lane.b32.xlu0 %v609, 64
        %v1808 = vpop.permute.xlu0 %1807
        %1809 = vrot.lane.b32.xlu0 %v610, 64
        %v1810 = vpop.permute.xlu0 %1809
        %vm1811 = vcmask 523264
        %v1812 = vsel %vm1811, %v1808, %v1810
        %v1816 = vmul.f32 %v1804, %v1808
        %v1817 = vmul.f32 %v1805, %v1812
        %v1818 = vmul.f32 %v1806, %v1810
        %1822 = vrot.lane.b32.xlu0 %v1816, 64
        %v1823 = vpop.permute.xlu0 %1822
        %1824 = vrot.lane.b32.xlu0 %v1817, 64
        %v1825 = vpop.permute.xlu0 %1824
        %1826 = vrot.lane.b32.xlu0 %v1818, 64
        %v1827 = vpop.permute.xlu0 %1826
        %v1828 = vsel %vm1811, %v1823, %v1825
        %v1829 = vsel %vm1811, %v1825, %v1827
        %v1832 = vadd.f32 %v1794, %v1828
        %v1833 = vadd.f32 %v1795, %v1829
        %v1834 = vstv %s700
        %v1835 = vmul.f32 %v1834, %v560
        %v1836 = vmul.f32 %v1834, %v556
        %v1837 = vmul.f32 %v1834, %v561
        %v1838 = vstv %s749
        %v1839 = vmul.f32 %v1838, %v572
        %v1840 = vmul.f32 %v1838, %v568
        %v1841 = vmul.f32 %v1838, %v573
        %v1842 = vadd.f32 %v1835, %v1839
        %v1843 = vadd.f32 %v1836, %v1840
        %v1844 = vadd.f32 %v1837, %v1841
        %1845 = vrot.lane.b32.xlu0 %v621, 65
        %v1846 = vpop.permute.xlu0 %1845
        %1847 = vrot.lane.b32.xlu0 %v622, 65
        %v1848 = vpop.permute.xlu0 %1847
        %vm1849 = vcmask 531456
        %v1850 = vsel %vm1849, %v1846, %v1848
        %v1854 = vmul.f32 %v1842, %v1846
        %v1855 = vmul.f32 %v1843, %v1850
        %v1856 = vmul.f32 %v1844, %v1848
        %1860 = vrot.lane.b32.xlu0 %v1854, 63
        %v1861 = vpop.permute.xlu0 %1860
        %1862 = vrot.lane.b32.xlu0 %v1855, 63
        %v1863 = vpop.permute.xlu0 %1862
        %1864 = vrot.lane.b32.xlu0 %v1856, 63
        %v1865 = vpop.permute.xlu0 %1864
        %vm1866 = vcmask 515072
        %v1867 = vsel %vm1866, %v1861, %v1863
        %v1868 = vsel %vm1866, %v1863, %v1865
        %v1871 = vadd.f32 %v1832, %v1867
        %v1872 = vadd.f32 %v1833, %v1868
        %v1873 = vstv %s701
        %v1874 = vmul.f32 %v1873, %v560
        %v1875 = vmul.f32 %v1873, %v556
        %v1876 = vmul.f32 %v1873, %v561
        %v1877 = vstv %s750
        %v1878 = vmul.f32 %v1877, %v572
        %v1879 = vmul.f32 %v1877, %v568
        %v1880 = vmul.f32 %v1877, %v573
        %v1881 = vadd.f32 %v1874, %v1878
        %v1882 = vadd.f32 %v1875, %v1879
        %v1883 = vadd.f32 %v1876, %v1880
        %1884 = vrot.lane.b32.xlu0 %v633, 66
        %v1885 = vpop.permute.xlu0 %1884
        %1886 = vrot.lane.b32.xlu0 %v634, 66
        %v1887 = vpop.permute.xlu0 %1886
        %vm1888 = vcmask 539648
        %v1889 = vsel %vm1888, %v1885, %v1887
        %v1893 = vmul.f32 %v1881, %v1885
        %v1894 = vmul.f32 %v1882, %v1889
        %v1895 = vmul.f32 %v1883, %v1887
        %1899 = vrot.lane.b32.xlu0 %v1893, 62
        %v1900 = vpop.permute.xlu0 %1899
        %1901 = vrot.lane.b32.xlu0 %v1894, 62
        %v1902 = vpop.permute.xlu0 %1901
        %1903 = vrot.lane.b32.xlu0 %v1895, 62
        %v1904 = vpop.permute.xlu0 %1903
        %vm1905 = vcmask 506880
        %v1906 = vsel %vm1905, %v1900, %v1902
        %v1907 = vsel %vm1905, %v1902, %v1904
        %v1910 = vadd.f32 %v1871, %v1906
        %v1911 = vadd.f32 %v1872, %v1907
        %v1912 = vstv %s702
        %v1913 = vmul.f32 %v1912, %v560
        %v1914 = vmul.f32 %v1912, %v556
        %v1915 = vmul.f32 %v1912, %v561
        %v1916 = vstv %s751
        %v1917 = vmul.f32 %v1916, %v572
        %v1918 = vmul.f32 %v1916, %v568
        %v1919 = vmul.f32 %v1916, %v573
        %v1920 = vadd.f32 %v1913, %v1917
        %v1921 = vadd.f32 %v1914, %v1918
        %v1922 = vadd.f32 %v1915, %v1919
        %1926 = vrot.lane.b32.xlu0 %v1920, 61
        %v1927 = vpop.permute.xlu0 %1926
        %1928 = vrot.lane.b32.xlu0 %v1921, 61
        %v1929 = vpop.permute.xlu0 %1928
        %1930 = vrot.lane.b32.xlu0 %v1922, 61
        %v1931 = vpop.permute.xlu0 %1930
        %vm1932 = vcmask 498688
        %v1933 = vsel %vm1932, %v1927, %v1929
        %v1934 = vsel %vm1932, %v1929, %v1931
        %v1937 = vadd.f32 %v1910, %v1933
        %v1938 = vadd.f32 %v1911, %v1934
        %v1939 = vstv %s703
        %v1940 = vmul.f32 %v1939, %v560
        %v1941 = vmul.f32 %v1939, %v556
        %v1942 = vmul.f32 %v1939, %v561
        %v1943 = vstv %s752
        %v1944 = vmul.f32 %v1943, %v572
        %v1945 = vmul.f32 %v1943, %v568
        %v1946 = vmul.f32 %v1943, %v573
        %v1947 = vadd.f32 %v1940, %v1944
        %v1948 = vadd.f32 %v1941, %v1945
        %v1949 = vadd.f32 %v1942, %v1946
        %1950 = vrot.lane.b32.xlu0 %v645, 68
        %v1951 = vpop.permute.xlu0 %1950
        %1952 = vrot.lane.b32.xlu0 %v646, 68
        %v1953 = vpop.permute.xlu0 %1952
        %vm1954 = vcmask 556032
        %v1955 = vsel %vm1954, %v1951, %v1953
        %v1959 = vmul.f32 %v1947, %v1951
        %v1960 = vmul.f32 %v1948, %v1955
        %v1961 = vmul.f32 %v1949, %v1953
        %1965 = vrot.lane.b32.xlu0 %v1959, 60
        %v1966 = vpop.permute.xlu0 %1965
        %1967 = vrot.lane.b32.xlu0 %v1960, 60
        %v1968 = vpop.permute.xlu0 %1967
        %1969 = vrot.lane.b32.xlu0 %v1961, 60
        %v1970 = vpop.permute.xlu0 %1969
        %vm1971 = vcmask 490496
        %v1972 = vsel %vm1971, %v1966, %v1968
        %v1973 = vsel %vm1971, %v1968, %v1970
        %v1976 = vadd.f32 %v1937, %v1972
        %v1977 = vadd.f32 %v1938, %v1973
        %v1978 = vstv %s704
        %v1979 = vmul.f32 %v1978, %v560
        %v1980 = vmul.f32 %v1978, %v556
        %v1981 = vmul.f32 %v1978, %v561
        %v1982 = vstv %s753
        %v1983 = vmul.f32 %v1982, %v572
        %v1984 = vmul.f32 %v1982, %v568
        %v1985 = vmul.f32 %v1982, %v573
        %v1986 = vadd.f32 %v1979, %v1983
        %v1987 = vadd.f32 %v1980, %v1984
        %v1988 = vadd.f32 %v1981, %v1985
        %1989 = vrot.lane.b32.xlu0 %v657, 69
        %v1990 = vpop.permute.xlu0 %1989
        %1991 = vrot.lane.b32.xlu0 %v658, 69
        %v1992 = vpop.permute.xlu0 %1991
        %vm1993 = vcmask 564224
        %v1994 = vsel %vm1993, %v1990, %v1992
        %v1998 = vmul.f32 %v1986, %v1990
        %v1999 = vmul.f32 %v1987, %v1994
        %v2000 = vmul.f32 %v1988, %v1992
        %2004 = vrot.lane.b32.xlu0 %v1998, 59
        %v2005 = vpop.permute.xlu0 %2004
        %2006 = vrot.lane.b32.xlu0 %v1999, 59
        %v2007 = vpop.permute.xlu0 %2006
        %2008 = vrot.lane.b32.xlu0 %v2000, 59
        %v2009 = vpop.permute.xlu0 %2008
        %vm2010 = vcmask 482304
        %v2011 = vsel %vm2010, %v2005, %v2007
        %v2012 = vsel %vm2010, %v2007, %v2009
        %v2015 = vadd.f32 %v1976, %v2011
        %v2016 = vadd.f32 %v1977, %v2012
        %v2017 = vstv %s705
        %v2018 = vmul.f32 %v2017, %v560
        %v2019 = vmul.f32 %v2017, %v556
        %v2020 = vmul.f32 %v2017, %v561
        %v2021 = vstv %s754
        %v2022 = vmul.f32 %v2021, %v572
        %v2023 = vmul.f32 %v2021, %v568
        %v2024 = vmul.f32 %v2021, %v573
        %v2025 = vadd.f32 %v2018, %v2022
        %v2026 = vadd.f32 %v2019, %v2023
        %v2027 = vadd.f32 %v2020, %v2024
        %2028 = vrot.lane.b32.xlu0 %v669, 70
        %v2029 = vpop.permute.xlu0 %2028
        %2030 = vrot.lane.b32.xlu0 %v670, 70
        %v2031 = vpop.permute.xlu0 %2030
        %vm2032 = vcmask 572416
        %v2033 = vsel %vm2032, %v2029, %v2031
        %v2037 = vmul.f32 %v2025, %v2029
        %v2038 = vmul.f32 %v2026, %v2033
        %v2039 = vmul.f32 %v2027, %v2031
        %2043 = vrot.lane.b32.xlu0 %v2037, 58
        %v2044 = vpop.permute.xlu0 %2043
        %2045 = vrot.lane.b32.xlu0 %v2038, 58
        %v2046 = vpop.permute.xlu0 %2045
        %2047 = vrot.lane.b32.xlu0 %v2039, 58
        %v2048 = vpop.permute.xlu0 %2047
        %vm2049 = vcmask 474112
        %v2050 = vsel %vm2049, %v2044, %v2046
        %v2051 = vsel %vm2049, %v2046, %v2048
        %v2054 = vadd.f32 %v2015, %v2050
        %v2055 = vadd.f32 %v2016, %v2051
        %v2056 = vstv %s706
        %v2057 = vmul.f32 %v2056, %v560
        %v2058 = vmul.f32 %v2056, %v556
        %v2059 = vmul.f32 %v2056, %v561
        %v2060 = vstv %s755
        %v2061 = vmul.f32 %v2060, %v572
        %v2062 = vmul.f32 %v2060, %v568
        %v2063 = vmul.f32 %v2060, %v573
        %v2064 = vadd.f32 %v2057, %v2061
        %v2065 = vadd.f32 %v2058, %v2062
        %v2066 = vadd.f32 %v2059, %v2063
        %2067 = vrot.lane.b32.xlu0 %v609, 80
        %v2068 = vpop.permute.xlu0 %2067
        %2069 = vrot.lane.b32.xlu0 %v610, 80
        %v2070 = vpop.permute.xlu0 %2069
        %v2071 = vsel %vm1567, %v2068, %v2070
        %v2075 = vmul.f32 %v2064, %v2068
        %v2076 = vmul.f32 %v2065, %v2071
        %v2077 = vmul.f32 %v2066, %v2070
        %2081 = vrot.lane.b32.xlu0 %v2075, 48
        %v2082 = vpop.permute.xlu0 %2081
        %2083 = vrot.lane.b32.xlu0 %v2076, 48
        %v2084 = vpop.permute.xlu0 %2083
        %2085 = vrot.lane.b32.xlu0 %v2077, 48
        %v2086 = vpop.permute.xlu0 %2085
        %v2087 = vsel %vm1550, %v2082, %v2084
        %v2088 = vsel %vm1550, %v2084, %v2086
        %v2091 = vadd.f32 %v2054, %v2087
        %v2092 = vadd.f32 %v2055, %v2088
        %v2093 = vstv %s707
        %v2094 = vmul.f32 %v2093, %v560
        %v2095 = vmul.f32 %v2093, %v556
        %v2096 = vmul.f32 %v2093, %v561
        %v2097 = vstv %s756
        %v2098 = vmul.f32 %v2097, %v572
        %v2099 = vmul.f32 %v2097, %v568
        %v2100 = vmul.f32 %v2097, %v573
        %v2101 = vadd.f32 %v2094, %v2098
        %v2102 = vadd.f32 %v2095, %v2099
        %v2103 = vadd.f32 %v2096, %v2100
        %2104 = vrot.lane.b32.xlu0 %v621, 81
        %v2105 = vpop.permute.xlu0 %2104
        %2106 = vrot.lane.b32.xlu0 %v622, 81
        %v2107 = vpop.permute.xlu0 %2106
        %vm2108 = vcmask 662528
        %v2109 = vsel %vm2108, %v2105, %v2107
        %v2113 = vmul.f32 %v2101, %v2105
        %v2114 = vmul.f32 %v2102, %v2109
        %v2115 = vmul.f32 %v2103, %v2107
        %2119 = vrot.lane.b32.xlu0 %v2113, 47
        %v2120 = vpop.permute.xlu0 %2119
        %2121 = vrot.lane.b32.xlu0 %v2114, 47
        %v2122 = vpop.permute.xlu0 %2121
        %2123 = vrot.lane.b32.xlu0 %v2115, 47
        %v2124 = vpop.permute.xlu0 %2123
        %vm2125 = vcmask 384000
        %v2126 = vsel %vm2125, %v2120, %v2122
        %v2127 = vsel %vm2125, %v2122, %v2124
        %v2130 = vadd.f32 %v2091, %v2126
        %v2131 = vadd.f32 %v2092, %v2127
        %v2132 = vstv %s708
        %v2133 = vmul.f32 %v2132, %v560
        %v2134 = vmul.f32 %v2132, %v556
        %v2135 = vmul.f32 %v2132, %v561
        %v2136 = vstv %s757
        %v2137 = vmul.f32 %v2136, %v572
        %v2138 = vmul.f32 %v2136, %v568
        %v2139 = vmul.f32 %v2136, %v573
        %v2140 = vadd.f32 %v2133, %v2137
        %v2141 = vadd.f32 %v2134, %v2138
        %v2142 = vadd.f32 %v2135, %v2139
        %2143 = vrot.lane.b32.xlu0 %v633, 82
        %v2144 = vpop.permute.xlu0 %2143
        %2145 = vrot.lane.b32.xlu0 %v634, 82
        %v2146 = vpop.permute.xlu0 %2145
        %vm2147 = vcmask 670720
        %v2148 = vsel %vm2147, %v2144, %v2146
        %v2152 = vmul.f32 %v2140, %v2144
        %v2153 = vmul.f32 %v2141, %v2148
        %v2154 = vmul.f32 %v2142, %v2146
        %2158 = vrot.lane.b32.xlu0 %v2152, 46
        %v2159 = vpop.permute.xlu0 %2158
        %2160 = vrot.lane.b32.xlu0 %v2153, 46
        %v2161 = vpop.permute.xlu0 %2160
        %2162 = vrot.lane.b32.xlu0 %v2154, 46
        %v2163 = vpop.permute.xlu0 %2162
        %vm2164 = vcmask 375808
        %v2165 = vsel %vm2164, %v2159, %v2161
        %v2166 = vsel %vm2164, %v2161, %v2163
        %v2169 = vadd.f32 %v2130, %v2165
        %v2170 = vadd.f32 %v2131, %v2166
        %v2171 = vstv %s709
        %v2172 = vmul.f32 %v2171, %v560
        %v2173 = vmul.f32 %v2171, %v556
        %v2174 = vmul.f32 %v2171, %v561
        %v2175 = vstv %s758
        %v2176 = vmul.f32 %v2175, %v572
        %v2177 = vmul.f32 %v2175, %v568
        %v2178 = vmul.f32 %v2175, %v573
        %v2179 = vadd.f32 %v2172, %v2176
        %v2180 = vadd.f32 %v2173, %v2177
        %v2181 = vadd.f32 %v2174, %v2178
        %2185 = vrot.lane.b32.xlu0 %v2179, 45
        %v2186 = vpop.permute.xlu0 %2185
        %2187 = vrot.lane.b32.xlu0 %v2180, 45
        %v2188 = vpop.permute.xlu0 %2187
        %2189 = vrot.lane.b32.xlu0 %v2181, 45
        %v2190 = vpop.permute.xlu0 %2189
        %vm2191 = vcmask 367616
        %v2192 = vsel %vm2191, %v2186, %v2188
        %v2193 = vsel %vm2191, %v2188, %v2190
        %v2196 = vadd.f32 %v2169, %v2192
        %v2197 = vadd.f32 %v2170, %v2193
        %v2198 = vstv %s710
        %v2199 = vmul.f32 %v2198, %v560
        %v2200 = vmul.f32 %v2198, %v556
        %v2201 = vmul.f32 %v2198, %v561
        %v2202 = vstv %s759
        %v2203 = vmul.f32 %v2202, %v572
        %v2204 = vmul.f32 %v2202, %v568
        %v2205 = vmul.f32 %v2202, %v573
        %v2206 = vadd.f32 %v2199, %v2203
        %v2207 = vadd.f32 %v2200, %v2204
        %v2208 = vadd.f32 %v2201, %v2205
        %2209 = vrot.lane.b32.xlu0 %v645, 84
        %v2210 = vpop.permute.xlu0 %2209
        %2211 = vrot.lane.b32.xlu0 %v646, 84
        %v2212 = vpop.permute.xlu0 %2211
        %vm2213 = vcmask 687104
        %v2214 = vsel %vm2213, %v2210, %v2212
        %v2218 = vmul.f32 %v2206, %v2210
        %v2219 = vmul.f32 %v2207, %v2214
        %v2220 = vmul.f32 %v2208, %v2212
        %2224 = vrot.lane.b32.xlu0 %v2218, 44
        %v2225 = vpop.permute.xlu0 %2224
        %2226 = vrot.lane.b32.xlu0 %v2219, 44
        %v2227 = vpop.permute.xlu0 %2226
        %2228 = vrot.lane.b32.xlu0 %v2220, 44
        %v2229 = vpop.permute.xlu0 %2228
        %vm2230 = vcmask 359424
        %v2231 = vsel %vm2230, %v2225, %v2227
        %v2232 = vsel %vm2230, %v2227, %v2229
        %v2235 = vadd.f32 %v2196, %v2231
        %v2236 = vadd.f32 %v2197, %v2232
        %v2237 = vstv %s711
        %v2238 = vmul.f32 %v2237, %v560
        %v2239 = vmul.f32 %v2237, %v556
        %v2240 = vmul.f32 %v2237, %v561
        %v2241 = vstv %s760
        %v2242 = vmul.f32 %v2241, %v572
        %v2243 = vmul.f32 %v2241, %v568
        %v2244 = vmul.f32 %v2241, %v573
        %v2245 = vadd.f32 %v2238, %v2242
        %v2246 = vadd.f32 %v2239, %v2243
        %v2247 = vadd.f32 %v2240, %v2244
        %2248 = vrot.lane.b32.xlu0 %v657, 85
        %v2249 = vpop.permute.xlu0 %2248
        %2250 = vrot.lane.b32.xlu0 %v658, 85
        %v2251 = vpop.permute.xlu0 %2250
        %vm2252 = vcmask 695296
        %v2253 = vsel %vm2252, %v2249, %v2251
        %v2257 = vmul.f32 %v2245, %v2249
        %v2258 = vmul.f32 %v2246, %v2253
        %v2259 = vmul.f32 %v2247, %v2251
        %2263 = vrot.lane.b32.xlu0 %v2257, 43
        %v2264 = vpop.permute.xlu0 %2263
        %2265 = vrot.lane.b32.xlu0 %v2258, 43
        %v2266 = vpop.permute.xlu0 %2265
        %2267 = vrot.lane.b32.xlu0 %v2259, 43
        %v2268 = vpop.permute.xlu0 %2267
        %vm2269 = vcmask 351232
        %v2270 = vsel %vm2269, %v2264, %v2266
        %v2271 = vsel %vm2269, %v2266, %v2268
        %v2274 = vadd.f32 %v2235, %v2270
        %v2275 = vadd.f32 %v2236, %v2271
        %v2276 = vstv %s712
        %v2277 = vmul.f32 %v2276, %v560
        %v2278 = vmul.f32 %v2276, %v556
        %v2279 = vmul.f32 %v2276, %v561
        %v2280 = vstv %s761
        %v2281 = vmul.f32 %v2280, %v572
        %v2282 = vmul.f32 %v2280, %v568
        %v2283 = vmul.f32 %v2280, %v573
        %v2284 = vadd.f32 %v2277, %v2281
        %v2285 = vadd.f32 %v2278, %v2282
        %v2286 = vadd.f32 %v2279, %v2283
        %2287 = vrot.lane.b32.xlu0 %v669, 86
        %v2288 = vpop.permute.xlu0 %2287
        %2289 = vrot.lane.b32.xlu0 %v670, 86
        %v2290 = vpop.permute.xlu0 %2289
        %vm2291 = vcmask 703488
        %v2292 = vsel %vm2291, %v2288, %v2290
        %v2296 = vmul.f32 %v2284, %v2288
        %v2297 = vmul.f32 %v2285, %v2292
        %v2298 = vmul.f32 %v2286, %v2290
        %2302 = vrot.lane.b32.xlu0 %v2296, 42
        %v2303 = vpop.permute.xlu0 %2302
        %2304 = vrot.lane.b32.xlu0 %v2297, 42
        %v2305 = vpop.permute.xlu0 %2304
        %2306 = vrot.lane.b32.xlu0 %v2298, 42
        %v2307 = vpop.permute.xlu0 %2306
        %vm2308 = vcmask 343040
        %v2309 = vsel %vm2308, %v2303, %v2305
        %v2310 = vsel %vm2308, %v2305, %v2307
        %v2313 = vadd.f32 %v2274, %v2309
        %v2314 = vadd.f32 %v2275, %v2310
        %v2315 = vstv %s713
        %v2316 = vmul.f32 %v2315, %v560
        %v2317 = vmul.f32 %v2315, %v556
        %v2318 = vmul.f32 %v2315, %v561
        %v2319 = vstv %s762
        %v2320 = vmul.f32 %v2319, %v572
        %v2321 = vmul.f32 %v2319, %v568
        %v2322 = vmul.f32 %v2319, %v573
        %v2323 = vadd.f32 %v2316, %v2320
        %v2324 = vadd.f32 %v2317, %v2321
        %v2325 = vadd.f32 %v2318, %v2322
        %2326 = vrot.lane.b32.xlu0 %v609, 96
        %v2327 = vpop.permute.xlu0 %2326
        %2328 = vrot.lane.b32.xlu0 %v610, 96
        %v2329 = vpop.permute.xlu0 %2328
        %v2330 = vsel %vm1306, %v2327, %v2329
        %v2334 = vmul.f32 %v2323, %v2327
        %v2335 = vmul.f32 %v2324, %v2330
        %v2336 = vmul.f32 %v2325, %v2329
        %2340 = vrot.lane.b32.xlu0 %v2334, 32
        %v2341 = vpop.permute.xlu0 %2340
        %2342 = vrot.lane.b32.xlu0 %v2335, 32
        %v2343 = vpop.permute.xlu0 %2342
        %2344 = vrot.lane.b32.xlu0 %v2336, 32
        %v2345 = vpop.permute.xlu0 %2344
        %v2346 = vsel %vm371, %v2341, %v2343
        %v2347 = vsel %vm371, %v2343, %v2345
        %v2350 = vadd.f32 %v2313, %v2346
        %v2351 = vadd.f32 %v2314, %v2347
        %v2352 = vstv %s714
        %v2353 = vmul.f32 %v2352, %v560
        %v2354 = vmul.f32 %v2352, %v556
        %v2355 = vmul.f32 %v2352, %v561
        %v2356 = vstv %s763
        %v2357 = vmul.f32 %v2356, %v572
        %v2358 = vmul.f32 %v2356, %v568
        %v2359 = vmul.f32 %v2356, %v573
        %v2360 = vadd.f32 %v2353, %v2357
        %v2361 = vadd.f32 %v2354, %v2358
        %v2362 = vadd.f32 %v2355, %v2359
        %2363 = vrot.lane.b32.xlu0 %v621, 97
        %v2364 = vpop.permute.xlu0 %2363
        %2365 = vrot.lane.b32.xlu0 %v622, 97
        %v2366 = vpop.permute.xlu0 %2365
        %vm2367 = vcmask 793600
        %v2368 = vsel %vm2367, %v2364, %v2366
        %v2372 = vmul.f32 %v2360, %v2364
        %v2373 = vmul.f32 %v2361, %v2368
        %v2374 = vmul.f32 %v2362, %v2366
        %2378 = vrot.lane.b32.xlu0 %v2372, 31
        %v2379 = vpop.permute.xlu0 %2378
        %2380 = vrot.lane.b32.xlu0 %v2373, 31
        %v2381 = vpop.permute.xlu0 %2380
        %2382 = vrot.lane.b32.xlu0 %v2374, 31
        %v2383 = vpop.permute.xlu0 %2382
        %vm2384 = vcmask 252928
        %v2385 = vsel %vm2384, %v2379, %v2381
        %v2386 = vsel %vm2384, %v2381, %v2383
        %v2389 = vadd.f32 %v2350, %v2385
        %v2390 = vadd.f32 %v2351, %v2386
        %v2391 = vstv %s715
        %v2392 = vmul.f32 %v2391, %v560
        %v2393 = vmul.f32 %v2391, %v556
        %v2394 = vmul.f32 %v2391, %v561
        %v2395 = vstv %s764
        %v2396 = vmul.f32 %v2395, %v572
        %v2397 = vmul.f32 %v2395, %v568
        %v2398 = vmul.f32 %v2395, %v573
        %v2399 = vadd.f32 %v2392, %v2396
        %v2400 = vadd.f32 %v2393, %v2397
        %v2401 = vadd.f32 %v2394, %v2398
        %2402 = vrot.lane.b32.xlu0 %v633, 98
        %v2403 = vpop.permute.xlu0 %2402
        %2404 = vrot.lane.b32.xlu0 %v634, 98
        %v2405 = vpop.permute.xlu0 %2404
        %vm2406 = vcmask 801792
        %v2407 = vsel %vm2406, %v2403, %v2405
        %v2411 = vmul.f32 %v2399, %v2403
        %v2412 = vmul.f32 %v2400, %v2407
        %v2413 = vmul.f32 %v2401, %v2405
        %2417 = vrot.lane.b32.xlu0 %v2411, 30
        %v2418 = vpop.permute.xlu0 %2417
        %2419 = vrot.lane.b32.xlu0 %v2412, 30
        %v2420 = vpop.permute.xlu0 %2419
        %2421 = vrot.lane.b32.xlu0 %v2413, 30
        %v2422 = vpop.permute.xlu0 %2421
        %vm2423 = vcmask 244736
        %v2424 = vsel %vm2423, %v2418, %v2420
        %v2425 = vsel %vm2423, %v2420, %v2422
        %v2428 = vadd.f32 %v2389, %v2424
        %v2429 = vadd.f32 %v2390, %v2425
        %v2430 = vstv %s716
        %v2431 = vmul.f32 %v2430, %v560
        %v2432 = vmul.f32 %v2430, %v556
        %v2433 = vmul.f32 %v2430, %v561
        %v2434 = vstv %s765
        %v2435 = vmul.f32 %v2434, %v572
        %v2436 = vmul.f32 %v2434, %v568
        %v2437 = vmul.f32 %v2434, %v573
        %v2438 = vadd.f32 %v2431, %v2435
        %v2439 = vadd.f32 %v2432, %v2436
        %v2440 = vadd.f32 %v2433, %v2437
        %2444 = vrot.lane.b32.xlu0 %v2438, 29
        %v2445 = vpop.permute.xlu0 %2444
        %2446 = vrot.lane.b32.xlu0 %v2439, 29
        %v2447 = vpop.permute.xlu0 %2446
        %2448 = vrot.lane.b32.xlu0 %v2440, 29
        %v2449 = vpop.permute.xlu0 %2448
        %vm2450 = vcmask 236544
        %v2451 = vsel %vm2450, %v2445, %v2447
        %v2452 = vsel %vm2450, %v2447, %v2449
        %v2455 = vadd.f32 %v2428, %v2451
        %v2456 = vadd.f32 %v2429, %v2452
        %v2457 = vstv %s717
        %v2458 = vmul.f32 %v2457, %v560
        %v2459 = vmul.f32 %v2457, %v556
        %v2460 = vmul.f32 %v2457, %v561
        %v2461 = vstv %s766
        %v2462 = vmul.f32 %v2461, %v572
        %v2463 = vmul.f32 %v2461, %v568
        %v2464 = vmul.f32 %v2461, %v573
        %v2465 = vadd.f32 %v2458, %v2462
        %v2466 = vadd.f32 %v2459, %v2463
        %v2467 = vadd.f32 %v2460, %v2464
        %2468 = vrot.lane.b32.xlu0 %v645, 100
        %v2469 = vpop.permute.xlu0 %2468
        %2470 = vrot.lane.b32.xlu0 %v646, 100
        %v2471 = vpop.permute.xlu0 %2470
        %vm2472 = vcmask 818176
        %v2473 = vsel %vm2472, %v2469, %v2471
        %v2477 = vmul.f32 %v2465, %v2469
        %v2478 = vmul.f32 %v2466, %v2473
        %v2479 = vmul.f32 %v2467, %v2471
        %2483 = vrot.lane.b32.xlu0 %v2477, 28
        %v2484 = vpop.permute.xlu0 %2483
        %2485 = vrot.lane.b32.xlu0 %v2478, 28
        %v2486 = vpop.permute.xlu0 %2485
        %2487 = vrot.lane.b32.xlu0 %v2479, 28
        %v2488 = vpop.permute.xlu0 %2487
        %vm2489 = vcmask 228352
        %v2490 = vsel %vm2489, %v2484, %v2486
        %v2491 = vsel %vm2489, %v2486, %v2488
        %v2494 = vadd.f32 %v2455, %v2490
        %v2495 = vadd.f32 %v2456, %v2491
        %v2496 = vstv %s718
        %v2497 = vmul.f32 %v2496, %v560
        %v2498 = vmul.f32 %v2496, %v556
        %v2499 = vmul.f32 %v2496, %v561
        %v2500 = vstv %s767
        %v2501 = vmul.f32 %v2500, %v572
        %v2502 = vmul.f32 %v2500, %v568
        %v2503 = vmul.f32 %v2500, %v573
        %v2504 = vadd.f32 %v2497, %v2501
        %v2505 = vadd.f32 %v2498, %v2502
        %v2506 = vadd.f32 %v2499, %v2503
        %2507 = vrot.lane.b32.xlu0 %v657, 101
        %v2508 = vpop.permute.xlu0 %2507
        %2509 = vrot.lane.b32.xlu0 %v658, 101
        %v2510 = vpop.permute.xlu0 %2509
        %vm2511 = vcmask 826368
        %v2512 = vsel %vm2511, %v2508, %v2510
        %v2516 = vmul.f32 %v2504, %v2508
        %v2517 = vmul.f32 %v2505, %v2512
        %v2518 = vmul.f32 %v2506, %v2510
        %2522 = vrot.lane.b32.xlu0 %v2516, 27
        %v2523 = vpop.permute.xlu0 %2522
        %2524 = vrot.lane.b32.xlu0 %v2517, 27
        %v2525 = vpop.permute.xlu0 %2524
        %2526 = vrot.lane.b32.xlu0 %v2518, 27
        %v2527 = vpop.permute.xlu0 %2526
        %vm2528 = vcmask 220160
        %v2529 = vsel %vm2528, %v2523, %v2525
        %v2530 = vsel %vm2528, %v2525, %v2527
        %v2533 = vadd.f32 %v2494, %v2529
        %v2534 = vadd.f32 %v2495, %v2530
        %v2535 = vstv %s719
        %v2536 = vmul.f32 %v2535, %v560
        %v2537 = vmul.f32 %v2535, %v556
        %v2538 = vmul.f32 %v2535, %v561
        %v2539 = vstv %s768
        %v2540 = vmul.f32 %v2539, %v572
        %v2541 = vmul.f32 %v2539, %v568
        %v2542 = vmul.f32 %v2539, %v573
        %v2543 = vadd.f32 %v2536, %v2540
        %v2544 = vadd.f32 %v2537, %v2541
        %v2545 = vadd.f32 %v2538, %v2542
        %2546 = vrot.lane.b32.xlu0 %v669, 102
        %v2547 = vpop.permute.xlu0 %2546
        %2548 = vrot.lane.b32.xlu0 %v670, 102
        %v2549 = vpop.permute.xlu0 %2548
        %vm2550 = vcmask 834560
        %v2551 = vsel %vm2550, %v2547, %v2549
        %v2555 = vmul.f32 %v2543, %v2547
        %v2556 = vmul.f32 %v2544, %v2551
        %v2557 = vmul.f32 %v2545, %v2549
        %2561 = vrot.lane.b32.xlu0 %v2555, 26
        %v2562 = vpop.permute.xlu0 %2561
        %2563 = vrot.lane.b32.xlu0 %v2556, 26
        %v2564 = vpop.permute.xlu0 %2563
        %2565 = vrot.lane.b32.xlu0 %v2557, 26
        %v2566 = vpop.permute.xlu0 %2565
        %vm2567 = vcmask 211968
        %v2568 = vsel %vm2567, %v2562, %v2564
        %v2569 = vsel %vm2567, %v2564, %v2566
        %v2572 = vadd.f32 %v2533, %v2568
        %v2573 = vadd.f32 %v2534, %v2569
        %v2574 = vxor.u32 %v2572, 2147483648
        %v2575 = vxor.u32 %v2573, 2147483648
        %v2576 = vmul.f32 %v2574, 1.442695
        %v2577 = vpow.pop %v2576
        %v2578 = vmul.f32 %v2575, 1.442695
        %v2579 = vpow.pop %v2578
        %v2580 = vadd.f32 %v2577, 1.0
        %v2581 = vadd.f32 %v2579, 1.0
        %v2582 = vrcp.pop %v2580
        %v2583 = vmul.f32 %v2580, %v2582
        %v2584 = vsub.f32 1.0, %v2583
        %v2585 = vmul.f32 %v2582, %v2584
        %v2586 = vadd.f32 %v2582, %v2585
        %vm2587 = vweird.f32 %v2580
        %vm2588 = vweird.f32 %v2582
        %vm2589 = vmor %vm2587, %vm2588
        %v2590 = vsel %vm2589, %v2582, %v2586
        %v2591 = vand.u32 2147483647, %v2580
        %vm2592 = vcmp.eq.f32.partialorder %v2591, 8.507059e+37
        %v2593 = vand.u32 %v2580, 2147483648
        %v2594 = vor.u32 1.1754944e-38, %v2593
        %v2595 = vsel %vm2592, %v2594, %v2590
        %v2596 = vmul.f32 1.0, %v2595
        %v2597 = vrcp.pop %v2581
        %v2598 = vmul.f32 %v2581, %v2597
        %v2599 = vsub.f32 1.0, %v2598
        %v2600 = vmul.f32 %v2597, %v2599
        %v2601 = vadd.f32 %v2597, %v2600
        %vm2602 = vweird.f32 %v2581
        %vm2603 = vweird.f32 %v2597
        %vm2604 = vmor %vm2602, %vm2603
        %v2605 = vsel %vm2604, %v2597, %v2601
        %v2606 = vand.u32 2147483647, %v2581
        %vm2607 = vcmp.eq.f32.partialorder %v2606, 8.507059e+37
        %v2608 = vand.u32 %v2581, 2147483648
        %v2609 = vor.u32 1.1754944e-38, %v2608
        %v2610 = vsel %vm2607, %v2609, %v2605
        %v2611 = vmul.f32 1.0, %v2610
        %v2612 = vperm.slane %v2596, 0
        %v2613 = vperm.slane %v2611, 0
        %v2614 = vmul.f32 %v496, %v2612
        %v2615 = vmul.f32 %v497, %v2613
        %v2616 = vmul.f32 %v498, %v2612
        %v2617 = vmul.f32 %v499, %v2613
        %v2618 = vmul.f32 %v500, %v2612
        %v2619 = vmul.f32 %v501, %v2613
        %v2620 = vmul.f32 %v502, %v2612
        %v2621 = vmul.f32 %v503, %v2613
        %2622 = vst [vmem:[%s285] sm:$0xff] %v2614
        %2623 = vst [vmem:[%s285 + $0x8] sm:$0xff] %v2615
        %2624 = vst [vmem:[%s285 + $0x10] sm:$0xff] %v2616
        %2625 = vst [vmem:[%s285 + $0x18] sm:$0xff] %v2617
        %2626 = vst [vmem:[%s285 + $0x20] sm:$0xff] %v2618
        %2627 = vst [vmem:[%s285 + $0x28] sm:$0xff] %v2619
        %2628 = vst [vmem:[%s285 + $0x30] sm:$0xff] %v2620
        %2629 = vst [vmem:[%s285 + $0x38] sm:$0xff] %v2621
        %s2630 = sand.u32 %s163, 1
        %s2631 = scalar_lea.sflag [#allocation4], %s2630
        %s2632 = sand.u32 %s163, 1
        %s2633 = smul.addr %s2632, 64
        %s2634 = scalar_lea.vmem [#allocation7], %s2633
        // Predicated region
        $region53: #{tpu_custom_call.1} parent=43 // pred_check
          %p2635 = pneg %p173
        $region54: #{tpu_custom_call.1} parent=43 // pred_check_branch
          %2637 = sbr.rel (%p2635) target = $region56
        $region55: #{tpu_custom_call.1} parent=43 // pred_region
          %2639 = vsyncadd %s2631, 0
          %s2640 = smul.addr %s24, 8
          %s2641 = smul.addr %s2640, 8
          %s2642 = scalar_lea.hbm %s6, %s2641
          %s2643 = sshll.u32 %s2634, 4
          %s2644 = int_to_ptr.vmem [resolvable:$true] %s2643
          %s2645 = sshll.u32 %s2642, 4
          %s2646 = int_to_ptr.hbm [resolvable:$true] %s2645
          %2651 = dma.vmem_to_hbm [thread:$0]  %s2644, 1024, %s2646, %s2631, 256, 256, 16
        $region56: #{tpu_custom_call.1} parent=43 // pred_fallthru
          _
      $region44: #{tpu_custom_call.1} parent=5 // pred_fallthru
        _
      %p2652 = scmp.le.s32.totalorder 2, %s19
      // Predicated region
      $region57: #{tpu_custom_call.1} parent=5 // pred_check
        %p2653 = pneg %p2652
      $region58: #{tpu_custom_call.1} parent=5 // pred_check_branch
        %2655 = sbr.rel (%p2653) target = $region60
      $region59: #{tpu_custom_call.1} parent=5 // pred_region
        %s2656 = ssub.s32 %s19, 2
        // Predicated region
        $region61: #{tpu_custom_call.1} parent=59 // pred_check
          %p2657 = pneg %p179
        $region62: #{tpu_custom_call.1} parent=59 // pred_check_branch
          %2659 = sbr.rel (%p2657) target = $region64
        $region63: #{tpu_custom_call.1} parent=59 // pred_region
          %s2660 = sand.u32 %s164, 1
          %s2661 = scalar_lea.sflag [#allocation4], %s2660
          %s2662 = sand.u32 %s164, 1
          %s2663 = smul.addr %s2662, 64
          %s2664 = scalar_lea.vmem [#allocation7], %s2663
          %2666 = dma.done %s2661, 1024
        $region64: #{tpu_custom_call.1} parent=59 // pred_fallthru
          _
      $region60: #{tpu_custom_call.1} parent=5 // pred_fallthru
        _
    $region6: #{tpu_custom_call.1} parent=1 // loop_footer
      %s23 = sadd.s32 1, %s19
    $region7: #{tpu_custom_call.1} parent=1 // loop_footer_branch
      %18 = sbr.rel target = $region3
    $region8: #{tpu_custom_call.1} parent=1 // loop_exit
      _
    %2667 = vsyncpa [#allocation3], 1
    %s2668 = scalar_lea.sflag [#allocation3], 1
    %2669 = vsyncpa %s2668, 1
    %2670 = vsyncpa [#allocation4], 1
    %s2671 = scalar_lea.sflag [#allocation4], 1
    %2672 = vsyncpa %s2671, 1
    %2673 = vsyncpa [#allocation5], 1
    %s2674 = scalar_lea.sflag [#allocation5], 1
    %2675 = vsyncpa %s2674, 1

</llo_original>
